<compile_context>
chip_gen: v7x
topology: tpu7x:2x2x1
jax: 0.10.0
libtpu: 0.0.40
codegen_flags: <defaults>
</compile_context>

<pallas_src>
import functools
import math

import jax
import jax.numpy as jnp
from jax.experimental import pallas as pl
from jax.experimental.pallas import tpu as pltpu

_EPS_LN = 1e-5
_EPS_REV = 1e-5


def _vmem_limit_bytes():
    """~3/4 of physical VMEM, capped at 100 MiB (v5e/v6e: ~96 MiB, v7x: 48 MiB)."""
    try:
        info = pltpu.get_tpu_info()
        cap = getattr(info, "vmem_capacity_bytes", 64 * 1024 * 1024)
    except Exception:  # noqa: BLE001 - conservative fallback keeps v7x safe
        cap = 64 * 1024 * 1024
    return int(min(100 * 1024 * 1024, (cap * 3) // 4))


_VMEM_LIMIT = _vmem_limit_bytes()


def _cparams(semantics):
    return pltpu.CompilerParams(dimension_semantics=semantics,
                                vmem_limit_bytes=_VMEM_LIMIT)


def _tile(dim, target):
    """Return (tile, padded_dim). Never exceeds `target`; pads instead of falling back
    to the full dimension (targets are 8/128-aligned, so tiled blocks are aligned)."""
    if dim <= target:
        return dim, dim
    return target, ((dim + target - 1) // target) * target


def _pick_nblk(n_seq, patch_num, min_rows=256, max_rows=2048):
    """Sequences packed per encoder grid step. nb divides n_seq and either nb == n_seq
    (single full block) or nb*patch_num is 16-aligned (bf16/f32 sublane quantum)."""
    divs = [d for d in range(1, n_seq + 1)
            if n_seq % d == 0 and (d == n_seq or (d * patch_num) % 16 == 0)]
    good = [d for d in divs if min_rows <= d * patch_num <= max_rows]
    if good:
        return good[0]
    under = [d for d in divs if d * patch_num <= max_rows]
    if under:
        return under[-1]
    # TODO(synk): very large n_seq with awkward patch_num may need row padding here.
    return divs[0]


# ----------------------- tiled matmul (+bias, +activation) ------------------------


def _matmul_kernel(x_ref, w_ref, b_ref, o_ref, acc_ref, *, activation):
    k = pl.program_id(2)

    @pl.when(k == 0)
    def _():
        acc_ref[...] = jnp.zeros_like(acc_ref)

    x = x_ref[...]
    if x.dtype != jnp.bfloat16:          # inputs that are already bf16 stream as-is
        x = x.astype(jnp.bfloat16)
    acc_ref[...] += jnp.dot(x, w_ref[...], preferred_element_type=jnp.float32)

    @pl.when(k == pl.num_programs(2) - 1)
    def _():
        y = acc_ref[...] + b_ref[...]
        if activation == "relu":
            y = jnp.maximum(y, 0.0)
        elif activation == "gelu":
            # tanh-approx GELU fused into the epilogue (EUP tanh under an MXU-bound loop).
            c = 0.7978845608028654  # sqrt(2/pi)
            y = 0.5 * y * (1.0 + jnp.tanh(c * (y + 0.044715 * y * y * y)))
        o_ref[...] = y.astype(o_ref.dtype)


def linear(x, w, b, activation=None, out_dtype=jnp.float32, *, tm=256, tn=256, tk=512):
    """x: (M, K) @ w: (K, N) bf16 + b: (N,) -> (M, N) out_dtype, optional relu/gelu."""
    M, K = x.shape
    N = w.shape[1]
    tm, Mp = _tile(M, tm)
    tn, Np = _tile(N, tn)
    tk, Kp = _tile(K, tk)
    if (Mp, Kp) != (M, K):
        x = jnp.pad(x, ((0, Mp - M), (0, Kp - K)))
    if (Kp, Np) != (K, N):
        w = jnp.pad(w, ((0, Kp - K), (0, Np - N)))
    b2 = b.reshape(1, N)
    if Np != N:
        b2 = jnp.pad(b2, ((0, 0), (0, Np - N)))

    out = pl.pallas_call(
        functools.partial(_matmul_kernel, activation=activation),
        out_shape=jax.ShapeDtypeStruct((Mp, Np), out_dtype),
        grid=(Mp // tm, Np // tn, Kp // tk),
        in_specs=[
            pl.BlockSpec((tm, tk), lambda i, j, k: (i, k)),
            pl.BlockSpec((tk, tn), lambda i, j, k: (k, j)),
            pl.BlockSpec((1, tn), lambda i, j, k: (0, j)),
        ],
        out_specs=pl.BlockSpec((tm, tn), lambda i, j, k: (i, j)),
        scratch_shapes=[pltpu.VMEM((tm, tn), jnp.float32)],
        compiler_params=_cparams(("parallel", "parallel", "arbitrary")),
    )(x, w, b2)
    if (Mp, Np) != (M, N):
        out = out[:M, :N]
    return out


# ------------- fused seasonal encoder: patch embed + PE + all layers --------------


def _seasonal_kernel(p_ref, pe_ref, mask_ref, inw_ref, inb_ref,
                     wqkv_ref, bqkv_ref, wo_ref, bo_ref,
                     ln1g_ref, ln1b_ref, wf1_ref, bf1_ref,
                     wf2_ref, bf2_ref, ln2g_ref, ln2b_ref,
                     o_ref, *, nhead, head_dim, num_layers):
    E = nhead * head_dim
    scale = 1.0 / math.sqrt(head_dim)
    neg = mask_ref[...]        # (rows, rows): 0 within a sequence, -1e30 across sequences

    # Patch embedding + positional encoding on the packed (rows, patch_len) slab.
    h = jnp.dot(p_ref[...].astype(jnp.bfloat16), inw_ref[...],
                preferred_element_type=jnp.float32) + inb_ref[...] + pe_ref[...]

    for l in range(num_layers):                        # layers fused; weights VMEM-resident
        # ---- multi-head self attention (block-diagonal over packed sequences) ----
        qkv = jnp.dot(h.astype(jnp.bfloat16), wqkv_ref[l],
                      preferred_element_type=jnp.float32) + bqkv_ref[l]
        heads = []
        for hd in range(nhead):                        # small nhead -> static unroll
            lo = hd * head_dim
            q = qkv[:, lo:lo + head_dim].astype(jnp.bfloat16)
            k = qkv[:, E + lo:E + lo + head_dim].astype(jnp.bfloat16)
            v = qkv[:, 2 * E + lo:2 * E + lo + head_dim].astype(jnp.bfloat16)
            s = jax.lax.dot_general(q, k, (((1,), (1,)), ((), ())),
                                    preferred_element_type=jnp.float32)
            s = s * scale + neg
            s = s - jnp.max(s, axis=-1, keepdims=True)
            p = jnp.exp(s)
            p = p * pl.reciprocal(jnp.sum(p, axis=-1, keepdims=True), approx=True)
            heads.append(jnp.dot(p.astype(jnp.bfloat16), v,
                                 preferred_element_type=jnp.float32))
        # Gather all heads and do ONE bf16 output projection (E-wide contraction).
        attn = jnp.concatenate(heads, axis=-1).astype(jnp.bfloat16)   # (rows, E)
        attn = jnp.dot(attn, wo_ref[l], preferred_element_type=jnp.float32) + bo_ref[l]

        # ---- residual + LayerNorm 1 (post-norm, f32 statistics) ----
        x = h + attn
        mu = jnp.mean(x, axis=-1, keepdims=True)
        var = jnp.mean(jnp.square(x - mu), axis=-1, keepdims=True)
        x = (x - mu) * jax.lax.rsqrt(var + _EPS_LN) * ln1g_ref[l] + ln1b_ref[l]

        # ---- FFN (ReLU) + residual + LayerNorm 2 ----
        f = jnp.dot(x.astype(jnp.bfloat16), wf1_ref[l],
                    preferred_element_type=jnp.float32) + bf1_ref[l]
        f = jnp.maximum(f, 0.0)
        f = jnp.dot(f.astype(jnp.bfloat16), wf2_ref[l],
                    preferred_element_type=jnp.float32) + bf2_ref[l]
        y = x + f
        mu = jnp.mean(y, axis=-1, keepdims=True)
        var = jnp.mean(jnp.square(y - mu), axis=-1, keepdims=True)
        h = (y - mu) * jax.lax.rsqrt(var + _EPS_LN) * ln2g_ref[l] + ln2b_ref[l]

    o_ref[...] = h.astype(o_ref.dtype)                 # bf16 out -> halves decoder DMA


def seasonal_encoder(patches, pe, params, nhead, num_layers):
    """patches: (Nseq, P, patch_len) f32 -> (Nseq*P, E) bf16 encoder output rows."""
    Nseq, P, L = patches.shape
    E = params["inp_w"].shape[1]
    head_dim = E // nhead
    nblk = _pick_nblk(Nseq, P)
    rows = nblk * P

    patches2 = patches.reshape(Nseq * P, L)
    pe_rows = jnp.tile(pe[:P], (nblk, 1))                              # (rows, E)
    sid = jnp.arange(rows, dtype=jnp.int32) // P
    neg = jnp.where(sid[:, None] == sid[None, :], 0.0, -1e30).astype(jnp.float32)

    const2 = lambda i: (0, 0)
    const3 = lambda i: (0, 0, 0)
    row = lambda i: (i, 0)
    Lyr = num_layers

    return pl.pallas_call(
        functools.partial(_seasonal_kernel, nhead=nhead, head_dim=head_dim,
                          num_layers=num_layers),
        out_shape=jax.ShapeDtypeStruct((Nseq * P, E), jnp.bfloat16),
        grid=(Nseq // nblk,),
        in_specs=[
            pl.BlockSpec((rows, L), row),
            pl.BlockSpec((rows, E), const2),
            pl.BlockSpec((rows, rows), const2),
            pl.BlockSpec((L, E), const2),
            pl.BlockSpec((1, E), const2),
            pl.BlockSpec((Lyr, E, 3 * E), const3),
            pl.BlockSpec((Lyr, 1, 3 * E), const3),
            pl.BlockSpec((Lyr, E, E), const3),
            pl.BlockSpec((Lyr, 1, E), const3),
            pl.BlockSpec((Lyr, 1, E), const3),
            pl.BlockSpec((Lyr, 1, E), const3),
            pl.BlockSpec((Lyr, E, 4 * E), const3),
            pl.BlockSpec((Lyr, 1, 4 * E), const3),
            pl.BlockSpec((Lyr, 4 * E, E), const3),
            pl.BlockSpec((Lyr, 1, E), const3),
            pl.BlockSpec((Lyr, 1, E), const3),
            pl.BlockSpec((Lyr, 1, E), const3),
        ],
        out_specs=pl.BlockSpec((rows, E), row),
        compiler_params=_cparams(("parallel",)),
    )(patches2, pe_rows, neg,
      params["inp_w"], params["inp_b"].reshape(1, E),
      params["enc_wqkv"], params["enc_bqkv"],
      params["enc_wo"], params["enc_bo"],
      params["enc_ln1g"], params["enc_ln1b"],
      params["enc_wf1"], params["enc_bf1"],
      params["enc_wf2"], params["enc_bf2"],
      params["enc_ln2g"], params["enc_ln2b"])


# --------- fused trend branch: RevIN norm + RMLP + projection + denorm -------


def _trend_kernel(t_ref, rw_ref, rb_ref, w1_ref, b1_ref, w2_ref, b2_ref,
                  wp_ref, bp_ref, o_ref):
    x = t_ref[...]                                                 # (tm, I) f32
    rw = rw_ref[...]                                               # (tm, 1)
    rb = rb_ref[...]                                               # (tm, 1)

    # RevIN 'norm': per-series statistics over the time axis (ddof=0).
    mu = jnp.mean(x, axis=-1, keepdims=True)
    var = jnp.mean(jnp.square(x - mu), axis=-1, keepdims=True)
    sd = jnp.sqrt(var + _EPS_REV)
    inv_sd = jax.lax.rsqrt(var + _EPS_REV)                         # EUP, per row
    xn = (x - mu) * inv_sd * rw + rb

    # temporal: Linear -> ReLU -> Linear, residual.
    h1 = jnp.dot(xn.astype(jnp.bfloat16), w1_ref[...],
                 preferred_element_type=jnp.float32) + b1_ref[...]
    h1 = jnp.maximum(h1, 0.0)
    r = jnp.dot(h1.astype(jnp.bfloat16), w2_ref[...],
                preferred_element_type=jnp.float32) + b2_ref[...]
    y = xn + r

    # projection to pred_len, then RevIN 'denorm'.
    p = jnp.dot(y.astype(jnp.bfloat16), wp_ref[...],
                preferred_element_type=jnp.float32) + bp_ref[...]
    inv_rw = pl.reciprocal(rw + _EPS_REV * _EPS_REV)               # per row, not per element
    o_ref[...] = ((p - rb) * inv_rw * sd + mu).astype(o_ref.dtype)


def trend_rmlp(t_rows, rev_w_rows, rev_b_rows, params, *, tm=512):
    M, I = t_rows.shape
    E = params["tmp1_w"].shape[1]
    pred = params["proj_w"].shape[1]
    tm, Mp = _tile(M, tm)
    if Mp != M:
        t_rows = jnp.pad(t_rows, ((0, Mp - M), (0, 0)))
        rev_w_rows = jnp.pad(rev_w_rows, ((0, Mp - M), (0, 0)), constant_values=1.0)
        rev_b_rows = jnp.pad(rev_b_rows, ((0, Mp - M), (0, 0)))
    full = lambda i: (0, 0)
    row = lambda i: (i, 0)
    out = pl.pallas_call(
        _trend_kernel,
        out_shape=jax.ShapeDtypeStruct((Mp, pred), jnp.float32),
        grid=(Mp // tm,),
        in_specs=[
            pl.BlockSpec((tm, I), row),
            pl.BlockSpec((tm, 1), row),
            pl.BlockSpec((tm, 1), row),
            pl.BlockSpec((I, E), full), pl.BlockSpec((1, E), full),
            pl.BlockSpec((E, I), full), pl.BlockSpec((1, I), full),
            pl.BlockSpec((I, pred), full), pl.BlockSpec((1, pred), full),
        ],
        out_specs=pl.BlockSpec((tm, pred), row),
        compiler_params=_cparams(("parallel",)),
    )(t_rows, rev_w_rows, rev_b_rows,
      params["tmp1_w"], params["tmp1_b"].reshape(1, E),
      params["tmp2_w"], params["tmp2_b"].reshape(1, I),
      params["proj_w"], params["proj_b"].reshape(1, pred))
    return out[:M] if Mp != M else out


# ------------- fusion: split fc_fusion, no (N, 2*pred) concat in HBM ---------


def _fusion_kernel(s_ref, t_ref, ws_ref, wt_ref, b_ref, o_ref):
    y = jnp.dot(s_ref[...].astype(jnp.bfloat16), ws_ref[...],
                preferred_element_type=jnp.float32)
    y = y + jnp.dot(t_ref[...].astype(jnp.bfloat16), wt_ref[...],
                    preferred_element_type=jnp.float32)
    o_ref[...] = (y + b_ref[...]).astype(o_ref.dtype)


def fuse(s_rows, t_rows, ws, wt, b, *, tm=512):
    M, pred = s_rows.shape
    tm, Mp = _tile(M, tm)
    if Mp != M:
        s_rows = jnp.pad(s_rows, ((0, Mp - M), (0, 0)))
        t_rows = jnp.pad(t_rows, ((0, Mp - M), (0, 0)))
    full = lambda i: (0, 0)
    row = lambda i: (i, 0)
    out = pl.pallas_call(
        _fusion_kernel,
        out_shape=jax.ShapeDtypeStruct((Mp, pred), jnp.float32),
        grid=(Mp // tm,),
        in_specs=[
            pl.BlockSpec((tm, pred), row),
            pl.BlockSpec((tm, pred), row),
            pl.BlockSpec((pred, pred), full),
            pl.BlockSpec((pred, pred), full),
            pl.BlockSpec((1, pred), full),
        ],
        out_specs=pl.BlockSpec((tm, pred), row),
        compiler_params=_cparams(("parallel",)),
    )(s_rows, t_rows, ws, wt, b.reshape(1, pred))
    return out[:M] if Mp != M else out


# ------------------------------ parameters ----------------------------------


def make_positional_encoding(max_len, d_model):
    position = jnp.arange(max_len, dtype=jnp.float32)[:, None]
    div_term = jnp.exp(
        jnp.arange(0, d_model, 2, dtype=jnp.float32) * (-math.log(10000.0) / d_model))
    pe = jnp.zeros((max_len, d_model), jnp.float32)
    pe = pe.at[:, 0::2].set(jnp.sin(position * div_term))
    pe = pe.at[:, 1::2].set(jnp.cos(position * div_term))
    return pe


def init_params(key, cfg, channels):
    keys = iter(jax.random.split(key, 128))

    def w(shape):  # matmul weights live in bf16 (MXU-native, half the DMA bytes)
        return (0.02 * jax.random.normal(next(keys), shape, jnp.float32)).astype(jnp.bfloat16)

    zeros = lambda shape: jnp.zeros(shape, jnp.float32)
    ones = lambda shape: jnp.ones(shape, jnp.float32)

    E = cfg["d_model"]
    P = cfg["patch_num"]
    pred = cfg["pred_len"]
    seq = cfg["seq_len"]
    L = cfg["num_layers"]

    params = {
        "inp_w": w((cfg["patch_len"], E)), "inp_b": zeros((E,)),
        "pe": make_positional_encoding(5000, E),
        "dec1_w": w((E * P, 2 * pred)), "dec1_b": zeros((2 * pred,)),
        "dec2_w": w((2 * pred, pred)), "dec2_b": zeros((pred,)),
        "tmp1_w": w((seq, E)), "tmp1_b": zeros((E,)),
        "tmp2_w": w((E, seq)), "tmp2_b": zeros((seq,)),
        "proj_w": w((seq, pred)), "proj_b": zeros((pred,)),
        # fc_fusion split into seasonal / trend halves (feature order [s | t]).
        "fus_ws": w((pred, pred)), "fus_wt": w((pred, pred)), "fus_b": zeros((pred,)),
        "rev_w": ones((channels,)), "rev_b": zeros((channels,)),
        # Encoder layers stacked on a leading num_layers axis (VMEM-resident stack).
        "enc_wqkv": jnp.stack([w((E, 3 * E)) for _ in range(L)]),
        "enc_bqkv": zeros((L, 1, 3 * E)),
        "enc_wo": jnp.stack([w((E, E)) for _ in range(L)]),
        "enc_bo": zeros((L, 1, E)),
        "enc_ln1g": ones((L, 1, E)), "enc_ln1b": zeros((L, 1, E)),
        "enc_wf1": jnp.stack([w((E, 4 * E)) for _ in range(L)]),
        "enc_bf1": zeros((L, 1, 4 * E)),
        "enc_wf2": jnp.stack([w((4 * E, E)) for _ in range(L)]),
        "enc_bf2": zeros((L, 1, E)),
        "enc_ln2g": ones((L, 1, E)), "enc_ln2b": zeros((L, 1, E)),
    }
    return params


# ------------------------------- forward -------------------------------------


def transformer_rmlp_forward(params, s, t, cfg):
    B, I, C = s.shape
    Nseq = B * C
    E = cfg["d_model"]
    P = cfg["patch_num"]
    pred = cfg["pred_len"]

    # ---------------- seasonal branch (patched Transformer) -----------------
    x = jnp.transpose(s, (0, 2, 1)).reshape(Nseq, I)              # (B*C, I)
    if cfg["padding_patch"] == "end":                             # ReplicationPad1d((0, stride))
        pad = jnp.repeat(x[:, -1:], cfg["stride"], axis=1)
        x = jnp.concatenate([x, pad], axis=1)
    # unfold(dim=-1, size=patch_len, step=stride)
    idx = (jnp.arange(P) * cfg["stride"])[:, None] + jnp.arange(cfg["patch_len"])[None, :]
    patches = x[:, idx]                                           # (Nseq, P, patch_len)

    h_rows = seasonal_encoder(patches, params["pe"], params,
                              cfg["nhead"], cfg["num_layers"])    # (Nseq*P, E) bf16
    h_flat = h_rows.reshape(Nseq, P * E)                          # contiguous, free reshape

    dec = linear(h_flat, params["dec1_w"], params["dec1_b"],
                 activation="gelu", out_dtype=jnp.bfloat16)       # fused GELU epilogue
    s_rows = linear(dec, params["dec2_w"], params["dec2_b"], out_dtype=jnp.float32)

    # ---------------- trend branch (RevIN + residual MLP), fully fused ------
    t_rows = jnp.transpose(t, (0, 2, 1)).reshape(Nseq, I)         # rows are (b, c) series
    rev_w_rows = jnp.tile(params["rev_w"], B).reshape(Nseq, 1)
    rev_b_rows = jnp.tile(params["rev_b"], B).reshape(Nseq, 1)
    t_out_rows = trend_rmlp(t_rows, rev_w_rows, rev_b_rows, params)   # (Nseq, pred)

    # ------------------------------ fusion ----------------------------------
    # cat([s, t], dim=1).permute(0,2,1) @ fc_fusion == s_rows @ Ws + t_rows @ Wt
    out_rows = fuse(s_rows, t_out_rows,
                    params["fus_ws"], params["fus_wt"], params["fus_b"])  # (Nseq, pred)
    return jnp.transpose(out_rows.reshape(B, C, pred), (0, 2, 1))         # (B, pred, C)


# --------------------------------- main ---------------------------------------

if __name__ == "__main__":
    B, C = 2, 4
    cfg = dict(
        seq_len=16, pred_len=8, patch_len=4, stride=4, padding_patch="end",
        d_model=32, nhead=4, num_layers=2,
    )
    cfg["patch_num"] = (cfg["seq_len"] - cfg["patch_len"]) // cfg["stride"] + 1
    if cfg["padding_patch"] == "end":
        cfg["patch_num"] += 1

    key = jax.random.PRNGKey(0)
    kp, ks, kt = jax.random.split(key, 3)
    params = init_params(kp, cfg, C)
    s = jax.random.normal(ks, (B, cfg["seq_len"], C), jnp.float32)
    t = jax.random.normal(kt, (B, cfg["seq_len"], C), jnp.float32)

    fwd = jax.jit(functools.partial(transformer_rmlp_forward, cfg=cfg))
    out = fwd(params, s, t)
    jax.block_until_ready(out)
    assert out.shape == (B, cfg["pred_len"], C)
    assert bool(jnp.all(jnp.isfinite(out)))
    print("KERNEL_OK")
</pallas_src>

<mosaic_0001>
module attributes {stable_mosaic.version = 11 : i64} {
  func.func @_matmul_kernel(%arg0: i32, %arg1: i32, %arg2: i32, %arg3: memref<8x160xbf16, #tpu.memory_space<vmem>>, %arg4: memref<160x16xbf16, #tpu.memory_space<vmem>>, %arg5: memref<1x16xf32, #tpu.memory_space<vmem>>, %arg6: memref<8x16xbf16, #tpu.memory_space<vmem>>, %arg7: memref<8x16xf32, #tpu.memory_space<vmem>>) attributes {dimension_semantics = [#tpu.dimension_semantics<parallel>, #tpu.dimension_semantics<parallel>, #tpu.dimension_semantics<arbitrary>], iteration_bounds = array<i64: 1, 1, 1>, scalar_prefetch = 0 : i64, scratch_operands = 1 : i64, tpu.core_type = #tpu.core_type<tc>, window_params = [{transform_indices = @transform_0, window_bounds = array<i64: 8, 160>}, {transform_indices = @transform_1, window_bounds = array<i64: 160, 16>}, {transform_indices = @transform_2, window_bounds = array<i64: 1, 16>}, {transform_indices = @transform_3, window_bounds = array<i64: 8, 16>}]} {
    %c0_i32 = arith.constant 0 : i32
    %0 = arith.cmpi eq, %arg2, %c0_i32 : i32
    %1 = arith.extui %0 : i1 to i32
    %c0_i32_0 = arith.constant 0 : i32
    %2 = arith.cmpi ne, %1, %c0_i32_0 : i32
    scf.if %2 {
      %cst_10 = arith.constant 0.000000e+00 : f32
      %12 = vector.broadcast %cst_10 : f32 to vector<8x16xf32>
      %c0_11 = arith.constant 0 : index
      %c0_12 = arith.constant 0 : index
      %13 = vector.load %arg7[%c0_11, %c0_12] : memref<8x16xf32, #tpu.memory_space<vmem>>, vector<8x16xf32>
      tpu.vector_store %arg7[%c0_11, %c0_12], %12 {strides = array<i32>} : memref<8x16xf32, #tpu.memory_space<vmem>>, vector<8x16xf32>,
    } else {
    }
    %c0 = arith.constant 0 : index
    %c0_1 = arith.constant 0 : index
    %3 = vector.load %arg3[%c0, %c0_1] : memref<8x160xbf16, #tpu.memory_space<vmem>>, vector<8x160xbf16>
    %c0_2 = arith.constant 0 : index
    %c0_3 = arith.constant 0 : index
    %4 = vector.load %arg7[%c0_2, %c0_3] : memref<8x16xf32, #tpu.memory_space<vmem>>, vector<8x16xf32>
    %c0_4 = arith.constant 0 : index
    %c0_5 = arith.constant 0 : index
    %5 = vector.load %arg4[%c0_4, %c0_5] : memref<160x16xbf16, #tpu.memory_space<vmem>>, vector<160x16xbf16>
    %cst = arith.constant dense<0.000000e+00> : vector<8x16xf32>
    %6 = tpu.matmul %3, %5, %cst {dimension_numbers = #tpu.dot_dimension_numbers<[1], [0], [0], [1], [0, 0, 1, 1], [], []>} : vector<8x160xbf16>, vector<160x16xbf16>, vector<8x16xf32> -> vector<8x16xf32>
    %7 = arith.addf %4, %6 : vector<8x16xf32>
    %c0_6 = arith.constant 0 : index
    %c0_7 = arith.constant 0 : index
    %8 = vector.load %arg7[%c0_6, %c0_7] : memref<8x16xf32, #tpu.memory_space<vmem>>, vector<8x16xf32>
    tpu.vector_store %arg7[%c0_6, %c0_7], %7 {strides = array<i32>} : memref<8x16xf32, #tpu.memory_space<vmem>>, vector<8x16xf32>,
    %c0_i32_8 = arith.constant 0 : i32
    %9 = arith.cmpi eq, %arg2, %c0_i32_8 : i32
    %10 = arith.extui %9 : i1 to i32
    %c0_i32_9 = arith.constant 0 : i32
    %11 = arith.cmpi ne, %10, %c0_i32_9 : i32
    scf.if %11 {
      %c0_10 = arith.constant 0 : index
      %c0_11 = arith.constant 0 : index
      %12 = vector.load %arg7[%c0_10, %c0_11] : memref<8x16xf32, #tpu.memory_space<vmem>>, vector<8x16xf32>
      %c0_12 = arith.constant 0 : index
      %c0_13 = arith.constant 0 : index
      %13 = vector.load %arg5[%c0_12, %c0_13] : memref<1x16xf32, #tpu.memory_space<vmem>>, vector<1x16xf32>
      %14 = vector.broadcast %13 : vector<1x16xf32> to vector<8x16xf32>
      %15 = arith.addf %12, %14 : vector<8x16xf32>
      %cst_14 = arith.constant 5.000000e-01 : f32
      %16 = vector.broadcast %cst_14 : f32 to vector<8x16xf32>
      %17 = arith.mulf %16, %15 : vector<8x16xf32>
      %cst_15 = arith.constant 4.471500e-02 : f32
      %18 = vector.broadcast %cst_15 : f32 to vector<8x16xf32>
      %19 = arith.mulf %18, %15 : vector<8x16xf32>
      %20 = arith.mulf %19, %15 : vector<8x16xf32>
      %21 = arith.mulf %20, %15 : vector<8x16xf32>
      %22 = arith.addf %15, %21 : vector<8x16xf32>
      %cst_16 = arith.constant 0.797884583 : f32
      %23 = vector.broadcast %cst_16 : f32 to vector<8x16xf32>
      %24 = arith.mulf %23, %22 : vector<8x16xf32>
      %25 = math.tanh %24 : vector<8x16xf32>
      %cst_17 = arith.constant 1.000000e+00 : f32
      %26 = vector.broadcast %cst_17 : f32 to vector<8x16xf32>
      %27 = arith.addf %26, %25 : vector<8x16xf32>
      %28 = arith.mulf %17, %27 : vector<8x16xf32>
      %29 = arith.truncf %28 : vector<8x16xf32> to vector<8x16xbf16>
      %c0_18 = arith.constant 0 : index
      %c0_19 = arith.constant 0 : index
      %30 = vector.load %arg6[%c0_18, %c0_19] : memref<8x16xbf16, #tpu.memory_space<vmem>>, vector<8x16xbf16>
      tpu.vector_store %arg6[%c0_18, %c0_19], %29 {strides = array<i32>} : memref<8x16xbf16, #tpu.memory_space<vmem>>, vector<8x16xbf16>,
    } else {
    }
    return
  }
  func.func @transform_0(%arg0: i32, %arg1: i32, %arg2: i32) -> (i32, i32) {
    %c0_i32 = arith.constant 0 : i32
    return %arg0, %arg2 : i32, i32
  }
  func.func @transform_1(%arg0: i32, %arg1: i32, %arg2: i32) -> (i32, i32) {
    %c0_i32 = arith.constant 0 : i32
    return %arg2, %arg1 : i32, i32
  }
  func.func @transform_2(%arg0: i32, %arg1: i32, %arg2: i32) -> (i32, i32) {
    %c0_i32 = arith.constant 0 : i32
    %c0_i32_0 = arith.constant 0 : i32
    return %c0_i32, %arg1 : i32, i32
  }
  func.func @transform_3(%arg0: i32, %arg1: i32, %arg2: i32) -> (i32, i32) {
    %c0_i32 = arith.constant 0 : i32
    return %arg0, %arg1 : i32, i32
  }
}

module attributes {stable_mosaic.version = 11 : i64} {
  func.func @_matmul_kernel(%arg0: i32, %arg1: i32, %arg2: i32, %arg3: memref<8x16xbf16, #tpu.memory_space<vmem>>, %arg4: memref<16x8xbf16, #tpu.memory_space<vmem>>, %arg5: memref<1x8xf32, #tpu.memory_space<vmem>>, %arg6: memref<8x8xf32, #tpu.memory_space<vmem>>, %arg7: memref<8x8xf32, #tpu.memory_space<vmem>>) attributes {dimension_semantics = [#tpu.dimension_semantics<parallel>, #tpu.dimension_semantics<parallel>, #tpu.dimension_semantics<arbitrary>], iteration_bounds = array<i64: 1, 1, 1>, scalar_prefetch = 0 : i64, scratch_operands = 1 : i64, tpu.core_type = #tpu.core_type<tc>, window_params = [{transform_indices = @transform_0, window_bounds = array<i64: 8, 16>}, {transform_indices = @transform_1, window_bounds = array<i64: 16, 8>}, {transform_indices = @transform_2, window_bounds = array<i64: 1, 8>}, {transform_indices = @transform_3, window_bounds = array<i64: 8, 8>}]} {
    %c0_i32 = arith.constant 0 : i32
    %0 = arith.cmpi eq, %arg2, %c0_i32 : i32
    %1 = arith.extui %0 : i1 to i32
    %c0_i32_0 = arith.constant 0 : i32
    %2 = arith.cmpi ne, %1, %c0_i32_0 : i32
    scf.if %2 {
      %cst_10 = arith.constant 0.000000e+00 : f32
      %12 = vector.broadcast %cst_10 : f32 to vector<8x8xf32>
      %c0_11 = arith.constant 0 : index
      %c0_12 = arith.constant 0 : index
      %13 = vector.load %arg7[%c0_11, %c0_12] : memref<8x8xf32, #tpu.memory_space<vmem>>, vector<8x8xf32>
      tpu.vector_store %arg7[%c0_11, %c0_12], %12 {strides = array<i32>} : memref<8x8xf32, #tpu.memory_space<vmem>>, vector<8x8xf32>,
    } else {
    }
    %c0 = arith.constant 0 : index
    %c0_1 = arith.constant 0 : index
    %3 = vector.load %arg3[%c0, %c0_1] : memref<8x16xbf16, #tpu.memory_space<vmem>>, vector<8x16xbf16>
    %c0_2 = arith.constant 0 : index
    %c0_3 = arith.constant 0 : index
    %4 = vector.load %arg7[%c0_2, %c0_3] : memref<8x8xf32, #tpu.memory_space<vmem>>, vector<8x8xf32>
    %c0_4 = arith.constant 0 : index
    %c0_5 = arith.constant 0 : index
    %5 = vector.load %arg4[%c0_4, %c0_5] : memref<16x8xbf16, #tpu.memory_space<vmem>>, vector<16x8xbf16>
    %cst = arith.constant dense<0.000000e+00> : vector<8x8xf32>
    %6 = tpu.matmul %3, %5, %cst {dimension_numbers = #tpu.dot_dimension_numbers<[1], [0], [0], [1], [0, 0, 1, 1], [], []>} : vector<8x16xbf16>, vector<16x8xbf16>, vector<8x8xf32> -> vector<8x8xf32>
    %7 = arith.addf %4, %6 : vector<8x8xf32>
    %c0_6 = arith.constant 0 : index
    %c0_7 = arith.constant 0 : index
    %8 = vector.load %arg7[%c0_6, %c0_7] : memref<8x8xf32, #tpu.memory_space<vmem>>, vector<8x8xf32>
    tpu.vector_store %arg7[%c0_6, %c0_7], %7 {strides = array<i32>} : memref<8x8xf32, #tpu.memory_space<vmem>>, vector<8x8xf32>,
    %c0_i32_8 = arith.constant 0 : i32
    %9 = arith.cmpi eq, %arg2, %c0_i32_8 : i32
    %10 = arith.extui %9 : i1 to i32
    %c0_i32_9 = arith.constant 0 : i32
    %11 = arith.cmpi ne, %10, %c0_i32_9 : i32
    scf.if %11 {
      %c0_10 = arith.constant 0 : index
      %c0_11 = arith.constant 0 : index
      %12 = vector.load %arg7[%c0_10, %c0_11] : memref<8x8xf32, #tpu.memory_space<vmem>>, vector<8x8xf32>
      %c0_12 = arith.constant 0 : index
      %c0_13 = arith.constant 0 : index
      %13 = vector.load %arg5[%c0_12, %c0_13] : memref<1x8xf32, #tpu.memory_space<vmem>>, vector<1x8xf32>
      %14 = vector.broadcast %13 : vector<1x8xf32> to vector<8x8xf32>
      %15 = arith.addf %12, %14 : vector<8x8xf32>
      %c0_14 = arith.constant 0 : index
      %c0_15 = arith.constant 0 : index
      %16 = vector.load %arg6[%c0_14, %c0_15] : memref<8x8xf32, #tpu.memory_space<vmem>>, vector<8x8xf32>
      tpu.vector_store %arg6[%c0_14, %c0_15], %15 {strides = array<i32>} : memref<8x8xf32, #tpu.memory_space<vmem>>, vector<8x8xf32>,
    } else {
    }
    return
  }
  func.func @transform_0(%arg0: i32, %arg1: i32, %arg2: i32) -> (i32, i32) {
    %c0_i32 = arith.constant 0 : i32
    return %arg0, %arg2 : i32, i32
  }
  func.func @transform_1(%arg0: i32, %arg1: i32, %arg2: i32) -> (i32, i32) {
    %c0_i32 = arith.constant 0 : i32
    return %arg2, %arg1 : i32, i32
  }
  func.func @transform_2(%arg0: i32, %arg1: i32, %arg2: i32) -> (i32, i32) {
    %c0_i32 = arith.constant 0 : i32
    %c0_i32_0 = arith.constant 0 : i32
    return %c0_i32, %arg1 : i32, i32
  }
  func.func @transform_3(%arg0: i32, %arg1: i32, %arg2: i32) -> (i32, i32) {
    %c0_i32 = arith.constant 0 : i32
    return %arg0, %arg1 : i32, i32
  }
}

module attributes {stable_mosaic.version = 11 : i64} {
  func.func @_seasonal_kernel(%arg0: i32, %arg1: memref<40x4xf32, #tpu.memory_space<vmem>>, %arg2: memref<40x32xf32, #tpu.memory_space<vmem>>, %arg3: memref<40x40xf32, #tpu.memory_space<vmem>>, %arg4: memref<4x32xbf16, #tpu.memory_space<vmem>>, %arg5: memref<1x32xf32, #tpu.memory_space<vmem>>, %arg6: memref<2x32x96xbf16, #tpu.memory_space<vmem>>, %arg7: memref<2x1x96xf32, #tpu.memory_space<vmem>>, %arg8: memref<2x32x32xbf16, #tpu.memory_space<vmem>>, %arg9: memref<2x1x32xf32, #tpu.memory_space<vmem>>, %arg10: memref<2x1x32xf32, #tpu.memory_space<vmem>>, %arg11: memref<2x1x32xf32, #tpu.memory_space<vmem>>, %arg12: memref<2x32x128xbf16, #tpu.memory_space<vmem>>, %arg13: memref<2x1x128xf32, #tpu.memory_space<vmem>>, %arg14: memref<2x128x32xbf16, #tpu.memory_space<vmem>>, %arg15: memref<2x1x32xf32, #tpu.memory_space<vmem>>, %arg16: memref<2x1x32xf32, #tpu.memory_space<vmem>>, %arg17: memref<2x1x32xf32, #tpu.memory_space<vmem>>, %arg18: memref<40x32xbf16, #tpu.memory_space<vmem>>) attributes {dimension_semantics = [#tpu.dimension_semantics<parallel>], iteration_bounds = array<i64: 1>, scalar_prefetch = 0 : i64, scratch_operands = 0 : i64, tpu.core_type = #tpu.core_type<tc>, window_params = [{transform_indices = @transform_0, window_bounds = array<i64: 40, 4>}, {pipeline_mode = #tpu.pipeline_mode<synchronous>, transform_indices = @transform_1, window_bounds = array<i64: 40, 32>}, {pipeline_mode = #tpu.pipeline_mode<synchronous>, transform_indices = @transform_2, window_bounds = array<i64: 40, 40>}, {pipeline_mode = #tpu.pipeline_mode<synchronous>, transform_indices = @transform_3, window_bounds = array<i64: 4, 32>}, {pipeline_mode = #tpu.pipeline_mode<synchronous>, transform_indices = @transform_4, window_bounds = array<i64: 1, 32>}, {pipeline_mode = #tpu.pipeline_mode<synchronous>, transform_indices = @transform_5, window_bounds = array<i64: 2, 32, 96>}, {pipeline_mode = #tpu.pipeline_mode<synchronous>, transform_indices = @transform_6, window_bounds = array<i64: 2, 1, 96>}, {pipeline_mode = #tpu.pipeline_mode<synchronous>, transform_indices = @transform_7, window_bounds = array<i64: 2, 32, 32>}, {pipeline_mode = #tpu.pipeline_mode<synchronous>, transform_indices = @transform_8, window_bounds = array<i64: 2, 1, 32>}, {pipeline_mode = #tpu.pipeline_mode<synchronous>, transform_indices = @transform_9, window_bounds = array<i64: 2, 1, 32>}, {pipeline_mode = #tpu.pipeline_mode<synchronous>, transform_indices = @transform_10, window_bounds = array<i64: 2, 1, 32>}, {pipeline_mode = #tpu.pipeline_mode<synchronous>, transform_indices = @transform_11, window_bounds = array<i64: 2, 32, 128>}, {pipeline_mode = #tpu.pipeline_mode<synchronous>, transform_indices = @transform_12, window_bounds = array<i64: 2, 1, 128>}, {pipeline_mode = #tpu.pipeline_mode<synchronous>, transform_indices = @transform_13, window_bounds = array<i64: 2, 128, 32>}, {pipeline_mode = #tpu.pipeline_mode<synchronous>, transform_indices = @transform_14, window_bounds = array<i64: 2, 1, 32>}, {pipeline_mode = #tpu.pipeline_mode<synchronous>, transform_indices = @transform_15, window_bounds = array<i64: 2, 1, 32>}, {pipeline_mode = #tpu.pipeline_mode<synchronous>, transform_indices = @transform_16, window_bounds = array<i64: 2, 1, 32>}, {transform_indices = @transform_17, window_bounds = array<i64: 40, 32>}]} {
    %c0 = arith.constant 0 : index
    %c0_0 = arith.constant 0 : index
    %0 = vector.load %arg3[%c0, %c0_0] : memref<40x40xf32, #tpu.memory_space<vmem>>, vector<40x40xf32>
    %c0_1 = arith.constant 0 : index
    %c0_2 = arith.constant 0 : index
    %1 = vector.load %arg1[%c0_1, %c0_2] : memref<40x4xf32, #tpu.memory_space<vmem>>, vector<40x4xf32>
    %2 = arith.truncf %1 : vector<40x4xf32> to vector<40x4xbf16>
    %c0_3 = arith.constant 0 : index
    %c0_4 = arith.constant 0 : index
    %3 = vector.load %arg4[%c0_3, %c0_4] : memref<4x32xbf16, #tpu.memory_space<vmem>>, vector<4x32xbf16>
    %cst = arith.constant dense<0.000000e+00> : vector<40x32xf32>
    %4 = tpu.matmul %2, %3, %cst {dimension_numbers = #tpu.dot_dimension_numbers<[1], [0], [0], [1], [0, 0, 1, 1], [], []>} : vector<40x4xbf16>, vector<4x32xbf16>, vector<40x32xf32> -> vector<40x32xf32>
    %c0_5 = arith.constant 0 : index
    %c0_6 = arith.constant 0 : index
    %5 = vector.load %arg5[%c0_5, %c0_6] : memref<1x32xf32, #tpu.memory_space<vmem>>, vector<1x32xf32>
    %6 = vector.broadcast %5 : vector<1x32xf32> to vector<40x32xf32>
    %7 = arith.addf %4, %6 : vector<40x32xf32>
    %c0_7 = arith.constant 0 : index
    %c0_8 = arith.constant 0 : index
    %8 = vector.load %arg2[%c0_7, %c0_8] : memref<40x32xf32, #tpu.memory_space<vmem>>, vector<40x32xf32>
    %9 = arith.addf %7, %8 : vector<40x32xf32>
    %10 = arith.truncf %9 : vector<40x32xf32> to vector<40x32xbf16>
    %c0_9 = arith.constant 0 : index
    %c0_10 = arith.constant 0 : index
    %c0_11 = arith.constant 0 : index
    %11 = vector.load %arg6[%c0_9, %c0_10, %c0_11] : memref<2x32x96xbf16, #tpu.memory_space<vmem>>, vector<1x32x96xbf16>
    %12 = vector.shape_cast %11 : vector<1x32x96xbf16> to vector<32x96xbf16>
    %cst_12 = arith.constant dense<0.000000e+00> : vector<40x96xf32>
    %13 = tpu.matmul %10, %12, %cst_12 {dimension_numbers = #tpu.dot_dimension_numbers<[1], [0], [0], [1], [0, 0, 1, 1], [], []>} : vector<40x32xbf16>, vector<32x96xbf16>, vector<40x96xf32> -> vector<40x96xf32>
    %c0_13 = arith.constant 0 : index
    %c0_14 = arith.constant 0 : index
    %c0_15 = arith.constant 0 : index
    %14 = vector.load %arg7[%c0_13, %c0_14, %c0_15] : memref<2x1x96xf32, #tpu.memory_space<vmem>>, vector<1x1x96xf32>
    %15 = vector.shape_cast %14 : vector<1x1x96xf32> to vector<1x96xf32>
    %16 = vector.broadcast %15 : vector<1x96xf32> to vector<40x96xf32>
    %17 = arith.addf %13, %16 : vector<40x96xf32>
    %18 = vector.extract_strided_slice %17 {offsets = [0, 0], sizes = [40, 8], strides = [1, 1]} : vector<40x96xf32> to vector<40x8xf32>
    %19 = arith.truncf %18 : vector<40x8xf32> to vector<40x8xbf16>
    %20 = vector.extract_strided_slice %17 {offsets = [0, 32], sizes = [40, 8], strides = [1, 1]} : vector<40x96xf32> to vector<40x8xf32>
    %21 = arith.truncf %20 : vector<40x8xf32> to vector<40x8xbf16>
    %22 = vector.extract_strided_slice %17 {offsets = [0, 64], sizes = [40, 8], strides = [1, 1]} : vector<40x96xf32> to vector<40x8xf32>
    %23 = arith.truncf %22 : vector<40x8xf32> to vector<40x8xbf16>
    %cst_16 = arith.constant dense<0.000000e+00> : vector<40x40xf32>
    %24 = tpu.matmul %19, %21, %cst_16 {dimension_numbers = #tpu.dot_dimension_numbers<[1], [1], [0], [0], [0, 0, 1, 0], [], []>} : vector<40x8xbf16>, vector<40x8xbf16>, vector<40x40xf32> -> vector<40x40xf32>
    %cst_17 = arith.constant 0.353553385 : f32
    %25 = vector.broadcast %cst_17 : f32 to vector<40x40xf32>
    %26 = arith.mulf %24, %25 : vector<40x40xf32>
    %27 = arith.addf %26, %0 : vector<40x40xf32>
    %cst_18 = arith.constant dense<0xFF800000> : vector<40xf32>
    %28 = vector.multi_reduction <maximumf>, %27, %cst_18 [1] : vector<40x40xf32> to vector<40xf32>
    %29 = vector.shape_cast %28 : vector<40xf32> to vector<40x1xf32>
    %30 = vector.broadcast %29 : vector<40x1xf32> to vector<40x40xf32>
    %31 = arith.subf %27, %30 : vector<40x40xf32>
    %32 = math.exp %31 : vector<40x40xf32>
    %cst_19 = arith.constant dense<0.000000e+00> : vector<40xf32>
    %33 = vector.multi_reduction <add>, %32, %cst_19 [1] : vector<40x40xf32> to vector<40xf32>
    %34 = vector.shape_cast %33 : vector<40xf32> to vector<40x1xf32>
    %35 = tpu.reciprocal %34 {approx = true} : vector<40x1xf32> -> vector<40x1xf32>
    %36 = vector.broadcast %35 : vector<40x1xf32> to vector<40x40xf32>
    %37 = arith.mulf %32, %36 : vector<40x40xf32>
    %38 = arith.truncf %37 : vector<40x40xf32> to vector<40x40xbf16>
    %cst_20 = arith.constant dense<0.000000e+00> : vector<40x8xf32>
    %39 = tpu.matmul %38, %23, %cst_20 {dimension_numbers = #tpu.dot_dimension_numbers<[1], [0], [0], [1], [0, 0, 1, 1], [], []>} : vector<40x40xbf16>, vector<40x8xbf16>, vector<40x8xf32> -> vector<40x8xf32>
    %40 = vector.extract_strided_slice %17 {offsets = [0, 8], sizes = [40, 8], strides = [1, 1]} : vector<40x96xf32> to vector<40x8xf32>
    %41 = arith.truncf %40 : vector<40x8xf32> to vector<40x8xbf16>
    %42 = vector.extract_strided_slice %17 {offsets = [0, 40], sizes = [40, 8], strides = [1, 1]} : vector<40x96xf32> to vector<40x8xf32>
    %43 = arith.truncf %42 : vector<40x8xf32> to vector<40x8xbf16>
    %44 = vector.extract_strided_slice %17 {offsets = [0, 72], sizes = [40, 8], strides = [1, 1]} : vector<40x96xf32> to vector<40x8xf32>
    %45 = arith.truncf %44 : vector<40x8xf32> to vector<40x8xbf16>
    %cst_21 = arith.constant dense<0.000000e+00> : vector<40x40xf32>
    %46 = tpu.matmul %41, %43, %cst_21 {dimension_numbers = #tpu.dot_dimension_numbers<[1], [1], [0], [0], [0, 0, 1, 0], [], []>} : vector<40x8xbf16>, vector<40x8xbf16>, vector<40x40xf32> -> vector<40x40xf32>
    %cst_22 = arith.constant 0.353553385 : f32
    %47 = vector.broadcast %cst_22 : f32 to vector<40x40xf32>
    %48 = arith.mulf %46, %47 : vector<40x40xf32>
    %49 = arith.addf %48, %0 : vector<40x40xf32>
    %cst_23 = arith.constant dense<0xFF800000> : vector<40xf32>
    %50 = vector.multi_reduction <maximumf>, %49, %cst_23 [1] : vector<40x40xf32> to vector<40xf32>
    %51 = vector.shape_cast %50 : vector<40xf32> to vector<40x1xf32>
    %52 = vector.broadcast %51 : vector<40x1xf32> to vector<40x40xf32>
    %53 = arith.subf %49, %52 : vector<40x40xf32>
    %54 = math.exp %53 : vector<40x40xf32>
    %cst_24 = arith.constant dense<0.000000e+00> : vector<40xf32>
    %55 = vector.multi_reduction <add>, %54, %cst_24 [1] : vector<40x40xf32> to vector<40xf32>
    %56 = vector.shape_cast %55 : vector<40xf32> to vector<40x1xf32>
    %57 = tpu.reciprocal %56 {approx = true} : vector<40x1xf32> -> vector<40x1xf32>
    %58 = vector.broadcast %57 : vector<40x1xf32> to vector<40x40xf32>
    %59 = arith.mulf %54, %58 : vector<40x40xf32>
    %60 = arith.truncf %59 : vector<40x40xf32> to vector<40x40xbf16>
    %cst_25 = arith.constant dense<0.000000e+00> : vector<40x8xf32>
    %61 = tpu.matmul %60, %45, %cst_25 {dimension_numbers = #tpu.dot_dimension_numbers<[1], [0], [0], [1], [0, 0, 1, 1], [], []>} : vector<40x40xbf16>, vector<40x8xbf16>, vector<40x8xf32> -> vector<40x8xf32>
    %62 = vector.extract_strided_slice %17 {offsets = [0, 16], sizes = [40, 8], strides = [1, 1]} : vector<40x96xf32> to vector<40x8xf32>
    %63 = arith.truncf %62 : vector<40x8xf32> to vector<40x8xbf16>
    %64 = vector.extract_strided_slice %17 {offsets = [0, 48], sizes = [40, 8], strides = [1, 1]} : vector<40x96xf32> to vector<40x8xf32>
    %65 = arith.truncf %64 : vector<40x8xf32> to vector<40x8xbf16>
    %66 = vector.extract_strided_slice %17 {offsets = [0, 80], sizes = [40, 8], strides = [1, 1]} : vector<40x96xf32> to vector<40x8xf32>
    %67 = arith.truncf %66 : vector<40x8xf32> to vector<40x8xbf16>
    %cst_26 = arith.constant dense<0.000000e+00> : vector<40x40xf32>
    %68 = tpu.matmul %63, %65, %cst_26 {dimension_numbers = #tpu.dot_dimension_numbers<[1], [1], [0], [0], [0, 0, 1, 0], [], []>} : vector<40x8xbf16>, vector<40x8xbf16>, vector<40x40xf32> -> vector<40x40xf32>
    %cst_27 = arith.constant 0.353553385 : f32
    %69 = vector.broadcast %cst_27 : f32 to vector<40x40xf32>
    %70 = arith.mulf %68, %69 : vector<40x40xf32>
    %71 = arith.addf %70, %0 : vector<40x40xf32>
    %cst_28 = arith.constant dense<0xFF800000> : vector<40xf32>
    %72 = vector.multi_reduction <maximumf>, %71, %cst_28 [1] : vector<40x40xf32> to vector<40xf32>
    %73 = vector.shape_cast %72 : vector<40xf32> to vector<40x1xf32>
    %74 = vector.broadcast %73 : vector<40x1xf32> to vector<40x40xf32>
    %75 = arith.subf %71, %74 : vector<40x40xf32>
    %76 = math.exp %75 : vector<40x40xf32>
    %cst_29 = arith.constant dense<0.000000e+00> : vector<40xf32>
    %77 = vector.multi_reduction <add>, %76, %cst_29 [1] : vector<40x40xf32> to vector<40xf32>
    %78 = vector.shape_cast %77 : vector<40xf32> to vector<40x1xf32>
    %79 = tpu.reciprocal %78 {approx = true} : vector<40x1xf32> -> vector<40x1xf32>
    %80 = vector.broadcast %79 : vector<40x1xf32> to vector<40x40xf32>
    %81 = arith.mulf %76, %80 : vector<40x40xf32>
    %82 = arith.truncf %81 : vector<40x40xf32> to vector<40x40xbf16>
    %cst_30 = arith.constant dense<0.000000e+00> : vector<40x8xf32>
    %83 = tpu.matmul %82, %67, %cst_30 {dimension_numbers = #tpu.dot_dimension_numbers<[1], [0], [0], [1], [0, 0, 1, 1], [], []>} : vector<40x40xbf16>, vector<40x8xbf16>, vector<40x8xf32> -> vector<40x8xf32>
    %84 = vector.extract_strided_slice %17 {offsets = [0, 24], sizes = [40, 8], strides = [1, 1]} : vector<40x96xf32> to vector<40x8xf32>
    %85 = arith.truncf %84 : vector<40x8xf32> to vector<40x8xbf16>
    %86 = vector.extract_strided_slice %17 {offsets = [0, 56], sizes = [40, 8], strides = [1, 1]} : vector<40x96xf32> to vector<40x8xf32>
    %87 = arith.truncf %86 : vector<40x8xf32> to vector<40x8xbf16>
    %88 = vector.extract_strided_slice %17 {offsets = [0, 88], sizes = [40, 8], strides = [1, 1]} : vector<40x96xf32> to vector<40x8xf32>
    %89 = arith.truncf %88 : vector<40x8xf32> to vector<40x8xbf16>
    %cst_31 = arith.constant dense<0.000000e+00> : vector<40x40xf32>
    %90 = tpu.matmul %85, %87, %cst_31 {dimension_numbers = #tpu.dot_dimension_numbers<[1], [1], [0], [0], [0, 0, 1, 0], [], []>} : vector<40x8xbf16>, vector<40x8xbf16>, vector<40x40xf32> -> vector<40x40xf32>
    %cst_32 = arith.constant 0.353553385 : f32
    %91 = vector.broadcast %cst_32 : f32 to vector<40x40xf32>
    %92 = arith.mulf %90, %91 : vector<40x40xf32>
    %93 = arith.addf %92, %0 : vector<40x40xf32>
    %cst_33 = arith.constant dense<0xFF800000> : vector<40xf32>
    %94 = vector.multi_reduction <maximumf>, %93, %cst_33 [1] : vector<40x40xf32> to vector<40xf32>
    %95 = vector.shape_cast %94 : vector<40xf32> to vector<40x1xf32>
    %96 = vector.broadcast %95 : vector<40x1xf32> to vector<40x40xf32>
    %97 = arith.subf %93, %96 : vector<40x40xf32>
    %98 = math.exp %97 : vector<40x40xf32>
    %cst_34 = arith.constant dense<0.000000e+00> : vector<40xf32>
    %99 = vector.multi_reduction <add>, %98, %cst_34 [1] : vector<40x40xf32> to vector<40xf32>
    %100 = vector.shape_cast %99 : vector<40xf32> to vector<40x1xf32>
    %101 = tpu.reciprocal %100 {approx = true} : vector<40x1xf32> -> vector<40x1xf32>
    %102 = vector.broadcast %101 : vector<40x1xf32> to vector<40x40xf32>
    %103 = arith.mulf %98, %102 : vector<40x40xf32>
    %104 = arith.truncf %103 : vector<40x40xf32> to vector<40x40xbf16>
    %cst_35 = arith.constant dense<0.000000e+00> : vector<40x8xf32>
    %105 = tpu.matmul %104, %89, %cst_35 {dimension_numbers = #tpu.dot_dimension_numbers<[1], [0], [0], [1], [0, 0, 1, 1], [], []>} : vector<40x40xbf16>, vector<40x8xbf16>, vector<40x8xf32> -> vector<40x8xf32>
    %106 = tpu.concatenate %39, %61, %83, %105 in 1 : vector<40x8xf32>, vector<40x8xf32>, vector<40x8xf32>, vector<40x8xf32> -> vector<40x32xf32>
    %107 = arith.truncf %106 : vector<40x32xf32> to vector<40x32xbf16>
    %c0_36 = arith.constant 0 : index
    %c0_37 = arith.constant 0 : index
    %c0_38 = arith.constant 0 : index
    %108 = vector.load %arg8[%c0_36, %c0_37, %c0_38] : memref<2x32x32xbf16, #tpu.memory_space<vmem>>, vector<1x32x32xbf16>
    %109 = vector.shape_cast %108 : vector<1x32x32xbf16> to vector<32x32xbf16>
    %cst_39 = arith.constant dense<0.000000e+00> : vector<40x32xf32>
    %110 = tpu.matmul %107, %109, %cst_39 {dimension_numbers = #tpu.dot_dimension_numbers<[1], [0], [0], [1], [0, 0, 1, 1], [], []>} : vector<40x32xbf16>, vector<32x32xbf16>, vector<40x32xf32> -> vector<40x32xf32>
    %c0_40 = arith.constant 0 : index
    %c0_41 = arith.constant 0 : index
    %c0_42 = arith.constant 0 : index
    %111 = vector.load %arg9[%c0_40, %c0_41, %c0_42] : memref<2x1x32xf32, #tpu.memory_space<vmem>>, vector<1x1x32xf32>
    %112 = vector.shape_cast %111 : vector<1x1x32xf32> to vector<1x32xf32>
    %113 = vector.broadcast %112 : vector<1x32xf32> to vector<40x32xf32>
    %114 = arith.addf %110, %113 : vector<40x32xf32>
    %115 = arith.addf %9, %114 : vector<40x32xf32>
    %cst_43 = arith.constant dense<0.000000e+00> : vector<40xf32>
    %116 = vector.multi_reduction <add>, %115, %cst_43 [1] : vector<40x32xf32> to vector<40xf32>
    %117 = vector.shape_cast %116 : vector<40xf32> to vector<40x1xf32>
    %cst_44 = arith.constant 3.200000e+01 : f32
    %118 = vector.broadcast %cst_44 : f32 to vector<40x1xf32>
    %119 = arith.divf %117, %118 : vector<40x1xf32>
    %120 = vector.broadcast %119 : vector<40x1xf32> to vector<40x32xf32>
    %121 = arith.subf %115, %120 : vector<40x32xf32>
    %122 = arith.mulf %121, %121 : vector<40x32xf32>
    %cst_45 = arith.constant dense<0.000000e+00> : vector<40xf32>
    %123 = vector.multi_reduction <add>, %122, %cst_45 [1] : vector<40x32xf32> to vector<40xf32>
    %124 = vector.shape_cast %123 : vector<40xf32> to vector<40x1xf32>
    %cst_46 = arith.constant 3.200000e+01 : f32
    %125 = vector.broadcast %cst_46 : f32 to vector<40x1xf32>
    %126 = arith.divf %124, %125 : vector<40x1xf32>
    %127 = vector.broadcast %119 : vector<40x1xf32> to vector<40x32xf32>
    %128 = arith.subf %115, %127 : vector<40x32xf32>
    %cst_47 = arith.constant 9.99999974E-6 : f32
    %129 = vector.broadcast %cst_47 : f32 to vector<40x1xf32>
    %130 = arith.addf %126, %129 : vector<40x1xf32>
    %131 = math.rsqrt %130 : vector<40x1xf32>
    %132 = vector.broadcast %131 : vector<40x1xf32> to vector<40x32xf32>
    %133 = arith.mulf %128, %132 : vector<40x32xf32>
    %c0_48 = arith.constant 0 : index
    %c0_49 = arith.constant 0 : index
    %c0_50 = arith.constant 0 : index
    %134 = vector.load %arg10[%c0_48, %c0_49, %c0_50] : memref<2x1x32xf32, #tpu.memory_space<vmem>>, vector<1x1x32xf32>
    %135 = vector.shape_cast %134 : vector<1x1x32xf32> to vector<1x32xf32>
    %136 = vector.broadcast %135 : vector<1x32xf32> to vector<40x32xf32>
    %137 = arith.mulf %133, %136 : vector<40x32xf32>
    %c0_51 = arith.constant 0 : index
    %c0_52 = arith.constant 0 : index
    %c0_53 = arith.constant 0 : index
    %138 = vector.load %arg11[%c0_51, %c0_52, %c0_53] : memref<2x1x32xf32, #tpu.memory_space<vmem>>, vector<1x1x32xf32>
    %139 = vector.shape_cast %138 : vector<1x1x32xf32> to vector<1x32xf32>
    %140 = vector.broadcast %139 : vector<1x32xf32> to vector<40x32xf32>
    %141 = arith.addf %137, %140 : vector<40x32xf32>
    %142 = arith.truncf %141 : vector<40x32xf32> to vector<40x32xbf16>
    %c0_54 = arith.constant 0 : index
    %c0_55 = arith.constant 0 : index
    %c0_56 = arith.constant 0 : index
    %143 = vector.load %arg12[%c0_54, %c0_55, %c0_56] : memref<2x32x128xbf16, #tpu.memory_space<vmem>>, vector<1x32x128xbf16>
    %144 = vector.shape_cast %143 : vector<1x32x128xbf16> to vector<32x128xbf16>
    %cst_57 = arith.constant dense<0.000000e+00> : vector<40x128xf32>
    %145 = tpu.matmul %142, %144, %cst_57 {dimension_numbers = #tpu.dot_dimension_numbers<[1], [0], [0], [1], [0, 0, 1, 1], [], []>} : vector<40x32xbf16>, vector<32x128xbf16>, vector<40x128xf32> -> vector<40x128xf32>
    %c0_58 = arith.constant 0 : index
    %c0_59 = arith.constant 0 : index
    %c0_60 = arith.constant 0 : index
    %146 = vector.load %arg13[%c0_58, %c0_59, %c0_60] : memref<2x1x128xf32, #tpu.memory_space<vmem>>, vector<1x1x128xf32>
    %147 = vector.shape_cast %146 : vector<1x1x128xf32> to vector<1x128xf32>
    %148 = vector.broadcast %147 : vector<1x128xf32> to vector<40x128xf32>
    %149 = arith.addf %145, %148 : vector<40x128xf32>
    %cst_61 = arith.constant 0.000000e+00 : f32
    %150 = vector.broadcast %cst_61 : f32 to vector<40x128xf32>
    %151 = arith.maximumf %149, %150 : vector<40x128xf32>
    %152 = arith.truncf %151 : vector<40x128xf32> to vector<40x128xbf16>
    %c0_62 = arith.constant 0 : index
    %c0_63 = arith.constant 0 : index
    %c0_64 = arith.constant 0 : index
    %153 = vector.load %arg14[%c0_62, %c0_63, %c0_64] : memref<2x128x32xbf16, #tpu.memory_space<vmem>>, vector<1x128x32xbf16>
    %154 = vector.shape_cast %153 : vector<1x128x32xbf16> to vector<128x32xbf16>
    %cst_65 = arith.constant dense<0.000000e+00> : vector<40x32xf32>
    %155 = tpu.matmul %152, %154, %cst_65 {dimension_numbers = #tpu.dot_dimension_numbers<[1], [0], [0], [1], [0, 0, 1, 1], [], []>} : vector<40x128xbf16>, vector<128x32xbf16>, vector<40x32xf32> -> vector<40x32xf32>
    %c0_66 = arith.constant 0 : index
    %c0_67 = arith.constant 0 : index
    %c0_68 = arith.constant 0 : index
    %156 = vector.load %arg15[%c0_66, %c0_67, %c0_68] : memref<2x1x32xf32, #tpu.memory_space<vmem>>, vector<1x1x32xf32>
    %157 = vector.shape_cast %156 : vector<1x1x32xf32> to vector<1x32xf32>
    %158 = vector.broadcast %157 : vector<1x32xf32> to vector<40x32xf32>
    %159 = arith.addf %155, %158 : vector<40x32xf32>
    %160 = arith.addf %141, %159 : vector<40x32xf32>
    %cst_69 = arith.constant dense<0.000000e+00> : vector<40xf32>
    %161 = vector.multi_reduction <add>, %160, %cst_69 [1] : vector<40x32xf32> to vector<40xf32>
    %162 = vector.shape_cast %161 : vector<40xf32> to vector<40x1xf32>
    %cst_70 = arith.constant 3.200000e+01 : f32
    %163 = vector.broadcast %cst_70 : f32 to vector<40x1xf32>
    %164 = arith.divf %162, %163 : vector<40x1xf32>
    %165 = vector.broadcast %164 : vector<40x1xf32> to vector<40x32xf32>
    %166 = arith.subf %160, %165 : vector<40x32xf32>
    %167 = arith.mulf %166, %166 : vector<40x32xf32>
    %cst_71 = arith.constant dense<0.000000e+00> : vector<40xf32>
    %168 = vector.multi_reduction <add>, %167, %cst_71 [1] : vector<40x32xf32> to vector<40xf32>
    %169 = vector.shape_cast %168 : vector<40xf32> to vector<40x1xf32>
    %cst_72 = arith.constant 3.200000e+01 : f32
    %170 = vector.broadcast %cst_72 : f32 to vector<40x1xf32>
    %171 = arith.divf %169, %170 : vector<40x1xf32>
    %172 = vector.broadcast %164 : vector<40x1xf32> to vector<40x32xf32>
    %173 = arith.subf %160, %172 : vector<40x32xf32>
    %cst_73 = arith.constant 9.99999974E-6 : f32
    %174 = vector.broadcast %cst_73 : f32 to vector<40x1xf32>
    %175 = arith.addf %171, %174 : vector<40x1xf32>
    %176 = math.rsqrt %175 : vector<40x1xf32>
    %177 = vector.broadcast %176 : vector<40x1xf32> to vector<40x32xf32>
    %178 = arith.mulf %173, %177 : vector<40x32xf32>
    %c0_74 = arith.constant 0 : index
    %c0_75 = arith.constant 0 : index
    %c0_76 = arith.constant 0 : index
    %179 = vector.load %arg16[%c0_74, %c0_75, %c0_76] : memref<2x1x32xf32, #tpu.memory_space<vmem>>, vector<1x1x32xf32>
    %180 = vector.shape_cast %179 : vector<1x1x32xf32> to vector<1x32xf32>
    %181 = vector.broadcast %180 : vector<1x32xf32> to vector<40x32xf32>
    %182 = arith.mulf %178, %181 : vector<40x32xf32>
    %c0_77 = arith.constant 0 : index
    %c0_78 = arith.constant 0 : index
    %c0_79 = arith.constant 0 : index
    %183 = vector.load %arg17[%c0_77, %c0_78, %c0_79] : memref<2x1x32xf32, #tpu.memory_space<vmem>>, vector<1x1x32xf32>
    %184 = vector.shape_cast %183 : vector<1x1x32xf32> to vector<1x32xf32>
    %185 = vector.broadcast %184 : vector<1x32xf32> to vector<40x32xf32>
    %186 = arith.addf %182, %185 : vector<40x32xf32>
    %187 = arith.truncf %186 : vector<40x32xf32> to vector<40x32xbf16>
    %c1 = arith.constant 1 : index
    %c0_80 = arith.constant 0 : index
    %c0_81 = arith.constant 0 : index
    %188 = vector.load %arg6[%c1, %c0_80, %c0_81] : memref<2x32x96xbf16, #tpu.memory_space<vmem>>, vector<1x32x96xbf16>
    %189 = vector.shape_cast %188 : vector<1x32x96xbf16> to vector<32x96xbf16>
    %cst_82 = arith.constant dense<0.000000e+00> : vector<40x96xf32>
    %190 = tpu.matmul %187, %189, %cst_82 {dimension_numbers = #tpu.dot_dimension_numbers<[1], [0], [0], [1], [0, 0, 1, 1], [], []>} : vector<40x32xbf16>, vector<32x96xbf16>, vector<40x96xf32> -> vector<40x96xf32>
    %c1_83 = arith.constant 1 : index
    %c0_84 = arith.constant 0 : index
    %c0_85 = arith.constant 0 : index
    %191 = vector.load %arg7[%c1_83, %c0_84, %c0_85] : memref<2x1x96xf32, #tpu.memory_space<vmem>>, vector<1x1x96xf32>
    %192 = vector.shape_cast %191 : vector<1x1x96xf32> to vector<1x96xf32>
    %193 = vector.broadcast %192 : vector<1x96xf32> to vector<40x96xf32>
    %194 = arith.addf %190, %193 : vector<40x96xf32>
    %195 = vector.extract_strided_slice %194 {offsets = [0, 0], sizes = [40, 8], strides = [1, 1]} : vector<40x96xf32> to vector<40x8xf32>
    %196 = arith.truncf %195 : vector<40x8xf32> to vector<40x8xbf16>
    %197 = vector.extract_strided_slice %194 {offsets = [0, 32], sizes = [40, 8], strides = [1, 1]} : vector<40x96xf32> to vector<40x8xf32>
    %198 = arith.truncf %197 : vector<40x8xf32> to vector<40x8xbf16>
    %199 = vector.extract_strided_slice %194 {offsets = [0, 64], sizes = [40, 8], strides = [1, 1]} : vector<40x96xf32> to vector<40x8xf32>
    %200 = arith.truncf %199 : vector<40x8xf32> to vector<40x8xbf16>
    %cst_86 = arith.constant dense<0.000000e+00> : vector<40x40xf32>
    %201 = tpu.matmul %196, %198, %cst_86 {dimension_numbers = #tpu.dot_dimension_numbers<[1], [1], [0], [0], [0, 0, 1, 0], [], []>} : vector<40x8xbf16>, vector<40x8xbf16>, vector<40x40xf32> -> vector<40x40xf32>
    %cst_87 = arith.constant 0.353553385 : f32
    %202 = vector.broadcast %cst_87 : f32 to vector<40x40xf32>
    %203 = arith.mulf %201, %202 : vector<40x40xf32>
    %204 = arith.addf %203, %0 : vector<40x40xf32>
    %cst_88 = arith.constant dense<0xFF800000> : vector<40xf32>
    %205 = vector.multi_reduction <maximumf>, %204, %cst_88 [1] : vector<40x40xf32> to vector<40xf32>
    %206 = vector.shape_cast %205 : vector<40xf32> to vector<40x1xf32>
    %207 = vector.broadcast %206 : vector<40x1xf32> to vector<40x40xf32>
    %208 = arith.subf %204, %207 : vector<40x40xf32>
    %209 = math.exp %208 : vector<40x40xf32>
    %cst_89 = arith.constant dense<0.000000e+00> : vector<40xf32>
    %210 = vector.multi_reduction <add>, %209, %cst_89 [1] : vector<40x40xf32> to vector<40xf32>
    %211 = vector.shape_cast %210 : vector<40xf32> to vector<40x1xf32>
    %212 = tpu.reciprocal %211 {approx = true} : vector<40x1xf32> -> vector<40x1xf32>
    %213 = vector.broadcast %212 : vector<40x1xf32> to vector<40x40xf32>
    %214 = arith.mulf %209, %213 : vector<40x40xf32>
    %215 = arith.truncf %214 : vector<40x40xf32> to vector<40x40xbf16>
    %cst_90 = arith.constant dense<0.000000e+00> : vector<40x8xf32>
    %216 = tpu.matmul %215, %200, %cst_90 {dimension_numbers = #tpu.dot_dimension_numbers<[1], [0], [0], [1], [0, 0, 1, 1], [], []>} : vector<40x40xbf16>, vector<40x8xbf16>, vector<40x8xf32> -> vector<40x8xf32>
    %217 = vector.extract_strided_slice %194 {offsets = [0, 8], sizes = [40, 8], strides = [1, 1]} : vector<40x96xf32> to vector<40x8xf32>
    %218 = arith.truncf %217 : vector<40x8xf32> to vector<40x8xbf16>
    %219 = vector.extract_strided_slice %194 {offsets = [0, 40], sizes = [40, 8], strides = [1, 1]} : vector<40x96xf32> to vector<40x8xf32>
    %220 = arith.truncf %219 : vector<40x8xf32> to vector<40x8xbf16>
    %221 = vector.extract_strided_slice %194 {offsets = [0, 72], sizes = [40, 8], strides = [1, 1]} : vector<40x96xf32> to vector<40x8xf32>
    %222 = arith.truncf %221 : vector<40x8xf32> to vector<40x8xbf16>
    %cst_91 = arith.constant dense<0.000000e+00> : vector<40x40xf32>
    %223 = tpu.matmul %218, %220, %cst_91 {dimension_numbers = #tpu.dot_dimension_numbers<[1], [1], [0], [0], [0, 0, 1, 0], [], []>} : vector<40x8xbf16>, vector<40x8xbf16>, vector<40x40xf32> -> vector<40x40xf32>
    %cst_92 = arith.constant 0.353553385 : f32
    %224 = vector.broadcast %cst_92 : f32 to vector<40x40xf32>
    %225 = arith.mulf %223, %224 : vector<40x40xf32>
    %226 = arith.addf %225, %0 : vector<40x40xf32>
    %cst_93 = arith.constant dense<0xFF800000> : vector<40xf32>
    %227 = vector.multi_reduction <maximumf>, %226, %cst_93 [1] : vector<40x40xf32> to vector<40xf32>
    %228 = vector.shape_cast %227 : vector<40xf32> to vector<40x1xf32>
    %229 = vector.broadcast %228 : vector<40x1xf32> to vector<40x40xf32>
    %230 = arith.subf %226, %229 : vector<40x40xf32>
    %231 = math.exp %230 : vector<40x40xf32>
    %cst_94 = arith.constant dense<0.000000e+00> : vector<40xf32>
    %232 = vector.multi_reduction <add>, %231, %cst_94 [1] : vector<40x40xf32> to vector<40xf32>
    %233 = vector.shape_cast %232 : vector<40xf32> to vector<40x1xf32>
    %234 = tpu.reciprocal %233 {approx = true} : vector<40x1xf32> -> vector<40x1xf32>
    %235 = vector.broadcast %234 : vector<40x1xf32> to vector<40x40xf32>
    %236 = arith.mulf %231, %235 : vector<40x40xf32>
    %237 = arith.truncf %236 : vector<40x40xf32> to vector<40x40xbf16>
    %cst_95 = arith.constant dense<0.000000e+00> : vector<40x8xf32>
    %238 = tpu.matmul %237, %222, %cst_95 {dimension_numbers = #tpu.dot_dimension_numbers<[1], [0], [0], [1], [0, 0, 1, 1], [], []>} : vector<40x40xbf16>, vector<40x8xbf16>, vector<40x8xf32> -> vector<40x8xf32>
    %239 = vector.extract_strided_slice %194 {offsets = [0, 16], sizes = [40, 8], strides = [1, 1]} : vector<40x96xf32> to vector<40x8xf32>
    %240 = arith.truncf %239 : vector<40x8xf32> to vector<40x8xbf16>
    %241 = vector.extract_strided_slice %194 {offsets = [0, 48], sizes = [40, 8], strides = [1, 1]} : vector<40x96xf32> to vector<40x8xf32>
    %242 = arith.truncf %241 : vector<40x8xf32> to vector<40x8xbf16>
    %243 = vector.extract_strided_slice %194 {offsets = [0, 80], sizes = [40, 8], strides = [1, 1]} : vector<40x96xf32> to vector<40x8xf32>
    %244 = arith.truncf %243 : vector<40x8xf32> to vector<40x8xbf16>
    %cst_96 = arith.constant dense<0.000000e+00> : vector<40x40xf32>
    %245 = tpu.matmul %240, %242, %cst_96 {dimension_numbers = #tpu.dot_dimension_numbers<[1], [1], [0], [0], [0, 0, 1, 0], [], []>} : vector<40x8xbf16>, vector<40x8xbf16>, vector<40x40xf32> -> vector<40x40xf32>
    %cst_97 = arith.constant 0.353553385 : f32
    %246 = vector.broadcast %cst_97 : f32 to vector<40x40xf32>
    %247 = arith.mulf %245, %246 : vector<40x40xf32>
    %248 = arith.addf %247, %0 : vector<40x40xf32>
    %cst_98 = arith.constant dense<0xFF800000> : vector<40xf32>
    %249 = vector.multi_reduction <maximumf>, %248, %cst_98 [1] : vector<40x40xf32> to vector<40xf32>
    %250 = vector.shape_cast %249 : vector<40xf32> to vector<40x1xf32>
    %251 = vector.broadcast %250 : vector<40x1xf32> to vector<40x40xf32>
    %252 = arith.subf %248, %251 : vector<40x40xf32>
    %253 = math.exp %252 : vector<40x40xf32>
    %cst_99 = arith.constant dense<0.000000e+00> : vector<40xf32>
    %254 = vector.multi_reduction <add>, %253, %cst_99 [1] : vector<40x40xf32> to vector<40xf32>
    %255 = vector.shape_cast %254 : vector<40xf32> to vector<40x1xf32>
    %256 = tpu.reciprocal %255 {approx = true} : vector<40x1xf32> -> vector<40x1xf32>
    %257 = vector.broadcast %256 : vector<40x1xf32> to vector<40x40xf32>
    %258 = arith.mulf %253, %257 : vector<40x40xf32>
    %259 = arith.truncf %258 : vector<40x40xf32> to vector<40x40xbf16>
    %cst_100 = arith.constant dense<0.000000e+00> : vector<40x8xf32>
    %260 = tpu.matmul %259, %244, %cst_100 {dimension_numbers = #tpu.dot_dimension_numbers<[1], [0], [0], [1], [0, 0, 1, 1], [], []>} : vector<40x40xbf16>, vector<40x8xbf16>, vector<40x8xf32> -> vector<40x8xf32>
    %261 = vector.extract_strided_slice %194 {offsets = [0, 24], sizes = [40, 8], strides = [1, 1]} : vector<40x96xf32> to vector<40x8xf32>
    %262 = arith.truncf %261 : vector<40x8xf32> to vector<40x8xbf16>
    %263 = vector.extract_strided_slice %194 {offsets = [0, 56], sizes = [40, 8], strides = [1, 1]} : vector<40x96xf32> to vector<40x8xf32>
    %264 = arith.truncf %263 : vector<40x8xf32> to vector<40x8xbf16>
    %265 = vector.extract_strided_slice %194 {offsets = [0, 88], sizes = [40, 8], strides = [1, 1]} : vector<40x96xf32> to vector<40x8xf32>
    %266 = arith.truncf %265 : vector<40x8xf32> to vector<40x8xbf16>
    %cst_101 = arith.constant dense<0.000000e+00> : vector<40x40xf32>
    %267 = tpu.matmul %262, %264, %cst_101 {dimension_numbers = #tpu.dot_dimension_numbers<[1], [1], [0], [0], [0, 0, 1, 0], [], []>} : vector<40x8xbf16>, vector<40x8xbf16>, vector<40x40xf32> -> vector<40x40xf32>
    %cst_102 = arith.constant 0.353553385 : f32
    %268 = vector.broadcast %cst_102 : f32 to vector<40x40xf32>
    %269 = arith.mulf %267, %268 : vector<40x40xf32>
    %270 = arith.addf %269, %0 : vector<40x40xf32>
    %cst_103 = arith.constant dense<0xFF800000> : vector<40xf32>
    %271 = vector.multi_reduction <maximumf>, %270, %cst_103 [1] : vector<40x40xf32> to vector<40xf32>
    %272 = vector.shape_cast %271 : vector<40xf32> to vector<40x1xf32>
    %273 = vector.broadcast %272 : vector<40x1xf32> to vector<40x40xf32>
    %274 = arith.subf %270, %273 : vector<40x40xf32>
    %275 = math.exp %274 : vector<40x40xf32>
    %cst_104 = arith.constant dense<0.000000e+00> : vector<40xf32>
    %276 = vector.multi_reduction <add>, %275, %cst_104 [1] : vector<40x40xf32> to vector<40xf32>
    %277 = vector.shape_cast %276 : vector<40xf32> to vector<40x1xf32>
    %278 = tpu.reciprocal %277 {approx = true} : vector<40x1xf32> -> vector<40x1xf32>
    %279 = vector.broadcast %278 : vector<40x1xf32> to vector<40x40xf32>
    %280 = arith.mulf %275, %279 : vector<40x40xf32>
    %281 = arith.truncf %280 : vector<40x40xf32> to vector<40x40xbf16>
    %cst_105 = arith.constant dense<0.000000e+00> : vector<40x8xf32>
    %282 = tpu.matmul %281, %266, %cst_105 {dimension_numbers = #tpu.dot_dimension_numbers<[1], [0], [0], [1], [0, 0, 1, 1], [], []>} : vector<40x40xbf16>, vector<40x8xbf16>, vector<40x8xf32> -> vector<40x8xf32>
    %283 = tpu.concatenate %216, %238, %260, %282 in 1 : vector<40x8xf32>, vector<40x8xf32>, vector<40x8xf32>, vector<40x8xf32> -> vector<40x32xf32>
    %284 = arith.truncf %283 : vector<40x32xf32> to vector<40x32xbf16>
    %c1_106 = arith.constant 1 : index
    %c0_107 = arith.constant 0 : index
    %c0_108 = arith.constant 0 : index
    %285 = vector.load %arg8[%c1_106, %c0_107, %c0_108] : memref<2x32x32xbf16, #tpu.memory_space<vmem>>, vector<1x32x32xbf16>
    %286 = vector.shape_cast %285 : vector<1x32x32xbf16> to vector<32x32xbf16>
    %cst_109 = arith.constant dense<0.000000e+00> : vector<40x32xf32>
    %287 = tpu.matmul %284, %286, %cst_109 {dimension_numbers = #tpu.dot_dimension_numbers<[1], [0], [0], [1], [0, 0, 1, 1], [], []>} : vector<40x32xbf16>, vector<32x32xbf16>, vector<40x32xf32> -> vector<40x32xf32>
    %c1_110 = arith.constant 1 : index
    %c0_111 = arith.constant 0 : index
    %c0_112 = arith.constant 0 : index
    %288 = vector.load %arg9[%c1_110, %c0_111, %c0_112] : memref<2x1x32xf32, #tpu.memory_space<vmem>>, vector<1x1x32xf32>
    %289 = vector.shape_cast %288 : vector<1x1x32xf32> to vector<1x32xf32>
    %290 = vector.broadcast %289 : vector<1x32xf32> to vector<40x32xf32>
    %291 = arith.addf %287, %290 : vector<40x32xf32>
    %292 = arith.addf %186, %291 : vector<40x32xf32>
    %cst_113 = arith.constant dense<0.000000e+00> : vector<40xf32>
    %293 = vector.multi_reduction <add>, %292, %cst_113 [1] : vector<40x32xf32> to vector<40xf32>
    %294 = vector.shape_cast %293 : vector<40xf32> to vector<40x1xf32>
    %cst_114 = arith.constant 3.200000e+01 : f32
    %295 = vector.broadcast %cst_114 : f32 to vector<40x1xf32>
    %296 = arith.divf %294, %295 : vector<40x1xf32>
    %297 = vector.broadcast %296 : vector<40x1xf32> to vector<40x32xf32>
    %298 = arith.subf %292, %297 : vector<40x32xf32>
    %299 = arith.mulf %298, %298 : vector<40x32xf32>
    %cst_115 = arith.constant dense<0.000000e+00> : vector<40xf32>
    %300 = vector.multi_reduction <add>, %299, %cst_115 [1] : vector<40x32xf32> to vector<40xf32>
    %301 = vector.shape_cast %300 : vector<40xf32> to vector<40x1xf32>
    %cst_116 = arith.constant 3.200000e+01 : f32
    %302 = vector.broadcast %cst_116 : f32 to vector<40x1xf32>
    %303 = arith.divf %301, %302 : vector<40x1xf32>
    %304 = vector.broadcast %296 : vector<40x1xf32> to vector<40x32xf32>
    %305 = arith.subf %292, %304 : vector<40x32xf32>
    %cst_117 = arith.constant 9.99999974E-6 : f32
    %306 = vector.broadcast %cst_117 : f32 to vector<40x1xf32>
    %307 = arith.addf %303, %306 : vector<40x1xf32>
    %308 = math.rsqrt %307 : vector<40x1xf32>
    %309 = vector.broadcast %308 : vector<40x1xf32> to vector<40x32xf32>
    %310 = arith.mulf %305, %309 : vector<40x32xf32>
    %c1_118 = arith.constant 1 : index
    %c0_119 = arith.constant 0 : index
    %c0_120 = arith.constant 0 : index
    %311 = vector.load %arg10[%c1_118, %c0_119, %c0_120] : memref<2x1x32xf32, #tpu.memory_space<vmem>>, vector<1x1x32xf32>
    %312 = vector.shape_cast %311 : vector<1x1x32xf32> to vector<1x32xf32>
    %313 = vector.broadcast %312 : vector<1x32xf32> to vector<40x32xf32>
    %314 = arith.mulf %310, %313 : vector<40x32xf32>
    %c1_121 = arith.constant 1 : index
    %c0_122 = arith.constant 0 : index
    %c0_123 = arith.constant 0 : index
    %315 = vector.load %arg11[%c1_121, %c0_122, %c0_123] : memref<2x1x32xf32, #tpu.memory_space<vmem>>, vector<1x1x32xf32>
    %316 = vector.shape_cast %315 : vector<1x1x32xf32> to vector<1x32xf32>
    %317 = vector.broadcast %316 : vector<1x32xf32> to vector<40x32xf32>
    %318 = arith.addf %314, %317 : vector<40x32xf32>
    %319 = arith.truncf %318 : vector<40x32xf32> to vector<40x32xbf16>
    %c1_124 = arith.constant 1 : index
    %c0_125 = arith.constant 0 : index
    %c0_126 = arith.constant 0 : index
    %320 = vector.load %arg12[%c1_124, %c0_125, %c0_126] : memref<2x32x128xbf16, #tpu.memory_space<vmem>>, vector<1x32x128xbf16>
    %321 = vector.shape_cast %320 : vector<1x32x128xbf16> to vector<32x128xbf16>
    %cst_127 = arith.constant dense<0.000000e+00> : vector<40x128xf32>
    %322 = tpu.matmul %319, %321, %cst_127 {dimension_numbers = #tpu.dot_dimension_numbers<[1], [0], [0], [1], [0, 0, 1, 1], [], []>} : vector<40x32xbf16>, vector<32x128xbf16>, vector<40x128xf32> -> vector<40x128xf32>
    %c1_128 = arith.constant 1 : index
    %c0_129 = arith.constant 0 : index
    %c0_130 = arith.constant 0 : index
    %323 = vector.load %arg13[%c1_128, %c0_129, %c0_130] : memref<2x1x128xf32, #tpu.memory_space<vmem>>, vector<1x1x128xf32>
    %324 = vector.shape_cast %323 : vector<1x1x128xf32> to vector<1x128xf32>
    %325 = vector.broadcast %324 : vector<1x128xf32> to vector<40x128xf32>
    %326 = arith.addf %322, %325 : vector<40x128xf32>
    %cst_131 = arith.constant 0.000000e+00 : f32
    %327 = vector.broadcast %cst_131 : f32 to vector<40x128xf32>
    %328 = arith.maximumf %326, %327 : vector<40x128xf32>
    %329 = arith.truncf %328 : vector<40x128xf32> to vector<40x128xbf16>
    %c1_132 = arith.constant 1 : index
    %c0_133 = arith.constant 0 : index
    %c0_134 = arith.constant 0 : index
    %330 = vector.load %arg14[%c1_132, %c0_133, %c0_134] : memref<2x128x32xbf16, #tpu.memory_space<vmem>>, vector<1x128x32xbf16>
    %331 = vector.shape_cast %330 : vector<1x128x32xbf16> to vector<128x32xbf16>
    %cst_135 = arith.constant dense<0.000000e+00> : vector<40x32xf32>
    %332 = tpu.matmul %329, %331, %cst_135 {dimension_numbers = #tpu.dot_dimension_numbers<[1], [0], [0], [1], [0, 0, 1, 1], [], []>} : vector<40x128xbf16>, vector<128x32xbf16>, vector<40x32xf32> -> vector<40x32xf32>
    %c1_136 = arith.constant 1 : index
    %c0_137 = arith.constant 0 : index
    %c0_138 = arith.constant 0 : index
    %333 = vector.load %arg15[%c1_136, %c0_137, %c0_138] : memref<2x1x32xf32, #tpu.memory_space<vmem>>, vector<1x1x32xf32>
    %334 = vector.shape_cast %333 : vector<1x1x32xf32> to vector<1x32xf32>
    %335 = vector.broadcast %334 : vector<1x32xf32> to vector<40x32xf32>
    %336 = arith.addf %332, %335 : vector<40x32xf32>
    %337 = arith.addf %318, %336 : vector<40x32xf32>
    %cst_139 = arith.constant dense<0.000000e+00> : vector<40xf32>
    %338 = vector.multi_reduction <add>, %337, %cst_139 [1] : vector<40x32xf32> to vector<40xf32>
    %339 = vector.shape_cast %338 : vector<40xf32> to vector<40x1xf32>
    %cst_140 = arith.constant 3.200000e+01 : f32
    %340 = vector.broadcast %cst_140 : f32 to vector<40x1xf32>
    %341 = arith.divf %339, %340 : vector<40x1xf32>
    %342 = vector.broadcast %341 : vector<40x1xf32> to vector<40x32xf32>
    %343 = arith.subf %337, %342 : vector<40x32xf32>
    %344 = arith.mulf %343, %343 : vector<40x32xf32>
    %cst_141 = arith.constant dense<0.000000e+00> : vector<40xf32>
    %345 = vector.multi_reduction <add>, %344, %cst_141 [1] : vector<40x32xf32> to vector<40xf32>
    %346 = vector.shape_cast %345 : vector<40xf32> to vector<40x1xf32>
    %cst_142 = arith.constant 3.200000e+01 : f32
    %347 = vector.broadcast %cst_142 : f32 to vector<40x1xf32>
    %348 = arith.divf %346, %347 : vector<40x1xf32>
    %349 = vector.broadcast %341 : vector<40x1xf32> to vector<40x32xf32>
    %350 = arith.subf %337, %349 : vector<40x32xf32>
    %cst_143 = arith.constant 9.99999974E-6 : f32
    %351 = vector.broadcast %cst_143 : f32 to vector<40x1xf32>
    %352 = arith.addf %348, %351 : vector<40x1xf32>
    %353 = math.rsqrt %352 : vector<40x1xf32>
    %354 = vector.broadcast %353 : vector<40x1xf32> to vector<40x32xf32>
    %355 = arith.mulf %350, %354 : vector<40x32xf32>
    %c1_144 = arith.constant 1 : index
    %c0_145 = arith.constant 0 : index
    %c0_146 = arith.constant 0 : index
    %356 = vector.load %arg16[%c1_144, %c0_145, %c0_146] : memref<2x1x32xf32, #tpu.memory_space<vmem>>, vector<1x1x32xf32>
    %357 = vector.shape_cast %356 : vector<1x1x32xf32> to vector<1x32xf32>
    %358 = vector.broadcast %357 : vector<1x32xf32> to vector<40x32xf32>
    %359 = arith.mulf %355, %358 : vector<40x32xf32>
    %c1_147 = arith.constant 1 : index
    %c0_148 = arith.constant 0 : index
    %c0_149 = arith.constant 0 : index
    %360 = vector.load %arg17[%c1_147, %c0_148, %c0_149] : memref<2x1x32xf32, #tpu.memory_space<vmem>>, vector<1x1x32xf32>
    %361 = vector.shape_cast %360 : vector<1x1x32xf32> to vector<1x32xf32>
    %362 = vector.broadcast %361 : vector<1x32xf32> to vector<40x32xf32>
    %363 = arith.addf %359, %362 : vector<40x32xf32>
    %364 = arith.truncf %363 : vector<40x32xf32> to vector<40x32xbf16>
    %c0_150 = arith.constant 0 : index
    %c0_151 = arith.constant 0 : index
    %365 = vector.load %arg18[%c0_150, %c0_151] : memref<40x32xbf16, #tpu.memory_space<vmem>>, vector<40x32xbf16>
    tpu.vector_store %arg18[%c0_150, %c0_151], %364 {strides = array<i32>} : memref<40x32xbf16, #tpu.memory_space<vmem>>, vector<40x32xbf16>,
    return
  }
  func.func @transform_0(%arg0: i32) -> (i32, i32) {
    %c0_i32 = arith.constant 0 : i32
    %c0_i32_0 = arith.constant 0 : i32
    return %arg0, %c0_i32 : i32, i32
  }
  func.func @transform_1(%arg0: i32) -> (i32, i32) {
    %c0_i32 = arith.constant 0 : i32
    %c0_i32_0 = arith.constant 0 : i32
    %c0_i32_1 = arith.constant 0 : i32
    return %c0_i32, %c0_i32_0 : i32, i32
  }
  func.func @transform_2(%arg0: i32) -> (i32, i32) {
    %c0_i32 = arith.constant 0 : i32
    %c0_i32_0 = arith.constant 0 : i32
    %c0_i32_1 = arith.constant 0 : i32
    return %c0_i32, %c0_i32_0 : i32, i32
  }
  func.func @transform_3(%arg0: i32) -> (i32, i32) {
    %c0_i32 = arith.constant 0 : i32
    %c0_i32_0 = arith.constant 0 : i32
    %c0_i32_1 = arith.constant 0 : i32
    return %c0_i32, %c0_i32_0 : i32, i32
  }
  func.func @transform_4(%arg0: i32) -> (i32, i32) {
    %c0_i32 = arith.constant 0 : i32
    %c0_i32_0 = arith.constant 0 : i32
    %c0_i32_1 = arith.constant 0 : i32
    return %c0_i32, %c0_i32_0 : i32, i32
  }
  func.func @transform_5(%arg0: i32) -> (i32, i32, i32) {
    %c0_i32 = arith.constant 0 : i32
    %c0_i32_0 = arith.constant 0 : i32
    %c0_i32_1 = arith.constant 0 : i32
    %c0_i32_2 = arith.constant 0 : i32
    return %c0_i32, %c0_i32_0, %c0_i32_1 : i32, i32, i32
  }
  func.func @transform_6(%arg0: i32) -> (i32, i32, i32) {
    %c0_i32 = arith.constant 0 : i32
    %c0_i32_0 = arith.constant 0 : i32
    %c0_i32_1 = arith.constant 0 : i32
    %c0_i32_2 = arith.constant 0 : i32
    return %c0_i32, %c0_i32_0, %c0_i32_1 : i32, i32, i32
  }
  func.func @transform_7(%arg0: i32) -> (i32, i32, i32) {
    %c0_i32 = arith.constant 0 : i32
    %c0_i32_0 = arith.constant 0 : i32
    %c0_i32_1 = arith.constant 0 : i32
    %c0_i32_2 = arith.constant 0 : i32
    return %c0_i32, %c0_i32_0, %c0_i32_1 : i32, i32, i32
  }
  func.func @transform_8(%arg0: i32) -> (i32, i32, i32) {
    %c0_i32 = arith.constant 0 : i32
    %c0_i32_0 = arith.constant 0 : i32
    %c0_i32_1 = arith.constant 0 : i32
    %c0_i32_2 = arith.constant 0 : i32
    return %c0_i32, %c0_i32_0, %c0_i32_1 : i32, i32, i32
  }
  func.func @transform_9(%arg0: i32) -> (i32, i32, i32) {
    %c0_i32 = arith.constant 0 : i32
    %c0_i32_0 = arith.constant 0 : i32
    %c0_i32_1 = arith.constant 0 : i32
    %c0_i32_2 = arith.constant 0 : i32
    return %c0_i32, %c0_i32_0, %c0_i32_1 : i32, i32, i32
  }
  func.func @transform_10(%arg0: i32) -> (i32, i32, i32) {
    %c0_i32 = arith.constant 0 : i32
    %c0_i32_0 = arith.constant 0 : i32
    %c0_i32_1 = arith.constant 0 : i32
    %c0_i32_2 = arith.constant 0 : i32
    return %c0_i32, %c0_i32_0, %c0_i32_1 : i32, i32, i32
  }
  func.func @transform_11(%arg0: i32) -> (i32, i32, i32) {
    %c0_i32 = arith.constant 0 : i32
    %c0_i32_0 = arith.constant 0 : i32
    %c0_i32_1 = arith.constant 0 : i32
    %c0_i32_2 = arith.constant 0 : i32
    return %c0_i32, %c0_i32_0, %c0_i32_1 : i32, i32, i32
  }
  func.func @transform_12(%arg0: i32) -> (i32, i32, i32) {
    %c0_i32 = arith.constant 0 : i32
    %c0_i32_0 = arith.constant 0 : i32
    %c0_i32_1 = arith.constant 0 : i32
    %c0_i32_2 = arith.constant 0 : i32
    return %c0_i32, %c0_i32_0, %c0_i32_1 : i32, i32, i32
  }
  func.func @transform_13(%arg0: i32) -> (i32, i32, i32) {
    %c0_i32 = arith.constant 0 : i32
    %c0_i32_0 = arith.constant 0 : i32
    %c0_i32_1 = arith.constant 0 : i32
    %c0_i32_2 = arith.constant 0 : i32
    return %c0_i32, %c0_i32_0, %c0_i32_1 : i32, i32, i32
  }
  func.func @transform_14(%arg0: i32) -> (i32, i32, i32) {
    %c0_i32 = arith.constant 0 : i32
    %c0_i32_0 = arith.constant 0 : i32
    %c0_i32_1 = arith.constant 0 : i32
    %c0_i32_2 = arith.constant 0 : i32
    return %c0_i32, %c0_i32_0, %c0_i32_1 : i32, i32, i32
  }
  func.func @transform_15(%arg0: i32) -> (i32, i32, i32) {
    %c0_i32 = arith.constant 0 : i32
    %c0_i32_0 = arith.constant 0 : i32
    %c0_i32_1 = arith.constant 0 : i32
    %c0_i32_2 = arith.constant 0 : i32
    return %c0_i32, %c0_i32_0, %c0_i32_1 : i32, i32, i32
  }
  func.func @transform_16(%arg0: i32) -> (i32, i32, i32) {
    %c0_i32 = arith.constant 0 : i32
    %c0_i32_0 = arith.constant 0 : i32
    %c0_i32_1 = arith.constant 0 : i32
    %c0_i32_2 = arith.constant 0 : i32
    return %c0_i32, %c0_i32_0, %c0_i32_1 : i32, i32, i32
  }
  func.func @transform_17(%arg0: i32) -> (i32, i32) {
    %c0_i32 = arith.constant 0 : i32
    %c0_i32_0 = arith.constant 0 : i32
    return %arg0, %c0_i32 : i32, i32
  }
}

module attributes {stable_mosaic.version = 11 : i64} {
  func.func @_trend_kernel(%arg0: i32, %arg1: memref<8x16xf32, #tpu.memory_space<vmem>>, %arg2: memref<8x1xf32, #tpu.memory_space<vmem>>, %arg3: memref<8x1xf32, #tpu.memory_space<vmem>>, %arg4: memref<16x32xbf16, #tpu.memory_space<vmem>>, %arg5: memref<1x32xf32, #tpu.memory_space<vmem>>, %arg6: memref<32x16xbf16, #tpu.memory_space<vmem>>, %arg7: memref<1x16xf32, #tpu.memory_space<vmem>>, %arg8: memref<16x8xbf16, #tpu.memory_space<vmem>>, %arg9: memref<1x8xf32, #tpu.memory_space<vmem>>, %arg10: memref<8x8xf32, #tpu.memory_space<vmem>>) attributes {dimension_semantics = [#tpu.dimension_semantics<parallel>], iteration_bounds = array<i64: 1>, scalar_prefetch = 0 : i64, scratch_operands = 0 : i64, tpu.core_type = #tpu.core_type<tc>, window_params = [{transform_indices = @transform_0, window_bounds = array<i64: 8, 16>}, {transform_indices = @transform_1, window_bounds = array<i64: 8, 1>}, {transform_indices = @transform_2, window_bounds = array<i64: 8, 1>}, {pipeline_mode = #tpu.pipeline_mode<synchronous>, transform_indices = @transform_3, window_bounds = array<i64: 16, 32>}, {pipeline_mode = #tpu.pipeline_mode<synchronous>, transform_indices = @transform_4, window_bounds = array<i64: 1, 32>}, {pipeline_mode = #tpu.pipeline_mode<synchronous>, transform_indices = @transform_5, window_bounds = array<i64: 32, 16>}, {pipeline_mode = #tpu.pipeline_mode<synchronous>, transform_indices = @transform_6, window_bounds = array<i64: 1, 16>}, {pipeline_mode = #tpu.pipeline_mode<synchronous>, transform_indices = @transform_7, window_bounds = array<i64: 16, 8>}, {pipeline_mode = #tpu.pipeline_mode<synchronous>, transform_indices = @transform_8, window_bounds = array<i64: 1, 8>}, {transform_indices = @transform_9, window_bounds = array<i64: 8, 8>}]} {
    %c0 = arith.constant 0 : index
    %c0_0 = arith.constant 0 : index
    %0 = vector.load %arg1[%c0, %c0_0] : memref<8x16xf32, #tpu.memory_space<vmem>>, vector<8x16xf32>
    %c0_1 = arith.constant 0 : index
    %c0_2 = arith.constant 0 : index
    %1 = vector.load %arg2[%c0_1, %c0_2] : memref<8x1xf32, #tpu.memory_space<vmem>>, vector<8x1xf32>
    %c0_3 = arith.constant 0 : index
    %c0_4 = arith.constant 0 : index
    %2 = vector.load %arg3[%c0_3, %c0_4] : memref<8x1xf32, #tpu.memory_space<vmem>>, vector<8x1xf32>
    %cst = arith.constant dense<0.000000e+00> : vector<8xf32>
    %3 = vector.multi_reduction <add>, %0, %cst [1] : vector<8x16xf32> to vector<8xf32>
    %4 = vector.shape_cast %3 : vector<8xf32> to vector<8x1xf32>
    %cst_5 = arith.constant 1.600000e+01 : f32
    %5 = vector.broadcast %cst_5 : f32 to vector<8x1xf32>
    %6 = arith.divf %4, %5 : vector<8x1xf32>
    %7 = vector.broadcast %6 : vector<8x1xf32> to vector<8x16xf32>
    %8 = arith.subf %0, %7 : vector<8x16xf32>
    %9 = arith.mulf %8, %8 : vector<8x16xf32>
    %cst_6 = arith.constant dense<0.000000e+00> : vector<8xf32>
    %10 = vector.multi_reduction <add>, %9, %cst_6 [1] : vector<8x16xf32> to vector<8xf32>
    %11 = vector.shape_cast %10 : vector<8xf32> to vector<8x1xf32>
    %cst_7 = arith.constant 1.600000e+01 : f32
    %12 = vector.broadcast %cst_7 : f32 to vector<8x1xf32>
    %13 = arith.divf %11, %12 : vector<8x1xf32>
    %cst_8 = arith.constant 9.99999974E-6 : f32
    %14 = vector.broadcast %cst_8 : f32 to vector<8x1xf32>
    %15 = arith.addf %13, %14 : vector<8x1xf32>
    %16 = math.sqrt %15 : vector<8x1xf32>
    %cst_9 = arith.constant 9.99999974E-6 : f32
    %17 = vector.broadcast %cst_9 : f32 to vector<8x1xf32>
    %18 = arith.addf %13, %17 : vector<8x1xf32>
    %19 = math.rsqrt %18 : vector<8x1xf32>
    %20 = vector.broadcast %6 : vector<8x1xf32> to vector<8x16xf32>
    %21 = arith.subf %0, %20 : vector<8x16xf32>
    %22 = vector.broadcast %19 : vector<8x1xf32> to vector<8x16xf32>
    %23 = arith.mulf %21, %22 : vector<8x16xf32>
    %24 = vector.broadcast %1 : vector<8x1xf32> to vector<8x16xf32>
    %25 = arith.mulf %23, %24 : vector<8x16xf32>
    %26 = vector.broadcast %2 : vector<8x1xf32> to vector<8x16xf32>
    %27 = arith.addf %25, %26 : vector<8x16xf32>
    %28 = arith.truncf %27 : vector<8x16xf32> to vector<8x16xbf16>
    %c0_10 = arith.constant 0 : index
    %c0_11 = arith.constant 0 : index
    %29 = vector.load %arg4[%c0_10, %c0_11] : memref<16x32xbf16, #tpu.memory_space<vmem>>, vector<16x32xbf16>
    %cst_12 = arith.constant dense<0.000000e+00> : vector<8x32xf32>
    %30 = tpu.matmul %28, %29, %cst_12 {dimension_numbers = #tpu.dot_dimension_numbers<[1], [0], [0], [1], [0, 0, 1, 1], [], []>} : vector<8x16xbf16>, vector<16x32xbf16>, vector<8x32xf32> -> vector<8x32xf32>
    %c0_13 = arith.constant 0 : index
    %c0_14 = arith.constant 0 : index
    %31 = vector.load %arg5[%c0_13, %c0_14] : memref<1x32xf32, #tpu.memory_space<vmem>>, vector<1x32xf32>
    %32 = vector.broadcast %31 : vector<1x32xf32> to vector<8x32xf32>
    %33 = arith.addf %30, %32 : vector<8x32xf32>
    %cst_15 = arith.constant 0.000000e+00 : f32
    %34 = vector.broadcast %cst_15 : f32 to vector<8x32xf32>
    %35 = arith.maximumf %33, %34 : vector<8x32xf32>
    %36 = arith.truncf %35 : vector<8x32xf32> to vector<8x32xbf16>
    %c0_16 = arith.constant 0 : index
    %c0_17 = arith.constant 0 : index
    %37 = vector.load %arg6[%c0_16, %c0_17] : memref<32x16xbf16, #tpu.memory_space<vmem>>, vector<32x16xbf16>
    %cst_18 = arith.constant dense<0.000000e+00> : vector<8x16xf32>
    %38 = tpu.matmul %36, %37, %cst_18 {dimension_numbers = #tpu.dot_dimension_numbers<[1], [0], [0], [1], [0, 0, 1, 1], [], []>} : vector<8x32xbf16>, vector<32x16xbf16>, vector<8x16xf32> -> vector<8x16xf32>
    %c0_19 = arith.constant 0 : index
    %c0_20 = arith.constant 0 : index
    %39 = vector.load %arg7[%c0_19, %c0_20] : memref<1x16xf32, #tpu.memory_space<vmem>>, vector<1x16xf32>
    %40 = vector.broadcast %39 : vector<1x16xf32> to vector<8x16xf32>
    %41 = arith.addf %38, %40 : vector<8x16xf32>
    %42 = arith.addf %27, %41 : vector<8x16xf32>
    %43 = arith.truncf %42 : vector<8x16xf32> to vector<8x16xbf16>
    %c0_21 = arith.constant 0 : index
    %c0_22 = arith.constant 0 : index
    %44 = vector.load %arg8[%c0_21, %c0_22] : memref<16x8xbf16, #tpu.memory_space<vmem>>, vector<16x8xbf16>
    %cst_23 = arith.constant dense<0.000000e+00> : vector<8x8xf32>
    %45 = tpu.matmul %43, %44, %cst_23 {dimension_numbers = #tpu.dot_dimension_numbers<[1], [0], [0], [1], [0, 0, 1, 1], [], []>} : vector<8x16xbf16>, vector<16x8xbf16>, vector<8x8xf32> -> vector<8x8xf32>
    %c0_24 = arith.constant 0 : index
    %c0_25 = arith.constant 0 : index
    %46 = vector.load %arg9[%c0_24, %c0_25] : memref<1x8xf32, #tpu.memory_space<vmem>>, vector<1x8xf32>
    %47 = vector.broadcast %46 : vector<1x8xf32> to vector<8x8xf32>
    %48 = arith.addf %45, %47 : vector<8x8xf32>
    %cst_26 = arith.constant 1.000000e-10 : f32
    %49 = vector.broadcast %cst_26 : f32 to vector<8x1xf32>
    %50 = arith.addf %1, %49 : vector<8x1xf32>
    %51 = tpu.reciprocal %50 : vector<8x1xf32> -> vector<8x1xf32>
    %52 = vector.broadcast %2 : vector<8x1xf32> to vector<8x8xf32>
    %53 = arith.subf %48, %52 : vector<8x8xf32>
    %54 = vector.broadcast %51 : vector<8x1xf32> to vector<8x8xf32>
    %55 = arith.mulf %53, %54 : vector<8x8xf32>
    %56 = vector.broadcast %16 : vector<8x1xf32> to vector<8x8xf32>
    %57 = arith.mulf %55, %56 : vector<8x8xf32>
    %58 = vector.broadcast %6 : vector<8x1xf32> to vector<8x8xf32>
    %59 = arith.addf %57, %58 : vector<8x8xf32>
    %c0_27 = arith.constant 0 : index
    %c0_28 = arith.constant 0 : index
    %60 = vector.load %arg10[%c0_27, %c0_28] : memref<8x8xf32, #tpu.memory_space<vmem>>, vector<8x8xf32>
    tpu.vector_store %arg10[%c0_27, %c0_28], %59 {strides = array<i32>} : memref<8x8xf32, #tpu.memory_space<vmem>>, vector<8x8xf32>,
    return
  }
  func.func @transform_0(%arg0: i32) -> (i32, i32) {
    %c0_i32 = arith.constant 0 : i32
    %c0_i32_0 = arith.constant 0 : i32
    return %arg0, %c0_i32 : i32, i32
  }
  func.func @transform_1(%arg0: i32) -> (i32, i32) {
    %c0_i32 = arith.constant 0 : i32
    %c0_i32_0 = arith.constant 0 : i32
    return %arg0, %c0_i32 : i32, i32
  }
  func.func @transform_2(%arg0: i32) -> (i32, i32) {
    %c0_i32 = arith.constant 0 : i32
    %c0_i32_0 = arith.constant 0 : i32
    return %arg0, %c0_i32 : i32, i32
  }
  func.func @transform_3(%arg0: i32) -> (i32, i32) {
    %c0_i32 = arith.constant 0 : i32
    %c0_i32_0 = arith.constant 0 : i32
    %c0_i32_1 = arith.constant 0 : i32
    return %c0_i32, %c0_i32_0 : i32, i32
  }
  func.func @transform_4(%arg0: i32) -> (i32, i32) {
    %c0_i32 = arith.constant 0 : i32
    %c0_i32_0 = arith.constant 0 : i32
    %c0_i32_1 = arith.constant 0 : i32
    return %c0_i32, %c0_i32_0 : i32, i32
  }
  func.func @transform_5(%arg0: i32) -> (i32, i32) {
    %c0_i32 = arith.constant 0 : i32
    %c0_i32_0 = arith.constant 0 : i32
    %c0_i32_1 = arith.constant 0 : i32
    return %c0_i32, %c0_i32_0 : i32, i32
  }
  func.func @transform_6(%arg0: i32) -> (i32, i32) {
    %c0_i32 = arith.constant 0 : i32
    %c0_i32_0 = arith.constant 0 : i32
    %c0_i32_1 = arith.constant 0 : i32
    return %c0_i32, %c0_i32_0 : i32, i32
  }
  func.func @transform_7(%arg0: i32) -> (i32, i32) {
    %c0_i32 = arith.constant 0 : i32
    %c0_i32_0 = arith.constant 0 : i32
    %c0_i32_1 = arith.constant 0 : i32
    return %c0_i32, %c0_i32_0 : i32, i32
  }
  func.func @transform_8(%arg0: i32) -> (i32, i32) {
    %c0_i32 = arith.constant 0 : i32
    %c0_i32_0 = arith.constant 0 : i32
    %c0_i32_1 = arith.constant 0 : i32
    return %c0_i32, %c0_i32_0 : i32, i32
  }
  func.func @transform_9(%arg0: i32) -> (i32, i32) {
    %c0_i32 = arith.constant 0 : i32
    %c0_i32_0 = arith.constant 0 : i32
    return %arg0, %c0_i32 : i32, i32
  }
}

module attributes {stable_mosaic.version = 11 : i64} {
  func.func @_fusion_kernel(%arg0: i32, %arg1: memref<8x8xf32, #tpu.memory_space<vmem>>, %arg2: memref<8x8xf32, #tpu.memory_space<vmem>>, %arg3: memref<8x8xbf16, #tpu.memory_space<vmem>>, %arg4: memref<8x8xbf16, #tpu.memory_space<vmem>>, %arg5: memref<1x8xf32, #tpu.memory_space<vmem>>, %arg6: memref<8x8xf32, #tpu.memory_space<vmem>>) attributes {dimension_semantics = [#tpu.dimension_semantics<parallel>], iteration_bounds = array<i64: 1>, scalar_prefetch = 0 : i64, scratch_operands = 0 : i64, tpu.core_type = #tpu.core_type<tc>, window_params = [{transform_indices = @transform_0, window_bounds = array<i64: 8, 8>}, {transform_indices = @transform_1, window_bounds = array<i64: 8, 8>}, {pipeline_mode = #tpu.pipeline_mode<synchronous>, transform_indices = @transform_2, window_bounds = array<i64: 8, 8>}, {pipeline_mode = #tpu.pipeline_mode<synchronous>, transform_indices = @transform_3, window_bounds = array<i64: 8, 8>}, {pipeline_mode = #tpu.pipeline_mode<synchronous>, transform_indices = @transform_4, window_bounds = array<i64: 1, 8>}, {transform_indices = @transform_5, window_bounds = array<i64: 8, 8>}]} {
    %c0 = arith.constant 0 : index
    %c0_0 = arith.constant 0 : index
    %0 = vector.load %arg1[%c0, %c0_0] : memref<8x8xf32, #tpu.memory_space<vmem>>, vector<8x8xf32>
    %1 = arith.truncf %0 : vector<8x8xf32> to vector<8x8xbf16>
    %c0_1 = arith.constant 0 : index
    %c0_2 = arith.constant 0 : index
    %2 = vector.load %arg3[%c0_1, %c0_2] : memref<8x8xbf16, #tpu.memory_space<vmem>>, vector<8x8xbf16>
    %cst = arith.constant dense<0.000000e+00> : vector<8x8xf32>
    %3 = tpu.matmul %1, %2, %cst {dimension_numbers = #tpu.dot_dimension_numbers<[1], [0], [0], [1], [0, 0, 1, 1], [], []>} : vector<8x8xbf16>, vector<8x8xbf16>, vector<8x8xf32> -> vector<8x8xf32>
    %c0_3 = arith.constant 0 : index
    %c0_4 = arith.constant 0 : index
    %4 = vector.load %arg2[%c0_3, %c0_4] : memref<8x8xf32, #tpu.memory_space<vmem>>, vector<8x8xf32>
    %5 = arith.truncf %4 : vector<8x8xf32> to vector<8x8xbf16>
    %c0_5 = arith.constant 0 : index
    %c0_6 = arith.constant 0 : index
    %6 = vector.load %arg4[%c0_5, %c0_6] : memref<8x8xbf16, #tpu.memory_space<vmem>>, vector<8x8xbf16>
    %cst_7 = arith.constant dense<0.000000e+00> : vector<8x8xf32>
    %7 = tpu.matmul %5, %6, %cst_7 {dimension_numbers = #tpu.dot_dimension_numbers<[1], [0], [0], [1], [0, 0, 1, 1], [], []>} : vector<8x8xbf16>, vector<8x8xbf16>, vector<8x8xf32> -> vector<8x8xf32>
    %8 = arith.addf %3, %7 : vector<8x8xf32>
    %c0_8 = arith.constant 0 : index
    %c0_9 = arith.constant 0 : index
    %9 = vector.load %arg5[%c0_8, %c0_9] : memref<1x8xf32, #tpu.memory_space<vmem>>, vector<1x8xf32>
    %10 = vector.broadcast %9 : vector<1x8xf32> to vector<8x8xf32>
    %11 = arith.addf %8, %10 : vector<8x8xf32>
    %c0_10 = arith.constant 0 : index
    %c0_11 = arith.constant 0 : index
    %12 = vector.load %arg6[%c0_10, %c0_11] : memref<8x8xf32, #tpu.memory_space<vmem>>, vector<8x8xf32>
    tpu.vector_store %arg6[%c0_10, %c0_11], %11 {strides = array<i32>} : memref<8x8xf32, #tpu.memory_space<vmem>>, vector<8x8xf32>,
    return
  }
  func.func @transform_0(%arg0: i32) -> (i32, i32) {
    %c0_i32 = arith.constant 0 : i32
    %c0_i32_0 = arith.constant 0 : i32
    return %arg0, %c0_i32 : i32, i32
  }
  func.func @transform_1(%arg0: i32) -> (i32, i32) {
    %c0_i32 = arith.constant 0 : i32
    %c0_i32_0 = arith.constant 0 : i32
    return %arg0, %c0_i32 : i32, i32
  }
  func.func @transform_2(%arg0: i32) -> (i32, i32) {
    %c0_i32 = arith.constant 0 : i32
    %c0_i32_0 = arith.constant 0 : i32
    %c0_i32_1 = arith.constant 0 : i32
    return %c0_i32, %c0_i32_0 : i32, i32
  }
  func.func @transform_3(%arg0: i32) -> (i32, i32) {
    %c0_i32 = arith.constant 0 : i32
    %c0_i32_0 = arith.constant 0 : i32
    %c0_i32_1 = arith.constant 0 : i32
    return %c0_i32, %c0_i32_0 : i32, i32
  }
  func.func @transform_4(%arg0: i32) -> (i32, i32) {
    %c0_i32 = arith.constant 0 : i32
    %c0_i32_0 = arith.constant 0 : i32
    %c0_i32_1 = arith.constant 0 : i32
    return %c0_i32, %c0_i32_0 : i32, i32
  }
  func.func @transform_5(%arg0: i32) -> (i32, i32) {
    %c0_i32 = arith.constant 0 : i32
    %c0_i32_0 = arith.constant 0 : i32
    return %arg0, %c0_i32 : i32, i32
  }
}

</mosaic_0001>

<llo_original>
// kernel: tile.19
$region0: #{tile.19}
  %s0 = inlined_call_operand.vmem [shape: f32[8,5,32], index: 0, kind: input, shape index: {}]
  %s1 = inlined_call_operand.vmem [shape: f32[40,32], index: 1, kind: output, shape index: {}]
  %v2 = vld [vmem:[%s0] sm:$0x1f]
  %vm3 = vcmask 261120
  %4 = vst.msk [vmem:[%s1] sm:$0x1f] %vm3, %v2
  %s5 = scalar_lea.vmem %s0, 8
  %v6 = vld [vmem:[%s5] sm:$0x1f]
  %vm7 = vcmask 261120
  %s8 = scalar_lea.vmem %s1, 5
  %9 = vst.msk [vmem:[%s8] sm:$0x1f] %vm7, %v6
  %s10 = scalar_lea.vmem %s0, 16
  %v11 = vld [vmem:[%s10] sm:$0x1f]
  %vm12 = vcmask 261120
  %s13 = scalar_lea.vmem %s1, 10
  %14 = vst.msk [vmem:[%s13] sm:$0x1f] %vm12, %v11
  %s15 = scalar_lea.vmem %s0, 24
  %v16 = vld [vmem:[%s15] sm:$0x1f]
  %vm17 = vcmask 261120
  %s18 = scalar_lea.vmem %s1, 15
  %19 = vst.msk [vmem:[%s18] sm:$0x1f] %vm17, %v16
  %s20 = scalar_lea.vmem %s0, 32
  %v21 = vld [vmem:[%s20] sm:$0x1f]
  %vm22 = vcmask 261120
  %s23 = scalar_lea.vmem %s1, 20
  %24 = vst.msk [vmem:[%s23] sm:$0x1f] %vm22, %v21
  %s25 = scalar_lea.vmem %s0, 40
  %v26 = vld [vmem:[%s25] sm:$0x1f]
  %vm27 = vcmask 261120
  %s28 = scalar_lea.vmem %s1, 25
  %29 = vst.msk [vmem:[%s28] sm:$0x1f] %vm27, %v26
  %s30 = scalar_lea.vmem %s0, 48
  %v31 = vld [vmem:[%s30] sm:$0x1f]
  %vm32 = vcmask 261120
  %s33 = scalar_lea.vmem %s1, 30
  %34 = vst.msk [vmem:[%s33] sm:$0x1f] %vm32, %v31
  %s35 = scalar_lea.vmem %s0, 56
  %v36 = vld [vmem:[%s35] sm:$0x1f]
  %vm37 = vcmask 261120
  %s38 = scalar_lea.vmem %s1, 35
  %39 = vst.msk [vmem:[%s38] sm:$0x1f] %vm37, %v36

// kernel: tile.23
$region0: #{tile.23}
  #allocation0 [shape = 's32[1]{0}', space=sflag, size = 0x4, scoped, tag = 'scoped memory for tile.23']
  %s0 = inlined_call_operand.vmem [shape: f32[4], index: 0, kind: input, shape index: {}]
  %s1 = inlined_call_operand.vmem [shape: f32[2,4], index: 1, kind: output, shape index: {}]
  // Predicated region
  $region2: #{tile.23} parent=0 // pred_check
    _
  $region3: #{tile.23} parent=0 // pred_check_branch
    %3 = sbr.rel (0) target = $region5
  $region4: #{tile.23} parent=0 // pred_region
    _
  $region5: #{tile.23} parent=0 // pred_fallthru
    _
  %v4 = vld [vmem:[%s0] ss:$0 sm:$0xff]
  %5 = vst [vmem:[%s1] sm:$0x3] %v4

// kernel: tile.0
$region0: #{tile.0}
  %s0 = inlined_call_operand.vmem [shape: f32[2,4], index: 0, kind: input, shape index: {}]
  %s1 = inlined_call_operand.vmem [shape: f32[8,1], index: 1, kind: output, shape index: {}]
  $region1: #{tile.0} parent=0
    #allocation0 [shape = 'u8[4096]{0}', space=vmem, size = 0x1000, scoped, tag = 'scoped mem for input reshape']
    %s3 = sshllo.u32 0, 2
    %v4 = vld [vmem:[%s0] sm:%s3]
    %5 = vst [vmem:[#allocation0] sm:%s3] %v4
    %v6 = vld [vmem:[#allocation0] sm:$0x3]
    %vm7 = vcmask 7168
    %8 = vst.msk [vmem:[%s1] ss:$4 sm:$0x3] %vm7, %v6
    %v9 = vld [vmem:[#allocation0] sm:$0x3]
    %10 = vrot.lane.b32.xlu0 %v9, 127
    %v11 = vpop.permute.xlu0 %10
    %vm12 = vcmask 7168
    %s13 = scalar_lea.vmem %s1, 1
    %14 = vst.msk [vmem:[%s13] ss:$4 sm:$0x3] %vm12, %v11
    %v15 = vld [vmem:[#allocation0] sm:$0x3]
    %16 = vrot.lane.b32.xlu0 %v15, 126
    %v17 = vpop.permute.xlu0 %16
    %vm18 = vcmask 7168
    %s19 = scalar_lea.vmem %s1, 2
    %20 = vst.msk [vmem:[%s19] ss:$4 sm:$0x3] %vm18, %v17
    %v21 = vld [vmem:[#allocation0] sm:$0x3]
    %22 = vrot.lane.b32.xlu0 %v21, 125
    %v23 = vpop.permute.xlu0 %22
    %vm24 = vcmask 7168
    %s25 = scalar_lea.vmem %s1, 3
    %26 = vst.msk [vmem:[%s25] ss:$4 sm:$0x3] %vm24, %v23

// kernel: transformer_rmlp_forward.7
$region0: #{transformer_rmlp_forward.7}
  #allocation0 [shape = 'u32[]', space=smem, size = 0x4, offset = 0x4, fixed_abs, tag = 'smem constant byte address 0x4 - core index']
  #allocation1 [shape = 'u32[144,128]{1,0:T(1,128)}', space=vmem, size = 0x12000, scoped, tag = 'internal scratch']
  #allocation2 [shape = 'f32[8,8]{1,0:T(8,128)}', space=vmem, size = 0x1000, scoped, tag = 'scratch operand']
  %s0 = inlined_call_operand.vmem [shape: bf16[8,16], index: 0, kind: input, shape index: {}]
  %s1 = inlined_call_operand.vmem [shape: bf16[16,8], index: 1, kind: input, shape index: {}]
  %s2 = inlined_call_operand.vmem [shape: f32[1,8], index: 2, kind: input, shape index: {}]
  %s3 = inlined_call_operand.vmem [shape: f32[8,8], index: 3, kind: output, shape index: {}]
  %s4 = sld [smem:[#allocation0]]
  $region30: #{transformer_rmlp_forward.7} parent=0
    _
  %s6 = ssub.s32 1, %s4
  %s7 = scalar_select 0, %s6, %s4
  // Predicated region
  $region2: #{transformer_rmlp_forward.7} parent=0 // pred_check
    _
  $region3: #{transformer_rmlp_forward.7} parent=0 // pred_check_branch
    %9 = sbr.rel (0) target = $region5
  $region4: #{transformer_rmlp_forward.7} parent=0 // pred_region
    _
  $region5: #{transformer_rmlp_forward.7} parent=0 // pred_fallthru
    _
  // Predicated region
  $region6: #{transformer_rmlp_forward.7} parent=0 // pred_check
    _
  $region7: #{transformer_rmlp_forward.7} parent=0 // pred_check_branch
    %11 = sbr.rel (0) target = $region9
  $region8: #{transformer_rmlp_forward.7} parent=0 // pred_region
    _
  $region9: #{transformer_rmlp_forward.7} parent=0 // pred_fallthru
    _
  // Predicated region
  $region10: #{transformer_rmlp_forward.7} parent=0 // pred_check
    _
  $region11: #{transformer_rmlp_forward.7} parent=0 // pred_check_branch
    %13 = sbr.rel (0) target = $region13
  $region12: #{transformer_rmlp_forward.7} parent=0 // pred_region
    _
  $region13: #{transformer_rmlp_forward.7} parent=0 // pred_fallthru
    _
  %p15 = scmp.eq.s32.totalorder 0, 0
  // Predicated region
  $region14: #{transformer_rmlp_forward.7} parent=0 // pred_check
    %p16 = pneg %p15
  $region15: #{transformer_rmlp_forward.7} parent=0 // pred_check_branch
    %18 = sbr.rel (%p16) target = $region17
  $region16: #{transformer_rmlp_forward.7} parent=0 // pred_region
    %vm19 = vcmask 64512
    %20 = vst.msk [vmem:[#allocation2] sm:$0xff] %vm19, 0.0
  $region17: #{transformer_rmlp_forward.7} parent=0 // pred_fallthru
    _
  %v21 = vld [vmem:[%s0] sm:$0xf]
  %v22 = vld [vmem:[#allocation2] sm:$0xff]
  %v23 = vld [vmem:[%s1] sm:$0xf]
  %v24 = vld [vmem:[%s1 + $0x4] sm:$0xf]
  %v27 = vunpack.c.l.b16 %v23
  %v28 = vunpack.c.l.b16 %v24
  %v29 = vpack.c.b16 %v28, %v27
  %vm31 = vcmask 130048
  %v33 = vsel %vm31, %v21, 0
  %35 = vmatprep.subr.bf16.mxu0 0
  %36 = vmatpush1.bf16.msra.mxu0 %v29
  %37 = vmatprep.subr.bf16.mxu0 0
  %38 = vmatpush1.bf16.msra.mxu0 0
  %39 = vmatprep.subr.bf16.mxu0 0
  %40 = vmatpush1.bf16.msra.mxu0 0
  %41 = vmatprep.subr.bf16.mxu0 0
  %42 = vmatpush1.bf16.msra.mxu0 0
  %43 = vmatprep.subr.bf16.mxu0 0
  %44 = vmatpush1.bf16.msra.mxu0 0
  %45 = vmatprep.subr.bf16.mxu0 0
  %46 = vmatpush1.bf16.msra.mxu0 0
  %47 = vmatprep.subr.bf16.mxu0 0
  %48 = vmatpush1.bf16.msra.mxu0 0
  %49 = vmatprep.subr.bf16.mxu0 0
  %50 = vmatpush1.bf16.msra.mxu0 0
  %51 = vmatprep.subr.bf16.mxu0 0
  %52 = vmatpush1.bf16.msra.mxu0 0
  %53 = vmatprep.subr.bf16.mxu0 0
  %54 = vmatpush1.bf16.msra.mxu0 0
  %55 = vmatprep.subr.bf16.mxu0 0
  %56 = vmatpush1.bf16.msra.mxu0 0
  %57 = vmatprep.subr.bf16.mxu0 0
  %58 = vmatpush1.bf16.msra.mxu0 0
  %59 = vmatprep.subr.bf16.mxu0 0
  %60 = vmatpush1.bf16.msra.mxu0 0
  %61 = vmatprep.subr.bf16.mxu0 0
  %62 = vmatpush1.bf16.msra.mxu0 0
  %63 = vmatprep.subr.bf16.mxu0 0
  %64 = vmatpush1.bf16.msra.mxu0 0
  %65 = vmatprep.subr.bf16.mxu0 0
  %66 = vmatpush1.bf16.msra.mxu0 0
  %67 = vmatprep.mubr.bf16.mxu0 0
  %68 = vmatmul.mubr.bf16.gmra.mrb[0].mxu0 %v33
  %v69 = vpop.f32.mrb[0].mxu0
  %v70 = vadd.f32 0.0, %v69
  %v71 = vpop.f32.mrb[0].mxu0
  %v72 = vpop.f32.mrb[0].mxu0
  %v73 = vpop.f32.mrb[0].mxu0
  %74 = vdwg.mxu0
  %v75 = vadd.f32 %v22, %v70
  %vm76 = vcmask 64512
  %77 = vst.msk [vmem:[#allocation2] sm:$0xff] %vm76, %v75
  // Predicated region
  $region18: #{transformer_rmlp_forward.7} parent=0 // pred_check
    %p78 = pneg %p15
  $region19: #{transformer_rmlp_forward.7} parent=0 // pred_check_branch
    %80 = sbr.rel (%p78) target = $region21
  $region20: #{transformer_rmlp_forward.7} parent=0 // pred_region
    %v81 = vld [vmem:[#allocation2] sm:$0xff]
    %v82 = vld [vmem:[%s2] sm:$0x1]
    %v84 = vlaneseq
    %v85 = vshrl.u32 %v84, 7
    %v86 = vsub.s32 0, %v85
    %v87 = vrot.slane %v82, %v86
    %v89 = vadd.f32 %v81, %v87
    %90 = vst.msk [vmem:[%s3] sm:$0xff] %vm76, %v89
  $region21: #{transformer_rmlp_forward.7} parent=0 // pred_fallthru
    _
  // Predicated region
  $region22: #{transformer_rmlp_forward.7} parent=0 // pred_check
    _
  $region23: #{transformer_rmlp_forward.7} parent=0 // pred_check_branch
    %92 = sbr.rel (0) target = $region25
  $region24: #{transformer_rmlp_forward.7} parent=0 // pred_region
    _
  $region25: #{transformer_rmlp_forward.7} parent=0 // pred_fallthru
    _
  // Predicated region
  $region26: #{transformer_rmlp_forward.7} parent=0 // pred_check
    _
  $region27: #{transformer_rmlp_forward.7} parent=0 // pred_check_branch
    %94 = sbr.rel (0) target = $region29
  $region28: #{transformer_rmlp_forward.7} parent=0 // pred_region
    _
  $region29: #{transformer_rmlp_forward.7} parent=0 // pred_fallthru
    _

// kernel: transformer_rmlp_forward.6
$region0: #{transformer_rmlp_forward.6}
  #allocation0 [shape = 'u32[]', space=smem, size = 0x4, offset = 0x4, fixed_abs, tag = 'smem constant byte address 0x4 - core index']
  #allocation1 [shape = 'u32[144,128]{1,0:T(1,128)}', space=vmem, size = 0x12000, scoped, tag = 'internal scratch']
  #allocation2 [shape = 'f32[8,16]{1,0:T(8,128)}', space=vmem, size = 0x1000, scoped, tag = 'scratch operand']
  %s0 = inlined_call_operand.vmem [shape: bf16[8,160], index: 0, kind: input, shape index: {}]
  %s1 = inlined_call_operand.vmem [shape: bf16[160,16], index: 1, kind: input, shape index: {}]
  %s2 = inlined_call_operand.vmem [shape: f32[1,16], index: 2, kind: input, shape index: {}]
  %s3 = inlined_call_operand.vmem [shape: bf16[8,16], index: 3, kind: output, shape index: {}]
  %s4 = sld [smem:[#allocation0]]
  $region30: #{transformer_rmlp_forward.6} parent=0
    _
  %s6 = ssub.s32 1, %s4
  %s7 = scalar_select 0, %s6, %s4
  // Predicated region
  $region2: #{transformer_rmlp_forward.6} parent=0 // pred_check
    _
  $region3: #{transformer_rmlp_forward.6} parent=0 // pred_check_branch
    %9 = sbr.rel (0) target = $region5
  $region4: #{transformer_rmlp_forward.6} parent=0 // pred_region
    _
  $region5: #{transformer_rmlp_forward.6} parent=0 // pred_fallthru
    _
  // Predicated region
  $region6: #{transformer_rmlp_forward.6} parent=0 // pred_check
    _
  $region7: #{transformer_rmlp_forward.6} parent=0 // pred_check_branch
    %11 = sbr.rel (0) target = $region9
  $region8: #{transformer_rmlp_forward.6} parent=0 // pred_region
    _
  $region9: #{transformer_rmlp_forward.6} parent=0 // pred_fallthru
    _
  // Predicated region
  $region10: #{transformer_rmlp_forward.6} parent=0 // pred_check
    _
  $region11: #{transformer_rmlp_forward.6} parent=0 // pred_check_branch
    %13 = sbr.rel (0) target = $region13
  $region12: #{transformer_rmlp_forward.6} parent=0 // pred_region
    _
  $region13: #{transformer_rmlp_forward.6} parent=0 // pred_fallthru
    _
  %p15 = scmp.eq.s32.totalorder 0, 0
  // Predicated region
  $region14: #{transformer_rmlp_forward.6} parent=0 // pred_check
    %p16 = pneg %p15
  $region15: #{transformer_rmlp_forward.6} parent=0 // pred_check_branch
    %18 = sbr.rel (%p16) target = $region17
  $region16: #{transformer_rmlp_forward.6} parent=0 // pred_region
    %vm19 = vcmask 130048
    %20 = vst.msk [vmem:[#allocation2] sm:$0xff] %vm19, 0.0
  $region17: #{transformer_rmlp_forward.6} parent=0 // pred_fallthru
    _
  %v21 = vld [vmem:[%s0] sm:$0xff]
  %v22 = vld [vmem:[#allocation2] sm:$0xff]
  %v23 = vld [vmem:[%s1] sm:$0xf]
  %v24 = vld [vmem:[%s1 + $0x4] sm:$0xf]
  %v25 = vld [vmem:[%s1 + $0x8] sm:$0xf]
  %v26 = vld [vmem:[%s1 + $0xc] sm:$0xf]
  %v27 = vld [vmem:[%s1 + $0x10] sm:$0xf]
  %v28 = vld [vmem:[%s1 + $0x14] sm:$0xf]
  %v29 = vld [vmem:[%s1 + $0x18] sm:$0xf]
  %v30 = vld [vmem:[%s1 + $0x1c] sm:$0xf]
  %v31 = vld [vmem:[%s1 + $0x20] sm:$0xf]
  %v32 = vld [vmem:[%s1 + $0x24] sm:$0xf]
  %v33 = vld [vmem:[%s1 + $0x28] sm:$0xf]
  %v34 = vld [vmem:[%s1 + $0x2c] sm:$0xf]
  %v35 = vld [vmem:[%s1 + $0x30] sm:$0xf]
  %v36 = vld [vmem:[%s1 + $0x34] sm:$0xf]
  %v37 = vld [vmem:[%s1 + $0x38] sm:$0xf]
  %v38 = vld [vmem:[%s1 + $0x3c] sm:$0xf]
  %v39 = vld [vmem:[%s1 + $0x40] sm:$0xf]
  %v40 = vld [vmem:[%s1 + $0x44] sm:$0xf]
  %v41 = vld [vmem:[%s1 + $0x48] sm:$0xf]
  %v42 = vld [vmem:[%s1 + $0x4c] sm:$0xf]
  %v44 = vunpack.c.l.b16 %v21
  %v45 = vunpack.c.h.b16 %v21
  %v46 = vpack.c.b16 %v44, %v44
  %v47 = vpack.c.b16 %v45, %v45
  %v69 = vunpack.c.l.b16 %v23
  %v70 = vunpack.c.l.b16 %v24
  %v71 = vunpack.c.l.b16 %v25
  %v72 = vunpack.c.l.b16 %v26
  %v73 = vunpack.c.l.b16 %v27
  %v74 = vunpack.c.l.b16 %v28
  %v75 = vunpack.c.l.b16 %v29
  %v76 = vunpack.c.l.b16 %v30
  %v77 = vunpack.c.l.b16 %v31
  %v78 = vunpack.c.l.b16 %v32
  %v79 = vunpack.c.l.b16 %v33
  %v80 = vunpack.c.l.b16 %v34
  %v81 = vunpack.c.l.b16 %v35
  %v82 = vunpack.c.l.b16 %v36
  %v83 = vunpack.c.l.b16 %v37
  %v84 = vunpack.c.l.b16 %v38
  %v85 = vunpack.c.l.b16 %v39
  %v86 = vunpack.c.l.b16 %v40
  %v87 = vunpack.c.l.b16 %v41
  %v88 = vunpack.c.l.b16 %v42
  %v89 = vpack.c.b16 %v70, %v69
  %v90 = vpack.c.b16 %v72, %v71
  %v91 = vpack.c.b16 %v74, %v73
  %v92 = vpack.c.b16 %v76, %v75
  %v93 = vpack.c.b16 %v78, %v77
  %v94 = vpack.c.b16 %v80, %v79
  %v95 = vpack.c.b16 %v82, %v81
  %v96 = vpack.c.b16 %v84, %v83
  %v97 = vpack.c.b16 %v86, %v85
  %v98 = vpack.c.b16 %v88, %v87
  %vm109 = vcmask 261120
  %v111 = vsel %vm109, %v47, 0
  %113 = vmatprep.subr.bf16.mxu0 0
  %114 = vmatpush1.bf16.msra.mxu0 %v89
  %115 = vmatprep.subr.bf16.mxu0 0
  %116 = vmatpush1.bf16.msra.mxu0 %v90
  %117 = vmatprep.subr.bf16.mxu0 0
  %118 = vmatpush1.bf16.msra.mxu0 %v91
  %119 = vmatprep.subr.bf16.mxu0 0
  %120 = vmatpush1.bf16.msra.mxu0 %v92
  %121 = vmatprep.subr.bf16.mxu0 0
  %122 = vmatpush1.bf16.msra.mxu0 %v93
  %123 = vmatprep.subr.bf16.mxu0 0
  %124 = vmatpush1.bf16.msra.mxu0 %v94
  %125 = vmatprep.subr.bf16.mxu0 0
  %126 = vmatpush1.bf16.msra.mxu0 %v95
  %127 = vmatprep.subr.bf16.mxu0 0
  %128 = vmatpush1.bf16.msra.mxu0 %v96
  %129 = vmatprep.subr.bf16.mxu0 0
  %130 = vmatpush1.bf16.msra.mxu0 %v97
  %131 = vmatprep.subr.bf16.mxu0 0
  %132 = vmatpush1.bf16.msra.mxu0 %v98
  %133 = vmatprep.subr.bf16.mxu0 0
  %134 = vmatpush1.bf16.msra.mxu0 0
  %135 = vmatprep.subr.bf16.mxu0 0
  %136 = vmatpush1.bf16.msra.mxu0 0
  %137 = vmatprep.subr.bf16.mxu0 0
  %138 = vmatpush1.bf16.msra.mxu0 0
  %139 = vmatprep.subr.bf16.mxu0 0
  %140 = vmatpush1.bf16.msra.mxu0 0
  %141 = vmatprep.subr.bf16.mxu0 0
  %142 = vmatpush1.bf16.msra.mxu0 0
  %143 = vmatprep.subr.bf16.mxu0 0
  %144 = vmatpush1.bf16.msra.mxu0 0
  %145 = vmatprep.mubr.bf16.mxu0 %v111
  %146 = vmatmul.mubr.bf16.gmra.mrb[0].mxu0 %v46
  %v147 = vpop.f32.mrb[0].mxu0
  %v148 = vadd.f32 0.0, %v147
  %v149 = vpop.f32.mrb[0].mxu0
  %v150 = vpop.f32.mrb[0].mxu0
  %v151 = vpop.f32.mrb[0].mxu0
  %152 = vdwg.mxu0
  %v153 = vadd.f32 %v22, %v148
  %vm154 = vcmask 130048
  %155 = vst.msk [vmem:[#allocation2] sm:$0xff] %vm154, %v153
  // Predicated region
  $region18: #{transformer_rmlp_forward.6} parent=0 // pred_check
    %p156 = pneg %p15
  $region19: #{transformer_rmlp_forward.6} parent=0 // pred_check_branch
    %158 = sbr.rel (%p156) target = $region21
  $region20: #{transformer_rmlp_forward.6} parent=0 // pred_region
    %v159 = vld [vmem:[#allocation2] sm:$0xff]
    %v160 = vld [vmem:[%s2] sm:$0x1]
    %v162 = vlaneseq
    %v163 = vshrl.u32 %v162, 7
    %v164 = vsub.s32 0, %v163
    %v165 = vrot.slane %v160, %v164
    %v167 = vadd.f32 %v159, %v165
    %v168 = vmul.f32 %v167, 0.5
    %v169 = vmul.f32 %v167, 0.044715
    %v170 = vmul.f32 %v169, %v167
    %v171 = vmul.f32 %v170, %v167
    %v172 = vadd.f32 %v167, %v171
    %v173 = vmul.f32 %v172, 0.7978846
    %v174 = vtanh.pop %v173
    %v175 = vadd.f32 %v174, 1.0
    %v176 = vmul.f32 %v168, %v175
    %v177 = vpack.c.bf16 %v176, %v176
    %vm178 = vcmask 125952
    %179 = vst.msk [vmem:[%s3] sm:$0xf] %vm178, %v177
  $region21: #{transformer_rmlp_forward.6} parent=0 // pred_fallthru
    _
  // Predicated region
  $region22: #{transformer_rmlp_forward.6} parent=0 // pred_check
    _
  $region23: #{transformer_rmlp_forward.6} parent=0 // pred_check_branch
    %181 = sbr.rel (0) target = $region25
  $region24: #{transformer_rmlp_forward.6} parent=0 // pred_region
    _
  $region25: #{transformer_rmlp_forward.6} parent=0 // pred_fallthru
    _
  // Predicated region
  $region26: #{transformer_rmlp_forward.6} parent=0 // pred_check
    _
  $region27: #{transformer_rmlp_forward.6} parent=0 // pred_check_branch
    %183 = sbr.rel (0) target = $region29
  $region28: #{transformer_rmlp_forward.6} parent=0 // pred_region
    _
  $region29: #{transformer_rmlp_forward.6} parent=0 // pred_fallthru
    _

// kernel: transformer_rmlp_forward.8
$region0: #{transformer_rmlp_forward.8}
  #allocation0 [shape = 'u32[]', space=smem, size = 0x4, offset = 0x4, fixed_abs, tag = 'smem constant byte address 0x4 - core index']
  #allocation1 [shape = 'u32[144,128]{1,0:T(1,128)}', space=vmem, size = 0x12000, scoped, tag = 'internal scratch']
  %s0 = inlined_call_operand.vmem [shape: f32[8,16], index: 0, kind: input, shape index: {}]
  %s1 = inlined_call_operand.vmem [shape: f32[8,1], index: 1, kind: input, shape index: {}]
  %s2 = inlined_call_operand.vmem [shape: f32[8,1], index: 2, kind: input, shape index: {}]
  %s3 = inlined_call_operand.vmem [shape: bf16[16,32], index: 3, kind: input, shape index: {}]
  %s4 = inlined_call_operand.vmem [shape: f32[1,32], index: 4, kind: input, shape index: {}]
  %s5 = inlined_call_operand.vmem [shape: bf16[32,16], index: 5, kind: input, shape index: {}]
  %s6 = inlined_call_operand.vmem [shape: f32[1,16], index: 6, kind: input, shape index: {}]
  %s7 = inlined_call_operand.vmem [shape: bf16[16,8], index: 7, kind: input, shape index: {}]
  %s8 = inlined_call_operand.vmem [shape: f32[1,8], index: 8, kind: input, shape index: {}]
  %s9 = inlined_call_operand.vmem [shape: f32[8,8], index: 9, kind: output, shape index: {}]
  %s10 = sld [smem:[#allocation0]]
  $region46: #{transformer_rmlp_forward.8} parent=0
    _
  %s12 = ssub.s32 1, %s10
  %s13 = scalar_select 0, %s12, %s10
  // Predicated region
  $region2: #{transformer_rmlp_forward.8} parent=0 // pred_check
    _
  $region3: #{transformer_rmlp_forward.8} parent=0 // pred_check_branch
    %15 = sbr.rel (0) target = $region5
  $region4: #{transformer_rmlp_forward.8} parent=0 // pred_region
    _
  $region5: #{transformer_rmlp_forward.8} parent=0 // pred_fallthru
    _
  // Predicated region
  $region6: #{transformer_rmlp_forward.8} parent=0 // pred_check
    _
  $region7: #{transformer_rmlp_forward.8} parent=0 // pred_check_branch
    %17 = sbr.rel (0) target = $region9
  $region8: #{transformer_rmlp_forward.8} parent=0 // pred_region
    _
  $region9: #{transformer_rmlp_forward.8} parent=0 // pred_fallthru
    _
  // Predicated region
  $region10: #{transformer_rmlp_forward.8} parent=0 // pred_check
    _
  $region11: #{transformer_rmlp_forward.8} parent=0 // pred_check_branch
    %19 = sbr.rel (0) target = $region13
  $region12: #{transformer_rmlp_forward.8} parent=0 // pred_region
    _
  $region13: #{transformer_rmlp_forward.8} parent=0 // pred_fallthru
    _
  // Predicated region
  $region14: #{transformer_rmlp_forward.8} parent=0 // pred_check
    _
  $region15: #{transformer_rmlp_forward.8} parent=0 // pred_check_branch
    %21 = sbr.rel (0) target = $region17
  $region16: #{transformer_rmlp_forward.8} parent=0 // pred_region
    _
  $region17: #{transformer_rmlp_forward.8} parent=0 // pred_fallthru
    _
  // Predicated region
  $region18: #{transformer_rmlp_forward.8} parent=0 // pred_check
    _
  $region19: #{transformer_rmlp_forward.8} parent=0 // pred_check_branch
    %23 = sbr.rel (0) target = $region21
  $region20: #{transformer_rmlp_forward.8} parent=0 // pred_region
    _
  $region21: #{transformer_rmlp_forward.8} parent=0 // pred_fallthru
    _
  // Predicated region
  $region22: #{transformer_rmlp_forward.8} parent=0 // pred_check
    _
  $region23: #{transformer_rmlp_forward.8} parent=0 // pred_check_branch
    %25 = sbr.rel (0) target = $region25
  $region24: #{transformer_rmlp_forward.8} parent=0 // pred_region
    _
  $region25: #{transformer_rmlp_forward.8} parent=0 // pred_fallthru
    _
  // Predicated region
  $region26: #{transformer_rmlp_forward.8} parent=0 // pred_check
    _
  $region27: #{transformer_rmlp_forward.8} parent=0 // pred_check_branch
    %27 = sbr.rel (0) target = $region29
  $region28: #{transformer_rmlp_forward.8} parent=0 // pred_region
    _
  $region29: #{transformer_rmlp_forward.8} parent=0 // pred_fallthru
    _
  // Predicated region
  $region30: #{transformer_rmlp_forward.8} parent=0 // pred_check
    _
  $region31: #{transformer_rmlp_forward.8} parent=0 // pred_check_branch
    %29 = sbr.rel (0) target = $region33
  $region32: #{transformer_rmlp_forward.8} parent=0 // pred_region
    _
  $region33: #{transformer_rmlp_forward.8} parent=0 // pred_fallthru
    _
  // Predicated region
  $region34: #{transformer_rmlp_forward.8} parent=0 // pred_check
    _
  $region35: #{transformer_rmlp_forward.8} parent=0 // pred_check_branch
    %31 = sbr.rel (0) target = $region37
  $region36: #{transformer_rmlp_forward.8} parent=0 // pred_region
    _
  $region37: #{transformer_rmlp_forward.8} parent=0 // pred_fallthru
    _
  %v33 = vld [vmem:[%s0] sm:$0xff]
  %v34 = vld [vmem:[%s1] sm:$0xff]
  %v35 = vld [vmem:[%s2] sm:$0xff]
  %vm36 = vcmask 130048
  %v37 = vsel %vm36, %v33, 0.0
  %38 = vadd.xlane.f32.xlu0 %v37
  %v39 = vpop.xlane.xlu0 %38
  %v40 = vrcp.pop 16.0
  %v41 = vmul.f32 %v39, %v40
  %v42 = vsub.f32 %v33, %v41
  %v43 = vmul.f32 %v42, %v42
  %v44 = vsel %vm36, %v43, 0.0
  %45 = vadd.xlane.f32.xlu0 %v44
  %v46 = vpop.xlane.xlu0 %45
  %v47 = vmul.f32 %v46, %v40
  %v48 = vadd.f32 %v47, 1e-05
  %v49 = vrsqrt.pop %v48
  %v50 = vmul.f32 %v48, %v49
  %vm51 = vcmp.eq.f32.partialorder %v48, inf
  %v52 = vsel %vm51, %v48, %v50
  %vm53 = vcmp.eq.f32.partialorder %v48, 0.0
  %v54 = vand.u32 %v48, 2147483648
  %v55 = vsel %vm53, %v54, %v52
  %v56 = vrsqrt.pop %v48
  %v57 = vmul.f32 %v42, %v56
  %59 = vset.pattern.permute.xlu0 0
  %60 = vperm.xlu0 %59, %v34
  %v61 = vpop.permute.xlu0 %60
  %v63 = vmul.f32 %v57, %v61
  %65 = vset.pattern.permute.xlu0 0
  %66 = vperm.xlu0 %65, %v35
  %v67 = vpop.permute.xlu0 %66
  %v69 = vadd.f32 %v63, %v67
  %v70 = vpack.c.bf16 %v69, %v69
  %v71 = vld [vmem:[%s3] sm:$0xf]
  %v72 = vld [vmem:[%s3 + $0x4] sm:$0xf]
  %v73 = vld [vmem:[%s4] sm:$0x1]
  %v75 = vlaneseq
  %v76 = vshrl.u32 %v75, 7
  %v77 = vsub.s32 0, %v76
  %v78 = vrot.slane %v73, %v77
  %v82 = vunpack.c.l.b16 %v71
  %v83 = vunpack.c.l.b16 %v72
  %v84 = vpack.c.b16 %v83, %v82
  %v87 = vsel %vm36, %v70, 0
  %89 = vmatprep.subr.bf16.mxu0 0
  %90 = vmatpush1.bf16.msra.mxu0 %v84
  %91 = vmatprep.subr.bf16.mxu0 0
  %92 = vmatpush1.bf16.msra.mxu0 0
  %93 = vmatprep.subr.bf16.mxu0 0
  %94 = vmatpush1.bf16.msra.mxu0 0
  %95 = vmatprep.subr.bf16.mxu0 0
  %96 = vmatpush1.bf16.msra.mxu0 0
  %97 = vmatprep.subr.bf16.mxu0 0
  %98 = vmatpush1.bf16.msra.mxu0 0
  %99 = vmatprep.subr.bf16.mxu0 0
  %100 = vmatpush1.bf16.msra.mxu0 0
  %101 = vmatprep.subr.bf16.mxu0 0
  %102 = vmatpush1.bf16.msra.mxu0 0
  %103 = vmatprep.subr.bf16.mxu0 0
  %104 = vmatpush1.bf16.msra.mxu0 0
  %105 = vmatprep.subr.bf16.mxu0 0
  %106 = vmatpush1.bf16.msra.mxu0 0
  %107 = vmatprep.subr.bf16.mxu0 0
  %108 = vmatpush1.bf16.msra.mxu0 0
  %109 = vmatprep.subr.bf16.mxu0 0
  %110 = vmatpush1.bf16.msra.mxu0 0
  %111 = vmatprep.subr.bf16.mxu0 0
  %112 = vmatpush1.bf16.msra.mxu0 0
  %113 = vmatprep.subr.bf16.mxu0 0
  %114 = vmatpush1.bf16.msra.mxu0 0
  %115 = vmatprep.subr.bf16.mxu0 0
  %116 = vmatpush1.bf16.msra.mxu0 0
  %117 = vmatprep.subr.bf16.mxu0 0
  %118 = vmatpush1.bf16.msra.mxu0 0
  %119 = vmatprep.subr.bf16.mxu0 0
  %120 = vmatpush1.bf16.msra.mxu0 0
  %121 = vmatprep.mubr.bf16.mxu0 0
  %122 = vmatmul.mubr.bf16.gmra.mrb[0].mxu0 %v87
  %v123 = vpop.f32.mrb[0].mxu0
  %v124 = vadd.f32 %v78, %v123
  %v125 = vpop.f32.mrb[0].mxu0
  %v126 = vpop.f32.mrb[0].mxu0
  %v127 = vpop.f32.mrb[0].mxu0
  %128 = vdwg.mxu0
  %v129 = vmax.f32 %v124, 0.0
  %v130 = vpack.c.bf16 %v129, %v129
  %v131 = vld [vmem:[%s5] sm:$0xf]
  %v132 = vld [vmem:[%s5 + $0x4] sm:$0xf]
  %v133 = vld [vmem:[%s5 + $0x8] sm:$0xf]
  %v134 = vld [vmem:[%s5 + $0xc] sm:$0xf]
  %v135 = vld [vmem:[%s6] sm:$0x1]
  %v137 = vlaneseq
  %v138 = vshrl.u32 %v137, 7
  %v139 = vsub.s32 0, %v138
  %v140 = vrot.slane %v135, %v139
  %v146 = vunpack.c.l.b16 %v131
  %v147 = vunpack.c.l.b16 %v132
  %v148 = vunpack.c.l.b16 %v133
  %v149 = vunpack.c.l.b16 %v134
  %v150 = vpack.c.b16 %v147, %v146
  %v151 = vpack.c.b16 %v149, %v148
  %vm154 = vcmask 261120
  %v156 = vsel %vm154, %v130, 0
  %158 = vmatprep.subr.bf16.mxu0 0
  %159 = vmatpush1.bf16.msra.mxu0 %v150
  %160 = vmatprep.subr.bf16.mxu0 0
  %161 = vmatpush1.bf16.msra.mxu0 %v151
  %162 = vmatprep.subr.bf16.mxu0 0
  %163 = vmatpush1.bf16.msra.mxu0 0
  %164 = vmatprep.subr.bf16.mxu0 0
  %165 = vmatpush1.bf16.msra.mxu0 0
  %166 = vmatprep.subr.bf16.mxu0 0
  %167 = vmatpush1.bf16.msra.mxu0 0
  %168 = vmatprep.subr.bf16.mxu0 0
  %169 = vmatpush1.bf16.msra.mxu0 0
  %170 = vmatprep.subr.bf16.mxu0 0
  %171 = vmatpush1.bf16.msra.mxu0 0
  %172 = vmatprep.subr.bf16.mxu0 0
  %173 = vmatpush1.bf16.msra.mxu0 0
  %174 = vmatprep.subr.bf16.mxu0 0
  %175 = vmatpush1.bf16.msra.mxu0 0
  %176 = vmatprep.subr.bf16.mxu0 0
  %177 = vmatpush1.bf16.msra.mxu0 0
  %178 = vmatprep.subr.bf16.mxu0 0
  %179 = vmatpush1.bf16.msra.mxu0 0
  %180 = vmatprep.subr.bf16.mxu0 0
  %181 = vmatpush1.bf16.msra.mxu0 0
  %182 = vmatprep.subr.bf16.mxu0 0
  %183 = vmatpush1.bf16.msra.mxu0 0
  %184 = vmatprep.subr.bf16.mxu0 0
  %185 = vmatpush1.bf16.msra.mxu0 0
  %186 = vmatprep.subr.bf16.mxu0 0
  %187 = vmatpush1.bf16.msra.mxu0 0
  %188 = vmatprep.subr.bf16.mxu0 0
  %189 = vmatpush1.bf16.msra.mxu0 0
  %190 = vmatprep.mubr.bf16.mxu0 0
  %191 = vmatmul.mubr.bf16.gmra.mrb[0].mxu0 %v156
  %v192 = vpop.f32.mrb[0].mxu0
  %v193 = vadd.f32 %v140, %v192
  %v194 = vpop.f32.mrb[0].mxu0
  %v195 = vpop.f32.mrb[0].mxu0
  %v196 = vpop.f32.mrb[0].mxu0
  %197 = vdwg.mxu0
  %v198 = vadd.f32 %v69, %v193
  %v199 = vpack.c.bf16 %v198, %v198
  %v200 = vld [vmem:[%s7] sm:$0xf]
  %v201 = vld [vmem:[%s7 + $0x4] sm:$0xf]
  %v202 = vld [vmem:[%s8] sm:$0x1]
  %v204 = vlaneseq
  %v205 = vshrl.u32 %v204, 7
  %v206 = vsub.s32 0, %v205
  %v207 = vrot.slane %v202, %v206
  %v211 = vunpack.c.l.b16 %v200
  %v212 = vunpack.c.l.b16 %v201
  %v213 = vpack.c.b16 %v212, %v211
  %v216 = vsel %vm36, %v199, 0
  %218 = vmatprep.subr.bf16.mxu0 0
  %219 = vmatpush1.bf16.msra.mxu0 %v213
  %220 = vmatprep.subr.bf16.mxu0 0
  %221 = vmatpush1.bf16.msra.mxu0 0
  %222 = vmatprep.subr.bf16.mxu0 0
  %223 = vmatpush1.bf16.msra.mxu0 0
  %224 = vmatprep.subr.bf16.mxu0 0
  %225 = vmatpush1.bf16.msra.mxu0 0
  %226 = vmatprep.subr.bf16.mxu0 0
  %227 = vmatpush1.bf16.msra.mxu0 0
  %228 = vmatprep.subr.bf16.mxu0 0
  %229 = vmatpush1.bf16.msra.mxu0 0
  %230 = vmatprep.subr.bf16.mxu0 0
  %231 = vmatpush1.bf16.msra.mxu0 0
  %232 = vmatprep.subr.bf16.mxu0 0
  %233 = vmatpush1.bf16.msra.mxu0 0
  %234 = vmatprep.subr.bf16.mxu0 0
  %235 = vmatpush1.bf16.msra.mxu0 0
  %236 = vmatprep.subr.bf16.mxu0 0
  %237 = vmatpush1.bf16.msra.mxu0 0
  %238 = vmatprep.subr.bf16.mxu0 0
  %239 = vmatpush1.bf16.msra.mxu0 0
  %240 = vmatprep.subr.bf16.mxu0 0
  %241 = vmatpush1.bf16.msra.mxu0 0
  %242 = vmatprep.subr.bf16.mxu0 0
  %243 = vmatpush1.bf16.msra.mxu0 0
  %244 = vmatprep.subr.bf16.mxu0 0
  %245 = vmatpush1.bf16.msra.mxu0 0
  %246 = vmatprep.subr.bf16.mxu0 0
  %247 = vmatpush1.bf16.msra.mxu0 0
  %248 = vmatprep.subr.bf16.mxu0 0
  %249 = vmatpush1.bf16.msra.mxu0 0
  %250 = vmatprep.mubr.bf16.mxu0 0
  %251 = vmatmul.mubr.bf16.gmra.mrb[0].mxu0 %v216
  %v252 = vpop.f32.mrb[0].mxu0
  %v253 = vadd.f32 %v207, %v252
  %v254 = vpop.f32.mrb[0].mxu0
  %v255 = vpop.f32.mrb[0].mxu0
  %v256 = vpop.f32.mrb[0].mxu0
  %257 = vdwg.mxu0
  %v258 = vadd.f32 %v34, 1e-10
  %v259 = vrcp.pop %v258
  %v260 = vsub.f32 %v253, %v67
  %262 = vset.pattern.permute.xlu0 0
  %263 = vperm.xlu0 %262, %v259
  %v264 = vpop.permute.xlu0 %263
  %v266 = vmul.f32 %v260, %v264
  %v267 = vmul.f32 %v266, %v55
  %v268 = vadd.f32 %v267, %v41
  %vm269 = vcmask 64512
  %270 = vst.msk [vmem:[%s9] sm:$0xff] %vm269, %v268
  // Predicated region
  $region38: #{transformer_rmlp_forward.8} parent=0 // pred_check
    _
  $region39: #{transformer_rmlp_forward.8} parent=0 // pred_check_branch
    %272 = sbr.rel (0) target = $region41
  $region40: #{transformer_rmlp_forward.8} parent=0 // pred_region
    _
  $region41: #{transformer_rmlp_forward.8} parent=0 // pred_fallthru
    _
  // Predicated region
  $region42: #{transformer_rmlp_forward.8} parent=0 // pred_check
    _
  $region43: #{transformer_rmlp_forward.8} parent=0 // pred_check_branch
    %274 = sbr.rel (0) target = $region45
  $region44: #{transformer_rmlp_forward.8} parent=0 // pred_region
    _
  $region45: #{transformer_rmlp_forward.8} parent=0 // pred_fallthru
    _

// kernel: transformer_rmlp_forward.9
$region0: #{transformer_rmlp_forward.9}
  #allocation0 [shape = 'u32[]', space=smem, size = 0x4, offset = 0x4, fixed_abs, tag = 'smem constant byte address 0x4 - core index']
  #allocation1 [shape = 'u32[144,128]{1,0:T(1,128)}', space=vmem, size = 0x12000, scoped, tag = 'internal scratch']
  %s0 = inlined_call_operand.vmem [shape: f32[8,8], index: 0, kind: input, shape index: {}]
  %s1 = inlined_call_operand.vmem [shape: f32[8,8], index: 1, kind: input, shape index: {}]
  %s2 = inlined_call_operand.vmem [shape: bf16[8,8], index: 2, kind: input, shape index: {}]
  %s3 = inlined_call_operand.vmem [shape: bf16[8,8], index: 3, kind: input, shape index: {}]
  %s4 = inlined_call_operand.vmem [shape: f32[1,8], index: 4, kind: input, shape index: {}]
  %s5 = inlined_call_operand.hbm [shape: f32[8,8], index: 5, kind: output, shape index: {}]
  %s6 = sld [smem:[#allocation0]]
  $region30: #{transformer_rmlp_forward.9} parent=0
    _
  %s8 = ssub.s32 1, %s6
  %s9 = scalar_select 0, %s8, %s6
  $region1: #{transformer_rmlp_forward.9} parent=0
    #allocation2 [shape = 'u8[4096]{0}', space=vmem, size = 0x1000, scoped, tag = 'output window, operand 0, single buffered']
    #allocation3 [shape = 's32[1]{0}', space=sflag, size = 0x4, scoped, tag = 'scoped memory for transformer_rmlp_forward.9']
    %10 = vsyncpa [#allocation3], 0
    // Predicated region
    $region2: #{transformer_rmlp_forward.9} parent=1 // pred_check
      _
    $region3: #{transformer_rmlp_forward.9} parent=1 // pred_check_branch
      %12 = sbr.rel (0) target = $region5
    $region4: #{transformer_rmlp_forward.9} parent=1 // pred_region
      _
    $region5: #{transformer_rmlp_forward.9} parent=1 // pred_fallthru
      _
    // Predicated region
    $region6: #{transformer_rmlp_forward.9} parent=1 // pred_check
      _
    $region7: #{transformer_rmlp_forward.9} parent=1 // pred_check_branch
      %14 = sbr.rel (0) target = $region9
    $region8: #{transformer_rmlp_forward.9} parent=1 // pred_region
      _
    $region9: #{transformer_rmlp_forward.9} parent=1 // pred_fallthru
      _
    // Predicated region
    $region10: #{transformer_rmlp_forward.9} parent=1 // pred_check
      _
    $region11: #{transformer_rmlp_forward.9} parent=1 // pred_check_branch
      %16 = sbr.rel (0) target = $region13
    $region12: #{transformer_rmlp_forward.9} parent=1 // pred_region
      _
    $region13: #{transformer_rmlp_forward.9} parent=1 // pred_fallthru
      _
    // Predicated region
    $region14: #{transformer_rmlp_forward.9} parent=1 // pred_check
      _
    $region15: #{transformer_rmlp_forward.9} parent=1 // pred_check_branch
      %18 = sbr.rel (0) target = $region17
    $region16: #{transformer_rmlp_forward.9} parent=1 // pred_region
      _
    $region17: #{transformer_rmlp_forward.9} parent=1 // pred_fallthru
      _
    // Predicated region
    $region18: #{transformer_rmlp_forward.9} parent=1 // pred_check
      _
    $region19: #{transformer_rmlp_forward.9} parent=1 // pred_check_branch
      %20 = sbr.rel (0) target = $region21
    $region20: #{transformer_rmlp_forward.9} parent=1 // pred_region
      _
    $region21: #{transformer_rmlp_forward.9} parent=1 // pred_fallthru
      _
    %v22 = vld [vmem:[%s0] sm:$0xff]
    %v23 = vpack.c.bf16 %v22, %v22
    %v24 = vld [vmem:[%s2] sm:$0xf]
    %v25 = vld [vmem:[%s1] sm:$0xff]
    %v26 = vpack.c.bf16 %v25, %v25
    %v27 = vld [vmem:[%s3] sm:$0xf]
    %vm28 = vcmask 64512
    %v30 = vsel %vm28, %v26, 0
    %vm32 = vcmask 1043456
    %v34 = vsel %vm32, %v27, 0
    %36 = vmatprep.subr.bf16.mxu0 0
    %37 = vmatpush1.bf16.msra.mxu0 %v34
    %38 = vmatprep.subr.bf16.mxu0 0
    %39 = vmatpush1.bf16.msra.mxu0 0
    %40 = vmatprep.subr.bf16.mxu0 0
    %41 = vmatpush1.bf16.msra.mxu0 0
    %42 = vmatprep.subr.bf16.mxu0 0
    %43 = vmatpush1.bf16.msra.mxu0 0
    %44 = vmatprep.subr.bf16.mxu0 0
    %45 = vmatpush1.bf16.msra.mxu0 0
    %46 = vmatprep.subr.bf16.mxu0 0
    %47 = vmatpush1.bf16.msra.mxu0 0
    %48 = vmatprep.subr.bf16.mxu0 0
    %49 = vmatpush1.bf16.msra.mxu0 0
    %50 = vmatprep.subr.bf16.mxu0 0
    %51 = vmatpush1.bf16.msra.mxu0 0
    %52 = vmatprep.subr.bf16.mxu0 0
    %53 = vmatpush1.bf16.msra.mxu0 0
    %54 = vmatprep.subr.bf16.mxu0 0
    %55 = vmatpush1.bf16.msra.mxu0 0
    %56 = vmatprep.subr.bf16.mxu0 0
    %57 = vmatpush1.bf16.msra.mxu0 0
    %58 = vmatprep.subr.bf16.mxu0 0
    %59 = vmatpush1.bf16.msra.mxu0 0
    %60 = vmatprep.subr.bf16.mxu0 0
    %61 = vmatpush1.bf16.msra.mxu0 0
    %62 = vmatprep.subr.bf16.mxu0 0
    %63 = vmatpush1.bf16.msra.mxu0 0
    %64 = vmatprep.subr.bf16.mxu0 0
    %65 = vmatpush1.bf16.msra.mxu0 0
    %66 = vmatprep.subr.bf16.mxu0 0
    %67 = vmatpush1.bf16.msra.mxu0 0
    %68 = vmatprep.mubr.bf16.mxu0 0
    %69 = vmatmul.mubr.bf16.gmra.mrb[0].mxu0 %v30
    %v70 = vpop.f32.mrb[0].mxu0
    %v71 = vadd.f32 0.0, %v70
    %v72 = vpop.f32.mrb[0].mxu0
    %v73 = vpop.f32.mrb[0].mxu0
    %v74 = vpop.f32.mrb[0].mxu0
    %75 = vdwg.mxu0
    %v77 = vsel %vm28, %v23, 0
    %v80 = vsel %vm32, %v24, 0
    %82 = vmatprep.subr.bf16.mxu0 0
    %83 = vmatpush1.bf16.msra.mxu0 %v80
    %84 = vmatprep.subr.bf16.mxu0 0
    %85 = vmatpush1.bf16.msra.mxu0 0
    %86 = vmatprep.subr.bf16.mxu0 0
    %87 = vmatpush1.bf16.msra.mxu0 0
    %88 = vmatprep.subr.bf16.mxu0 0
    %89 = vmatpush1.bf16.msra.mxu0 0
    %90 = vmatprep.subr.bf16.mxu0 0
    %91 = vmatpush1.bf16.msra.mxu0 0
    %92 = vmatprep.subr.bf16.mxu0 0
    %93 = vmatpush1.bf16.msra.mxu0 0
    %94 = vmatprep.subr.bf16.mxu0 0
    %95 = vmatpush1.bf16.msra.mxu0 0
    %96 = vmatprep.subr.bf16.mxu0 0
    %97 = vmatpush1.bf16.msra.mxu0 0
    %98 = vmatprep.subr.bf16.mxu0 0
    %99 = vmatpush1.bf16.msra.mxu0 0
    %100 = vmatprep.subr.bf16.mxu0 0
    %101 = vmatpush1.bf16.msra.mxu0 0
    %102 = vmatprep.subr.bf16.mxu0 0
    %103 = vmatpush1.bf16.msra.mxu0 0
    %104 = vmatprep.subr.bf16.mxu0 0
    %105 = vmatpush1.bf16.msra.mxu0 0
    %106 = vmatprep.subr.bf16.mxu0 0
    %107 = vmatpush1.bf16.msra.mxu0 0
    %108 = vmatprep.subr.bf16.mxu0 0
    %109 = vmatpush1.bf16.msra.mxu0 0
    %110 = vmatprep.subr.bf16.mxu0 0
    %111 = vmatpush1.bf16.msra.mxu0 0
    %112 = vmatprep.subr.bf16.mxu0 0
    %113 = vmatpush1.bf16.msra.mxu0 0
    %114 = vmatprep.mubr.bf16.mxu0 0
    %115 = vmatmul.mubr.bf16.gmra.mrb[0].mxu0 %v77
    %v116 = vpop.f32.mrb[0].mxu0
    %v117 = vadd.f32 %v71, %v116
    %v118 = vpop.f32.mrb[0].mxu0
    %v119 = vpop.f32.mrb[0].mxu0
    %v120 = vpop.f32.mrb[0].mxu0
    %121 = vdwg.mxu0
    %v122 = vld [vmem:[%s4] sm:$0x1]
    %v124 = vlaneseq
    %v125 = vshrl.u32 %v124, 7
    %v126 = vsub.s32 0, %v125
    %v127 = vrot.slane %v122, %v126
    %v129 = vadd.f32 %v117, %v127
    %130 = vst.msk [vmem:[#allocation2] sm:$0xff] %vm28, %v129
    // Predicated region
    $region22: #{transformer_rmlp_forward.9} parent=1 // pred_check
      _
    $region23: #{transformer_rmlp_forward.9} parent=1 // pred_check_branch
      %132 = sbr.rel (0) target = $region25
    $region24: #{transformer_rmlp_forward.9} parent=1 // pred_region
      %s134 = ssub.s32 128, 128
      %135 = vsyncadd [#allocation3], %s134
      %s137 = sshll.u32 [#allocation2], 4
      %s138 = int_to_ptr.vmem [resolvable:$true] %s137
      %140 = dma.vmem_to_hbm [thread:$0]  %s138, 128, %s5, [#allocation3]
    $region25: #{transformer_rmlp_forward.9} parent=1 // pred_fallthru
      _
    // Predicated region
    $region26: #{transformer_rmlp_forward.9} parent=1 // pred_check
      _
    $region27: #{transformer_rmlp_forward.9} parent=1 // pred_check_branch
      %142 = sbr.rel (0) target = $region29
    $region28: #{transformer_rmlp_forward.9} parent=1 // pred_region
      %143 = dma.done [#allocation3], 128
    $region29: #{transformer_rmlp_forward.9} parent=1 // pred_fallthru
      _
    %144 = vsyncpa [#allocation3], 1

// kernel: transformer_rmlp_forward.5
$region0: #{transformer_rmlp_forward.5}
  #allocation0 [shape = 'u32[]', space=smem, size = 0x4, offset = 0x4, fixed_abs, tag = 'smem constant byte address 0x4 - core index']
  #allocation1 [shape = 'u32[144,128]{1,0:T(1,128)}', space=vmem, size = 0x12000, scoped, tag = 'internal scratch']
  %s0 = inlined_call_operand.vmem [shape: f32[40,4], index: 0, kind: input, shape index: {}]
  %s1 = inlined_call_operand.vmem [shape: f32[40,32], index: 1, kind: input, shape index: {}]
  %s2 = inlined_call_operand.vmem [shape: f32[40,40], index: 2, kind: input, shape index: {}]
  %s3 = inlined_call_operand.vmem [shape: bf16[4,32], index: 3, kind: input, shape index: {}]
  %s4 = inlined_call_operand.vmem [shape: f32[1,32], index: 4, kind: input, shape index: {}]
  %s5 = inlined_call_operand.vmem [shape: bf16[2,32,96], index: 5, kind: input, shape index: {}]
  %s6 = inlined_call_operand.vmem [shape: f32[2,1,96], index: 6, kind: input, shape index: {}]
  %s7 = inlined_call_operand.vmem [shape: bf16[2,32,32], index: 7, kind: input, shape index: {}]
  %s8 = inlined_call_operand.vmem [shape: f32[2,1,32], index: 8, kind: input, shape index: {}]
  %s9 = inlined_call_operand.vmem [shape: f32[2,1,32], index: 9, kind: input, shape index: {}]
  %s10 = inlined_call_operand.vmem [shape: f32[2,1,32], index: 10, kind: input, shape index: {}]
  %s11 = inlined_call_operand.vmem [shape: bf16[2,32,128], index: 11, kind: input, shape index: {}]
  %s12 = inlined_call_operand.vmem [shape: f32[2,1,128], index: 12, kind: input, shape index: {}]
  %s13 = inlined_call_operand.vmem [shape: bf16[2,128,32], index: 13, kind: input, shape index: {}]
  %s14 = inlined_call_operand.vmem [shape: f32[2,1,32], index: 14, kind: input, shape index: {}]
  %s15 = inlined_call_operand.vmem [shape: f32[2,1,32], index: 15, kind: input, shape index: {}]
  %s16 = inlined_call_operand.vmem [shape: f32[2,1,32], index: 16, kind: input, shape index: {}]
  %s17 = inlined_call_operand.vmem [shape: bf16[40,32], index: 17, kind: output, shape index: {}]
  %s18 = sld [smem:[#allocation0]]
  $region78: #{transformer_rmlp_forward.5} parent=0
    _
  %s20 = ssub.s32 1, %s18
  %s21 = scalar_select 0, %s20, %s18
  // Predicated region
  $region2: #{transformer_rmlp_forward.5} parent=0 // pred_check
    _
  $region3: #{transformer_rmlp_forward.5} parent=0 // pred_check_branch
    %23 = sbr.rel (0) target = $region5
  $region4: #{transformer_rmlp_forward.5} parent=0 // pred_region
    _
  $region5: #{transformer_rmlp_forward.5} parent=0 // pred_fallthru
    _
  // Predicated region
  $region6: #{transformer_rmlp_forward.5} parent=0 // pred_check
    _
  $region7: #{transformer_rmlp_forward.5} parent=0 // pred_check_branch
    %25 = sbr.rel (0) target = $region9
  $region8: #{transformer_rmlp_forward.5} parent=0 // pred_region
    _
  $region9: #{transformer_rmlp_forward.5} parent=0 // pred_fallthru
    _
  // Predicated region
  $region10: #{transformer_rmlp_forward.5} parent=0 // pred_check
    _
  $region11: #{transformer_rmlp_forward.5} parent=0 // pred_check_branch
    %27 = sbr.rel (0) target = $region13
  $region12: #{transformer_rmlp_forward.5} parent=0 // pred_region
    _
  $region13: #{transformer_rmlp_forward.5} parent=0 // pred_fallthru
    _
  // Predicated region
  $region14: #{transformer_rmlp_forward.5} parent=0 // pred_check
    _
  $region15: #{transformer_rmlp_forward.5} parent=0 // pred_check_branch
    %29 = sbr.rel (0) target = $region17
  $region16: #{transformer_rmlp_forward.5} parent=0 // pred_region
    _
  $region17: #{transformer_rmlp_forward.5} parent=0 // pred_fallthru
    _
  // Predicated region
  $region18: #{transformer_rmlp_forward.5} parent=0 // pred_check
    _
  $region19: #{transformer_rmlp_forward.5} parent=0 // pred_check_branch
    %31 = sbr.rel (0) target = $region21
  $region20: #{transformer_rmlp_forward.5} parent=0 // pred_region
    _
  $region21: #{transformer_rmlp_forward.5} parent=0 // pred_fallthru
    _
  // Predicated region
  $region22: #{transformer_rmlp_forward.5} parent=0 // pred_check
    _
  $region23: #{transformer_rmlp_forward.5} parent=0 // pred_check_branch
    %33 = sbr.rel (0) target = $region25
  $region24: #{transformer_rmlp_forward.5} parent=0 // pred_region
    _
  $region25: #{transformer_rmlp_forward.5} parent=0 // pred_fallthru
    _
  // Predicated region
  $region26: #{transformer_rmlp_forward.5} parent=0 // pred_check
    _
  $region27: #{transformer_rmlp_forward.5} parent=0 // pred_check_branch
    %35 = sbr.rel (0) target = $region29
  $region28: #{transformer_rmlp_forward.5} parent=0 // pred_region
    _
  $region29: #{transformer_rmlp_forward.5} parent=0 // pred_fallthru
    _
  // Predicated region
  $region30: #{transformer_rmlp_forward.5} parent=0 // pred_check
    _
  $region31: #{transformer_rmlp_forward.5} parent=0 // pred_check_branch
    %37 = sbr.rel (0) target = $region33
  $region32: #{transformer_rmlp_forward.5} parent=0 // pred_region
    _
  $region33: #{transformer_rmlp_forward.5} parent=0 // pred_fallthru
    _
  // Predicated region
  $region34: #{transformer_rmlp_forward.5} parent=0 // pred_check
    _
  $region35: #{transformer_rmlp_forward.5} parent=0 // pred_check_branch
    %39 = sbr.rel (0) target = $region37
  $region36: #{transformer_rmlp_forward.5} parent=0 // pred_region
    _
  $region37: #{transformer_rmlp_forward.5} parent=0 // pred_fallthru
    _
  // Predicated region
  $region38: #{transformer_rmlp_forward.5} parent=0 // pred_check
    _
  $region39: #{transformer_rmlp_forward.5} parent=0 // pred_check_branch
    %41 = sbr.rel (0) target = $region41
  $region40: #{transformer_rmlp_forward.5} parent=0 // pred_region
    _
  $region41: #{transformer_rmlp_forward.5} parent=0 // pred_fallthru
    _
  // Predicated region
  $region42: #{transformer_rmlp_forward.5} parent=0 // pred_check
    _
  $region43: #{transformer_rmlp_forward.5} parent=0 // pred_check_branch
    %43 = sbr.rel (0) target = $region45
  $region44: #{transformer_rmlp_forward.5} parent=0 // pred_region
    _
  $region45: #{transformer_rmlp_forward.5} parent=0 // pred_fallthru
    _
  // Predicated region
  $region46: #{transformer_rmlp_forward.5} parent=0 // pred_check
    _
  $region47: #{transformer_rmlp_forward.5} parent=0 // pred_check_branch
    %45 = sbr.rel (0) target = $region49
  $region48: #{transformer_rmlp_forward.5} parent=0 // pred_region
    _
  $region49: #{transformer_rmlp_forward.5} parent=0 // pred_fallthru
    _
  // Predicated region
  $region50: #{transformer_rmlp_forward.5} parent=0 // pred_check
    _
  $region51: #{transformer_rmlp_forward.5} parent=0 // pred_check_branch
    %47 = sbr.rel (0) target = $region53
  $region52: #{transformer_rmlp_forward.5} parent=0 // pred_region
    _
  $region53: #{transformer_rmlp_forward.5} parent=0 // pred_fallthru
    _
  // Predicated region
  $region54: #{transformer_rmlp_forward.5} parent=0 // pred_check
    _
  $region55: #{transformer_rmlp_forward.5} parent=0 // pred_check_branch
    %49 = sbr.rel (0) target = $region57
  $region56: #{transformer_rmlp_forward.5} parent=0 // pred_region
    _
  $region57: #{transformer_rmlp_forward.5} parent=0 // pred_fallthru
    _
  // Predicated region
  $region58: #{transformer_rmlp_forward.5} parent=0 // pred_check
    _
  $region59: #{transformer_rmlp_forward.5} parent=0 // pred_check_branch
    %51 = sbr.rel (0) target = $region61
  $region60: #{transformer_rmlp_forward.5} parent=0 // pred_region
    _
  $region61: #{transformer_rmlp_forward.5} parent=0 // pred_fallthru
    _
  // Predicated region
  $region62: #{transformer_rmlp_forward.5} parent=0 // pred_check
    _
  $region63: #{transformer_rmlp_forward.5} parent=0 // pred_check_branch
    %53 = sbr.rel (0) target = $region65
  $region64: #{transformer_rmlp_forward.5} parent=0 // pred_region
    _
  $region65: #{transformer_rmlp_forward.5} parent=0 // pred_fallthru
    _
  // Predicated region
  $region66: #{transformer_rmlp_forward.5} parent=0 // pred_check
    _
  $region67: #{transformer_rmlp_forward.5} parent=0 // pred_check_branch
    %55 = sbr.rel (0) target = $region69
  $region68: #{transformer_rmlp_forward.5} parent=0 // pred_region
    _
  $region69: #{transformer_rmlp_forward.5} parent=0 // pred_fallthru
    _
  %v57 = vld [vmem:[%s2] sm:$0xff]
  %v58 = vld [vmem:[%s2 + $0x8] sm:$0xff]
  %v59 = vld [vmem:[%s2 + $0x10] sm:$0xff]
  %v60 = vld [vmem:[%s2 + $0x18] sm:$0xff]
  %v61 = vld [vmem:[%s2 + $0x20] sm:$0xff]
  %v62 = vld [vmem:[%s0] sm:$0xff]
  %v63 = vld [vmem:[%s0 + $0x8] sm:$0xff]
  %v64 = vld [vmem:[%s0 + $0x10] sm:$0xff]
  %v65 = vld [vmem:[%s0 + $0x18] sm:$0xff]
  %v66 = vld [vmem:[%s0 + $0x20] sm:$0xff]
  %v67 = vpack.c.bf16 %v63, %v62
  %v68 = vpack.c.bf16 %v65, %v64
  %v69 = vpack.c.bf16 %v66, %v66
  %v70 = vld [vmem:[%s3] sm:$0x3]
  %v71 = vld [vmem:[%s4] sm:$0x1]
  %v73 = vlaneseq
  %v74 = vshrl.u32 %v73, 7
  %v75 = vsub.s32 0, %v74
  %v76 = vrot.slane %v71, %v75
  %vm78 = vcmask 31744
  %v80 = vsel %vm78, %v67, 0
  %v83 = vsel %vm78, %v68, 0
  %v86 = vsel %vm78, %v69, 0
  %vm88 = vcmask 1041408
  %v90 = vsel %vm88, %v70, 0
  %92 = vmatprep.subr.bf16.mxu0 0
  %93 = vmatpush1.bf16.msra.mxu0 %v90
  %94 = vmatprep.subr.bf16.mxu0 0
  %95 = vmatpush1.bf16.msra.mxu0 0
  %96 = vmatprep.subr.bf16.mxu0 0
  %97 = vmatpush1.bf16.msra.mxu0 0
  %98 = vmatprep.subr.bf16.mxu0 0
  %99 = vmatpush1.bf16.msra.mxu0 0
  %100 = vmatprep.subr.bf16.mxu0 0
  %101 = vmatpush1.bf16.msra.mxu0 0
  %102 = vmatprep.subr.bf16.mxu0 0
  %103 = vmatpush1.bf16.msra.mxu0 0
  %104 = vmatprep.subr.bf16.mxu0 0
  %105 = vmatpush1.bf16.msra.mxu0 0
  %106 = vmatprep.subr.bf16.mxu0 0
  %107 = vmatpush1.bf16.msra.mxu0 0
  %108 = vmatprep.subr.bf16.mxu0 0
  %109 = vmatpush1.bf16.msra.mxu0 0
  %110 = vmatprep.subr.bf16.mxu0 0
  %111 = vmatpush1.bf16.msra.mxu0 0
  %112 = vmatprep.subr.bf16.mxu0 0
  %113 = vmatpush1.bf16.msra.mxu0 0
  %114 = vmatprep.subr.bf16.mxu0 0
  %115 = vmatpush1.bf16.msra.mxu0 0
  %116 = vmatprep.subr.bf16.mxu0 0
  %117 = vmatpush1.bf16.msra.mxu0 0
  %118 = vmatprep.subr.bf16.mxu0 0
  %119 = vmatpush1.bf16.msra.mxu0 0
  %120 = vmatprep.subr.bf16.mxu0 0
  %121 = vmatpush1.bf16.msra.mxu0 0
  %122 = vmatprep.subr.bf16.mxu0 0
  %123 = vmatpush1.bf16.msra.mxu0 0
  %124 = vmatprep.mubr.bf16.mxu0 0
  %125 = vmatmul.mubr.bf16.gmra.mrb[0].mxu0 %v80
  %v126 = vpop.f32.mrb[0].mxu0
  %v127 = vadd.f32 %v76, %v126
  %v128 = vpop.f32.mrb[0].mxu0
  %v129 = vpop.f32.mrb[0].mxu0
  %v130 = vadd.f32 %v76, %v129
  %v131 = vpop.f32.mrb[0].mxu0
  %132 = vmatprep.mubr.bf16.mxu0 0
  %133 = vmatmul.mubr.bf16.gmra.mrb[0].mxu0 %v83
  %v134 = vpop.f32.mrb[0].mxu0
  %v135 = vadd.f32 %v76, %v134
  %v136 = vpop.f32.mrb[0].mxu0
  %v137 = vpop.f32.mrb[0].mxu0
  %v138 = vadd.f32 %v76, %v137
  %v139 = vpop.f32.mrb[0].mxu0
  %140 = vmatprep.mubr.bf16.mxu0 0
  %141 = vmatmul.mubr.bf16.gmra.mrb[0].mxu0 %v86
  %v142 = vpop.f32.mrb[0].mxu0
  %v143 = vadd.f32 %v76, %v142
  %v144 = vpop.f32.mrb[0].mxu0
  %v145 = vpop.f32.mrb[0].mxu0
  %v146 = vpop.f32.mrb[0].mxu0
  %147 = vdwg.mxu0
  %v148 = vld [vmem:[%s1] sm:$0xff]
  %v149 = vld [vmem:[%s1 + $0x8] sm:$0xff]
  %v150 = vld [vmem:[%s1 + $0x10] sm:$0xff]
  %v151 = vld [vmem:[%s1 + $0x18] sm:$0xff]
  %v152 = vld [vmem:[%s1 + $0x20] sm:$0xff]
  %v153 = vadd.f32 %v127, %v148
  %v154 = vadd.f32 %v130, %v149
  %v155 = vadd.f32 %v135, %v150
  %v156 = vadd.f32 %v138, %v151
  %v157 = vadd.f32 %v143, %v152
  %v158 = vpack.c.bf16 %v154, %v153
  %v159 = vpack.c.bf16 %v156, %v155
  %v160 = vpack.c.bf16 %v157, %v157
  %v161 = vld [vmem:[%s5] sm:$0xf]
  %v162 = vld [vmem:[%s5 + $0x4] sm:$0xf]
  %v163 = vld [vmem:[%s5 + $0x8] sm:$0xf]
  %v164 = vld [vmem:[%s5 + $0xc] sm:$0xf]
  %v165 = vld [vmem:[%s6] sm:$0x1]
  %v167 = vlaneseq
  %v168 = vshrl.u32 %v167, 7
  %v169 = vsub.s32 0, %v168
  %v170 = vrot.slane %v165, %v169
  %v176 = vunpack.c.l.b16 %v161
  %v177 = vunpack.c.l.b16 %v162
  %v178 = vunpack.c.l.b16 %v163
  %v179 = vunpack.c.l.b16 %v164
  %v180 = vpack.c.b16 %v177, %v176
  %v181 = vpack.c.b16 %v179, %v178
  %vm184 = vcmask 261120
  %v186 = vsel %vm184, %v158, 0
  %v189 = vsel %vm184, %v159, 0
  %v192 = vsel %vm184, %v160, 0
  %194 = vmatprep.subr.bf16.mxu0 0
  %195 = vmatpush1.bf16.msra.mxu0 %v180
  %196 = vmatprep.subr.bf16.mxu0 0
  %197 = vmatpush1.bf16.msra.mxu0 %v181
  %198 = vmatprep.subr.bf16.mxu0 0
  %199 = vmatpush1.bf16.msra.mxu0 0
  %200 = vmatprep.subr.bf16.mxu0 0
  %201 = vmatpush1.bf16.msra.mxu0 0
  %202 = vmatprep.subr.bf16.mxu0 0
  %203 = vmatpush1.bf16.msra.mxu0 0
  %204 = vmatprep.subr.bf16.mxu0 0
  %205 = vmatpush1.bf16.msra.mxu0 0
  %206 = vmatprep.subr.bf16.mxu0 0
  %207 = vmatpush1.bf16.msra.mxu0 0
  %208 = vmatprep.subr.bf16.mxu0 0
  %209 = vmatpush1.bf16.msra.mxu0 0
  %210 = vmatprep.subr.bf16.mxu0 0
  %211 = vmatpush1.bf16.msra.mxu0 0
  %212 = vmatprep.subr.bf16.mxu0 0
  %213 = vmatpush1.bf16.msra.mxu0 0
  %214 = vmatprep.subr.bf16.mxu0 0
  %215 = vmatpush1.bf16.msra.mxu0 0
  %216 = vmatprep.subr.bf16.mxu0 0
  %217 = vmatpush1.bf16.msra.mxu0 0
  %218 = vmatprep.subr.bf16.mxu0 0
  %219 = vmatpush1.bf16.msra.mxu0 0
  %220 = vmatprep.subr.bf16.mxu0 0
  %221 = vmatpush1.bf16.msra.mxu0 0
  %222 = vmatprep.subr.bf16.mxu0 0
  %223 = vmatpush1.bf16.msra.mxu0 0
  %224 = vmatprep.subr.bf16.mxu0 0
  %225 = vmatpush1.bf16.msra.mxu0 0
  %226 = vmatprep.mubr.bf16.mxu0 0
  %227 = vmatmul.mubr.bf16.gmra.mrb[0].mxu0 %v186
  %v228 = vpop.f32.mrb[0].mxu0
  %v229 = vadd.f32 %v170, %v228
  %v230 = vpop.f32.mrb[0].mxu0
  %v231 = vpop.f32.mrb[0].mxu0
  %v232 = vadd.f32 %v170, %v231
  %v233 = vpop.f32.mrb[0].mxu0
  %234 = vmatprep.mubr.bf16.mxu0 0
  %235 = vmatmul.mubr.bf16.gmra.mrb[0].mxu0 %v189
  %v236 = vpop.f32.mrb[0].mxu0
  %v237 = vadd.f32 %v170, %v236
  %v238 = vpop.f32.mrb[0].mxu0
  %v239 = vpop.f32.mrb[0].mxu0
  %v240 = vadd.f32 %v170, %v239
  %v241 = vpop.f32.mrb[0].mxu0
  %242 = vmatprep.mubr.bf16.mxu0 0
  %243 = vmatmul.mubr.bf16.gmra.mrb[0].mxu0 %v192
  %v244 = vpop.f32.mrb[0].mxu0
  %v245 = vadd.f32 %v170, %v244
  %v246 = vpop.f32.mrb[0].mxu0
  %v247 = vpop.f32.mrb[0].mxu0
  %v248 = vpop.f32.mrb[0].mxu0
  %249 = vdwg.mxu0
  %v250 = vpack.c.bf16 %v232, %v229
  %v251 = vpack.c.bf16 %v240, %v237
  %v252 = vpack.c.bf16 %v245, %v245
  %256 = vrot.lane.b32.xlu0 %v250, 96
  %v257 = vpop.permute.xlu0 %256
  %258 = vrot.lane.b32.xlu0 %v251, 96
  %v259 = vpop.permute.xlu0 %258
  %260 = vrot.lane.b32.xlu0 %v252, 96
  %v261 = vpop.permute.xlu0 %260
  %vm262 = vcmask 64512
  %v264 = vsel %vm262, %v250, 0
  %v267 = vsel %vm262, %v251, 0
  %v270 = vsel %vm262, %v252, 0
  %v273 = vsel %vm262, %v257, 0
  %v276 = vsel %vm262, %v259, 0
  %v279 = vsel %vm262, %v261, 0
  %281 = vmatprep.subr.bf16.mxu0 0
  %282 = vmatpush1.bf16.xpose.msra.mxu0 %v273
  %283 = vmatprep.subr.bf16.mxu0 0
  %284 = vmatpush1.bf16.xpose.msra.mxu0 %v276
  %285 = vmatprep.subr.bf16.mxu0 0
  %286 = vmatpush1.bf16.xpose.msra.mxu0 %v279
  %287 = vmatprep.subr.bf16.mxu0 0
  %288 = vmatpush1.bf16.xpose.msra.mxu0 0
  %289 = vmatprep.subr.bf16.mxu0 0
  %290 = vmatpush1.bf16.xpose.msra.mxu0 0
  %291 = vmatprep.subr.bf16.mxu0 0
  %292 = vmatpush1.bf16.xpose.msra.mxu0 0
  %293 = vmatprep.subr.bf16.mxu0 0
  %294 = vmatpush1.bf16.xpose.msra.mxu0 0
  %295 = vmatprep.subr.bf16.mxu0 0
  %296 = vmatpush1.bf16.xpose.msra.mxu0 0
  %297 = vmatprep.subr.bf16.mxu0 0
  %298 = vmatpush1.bf16.xpose.msra.mxu0 0
  %299 = vmatprep.subr.bf16.mxu0 0
  %300 = vmatpush1.bf16.xpose.msra.mxu0 0
  %301 = vmatprep.subr.bf16.mxu0 0
  %302 = vmatpush1.bf16.xpose.msra.mxu0 0
  %303 = vmatprep.subr.bf16.mxu0 0
  %304 = vmatpush1.bf16.xpose.msra.mxu0 0
  %305 = vmatprep.subr.bf16.mxu0 0
  %306 = vmatpush1.bf16.xpose.msra.mxu0 0
  %307 = vmatprep.subr.bf16.mxu0 0
  %308 = vmatpush1.bf16.xpose.msra.mxu0 0
  %309 = vmatprep.subr.bf16.mxu0 0
  %310 = vmatpush1.bf16.xpose.msra.mxu0 0
  %311 = vmatprep.subr.bf16.mxu0 0
  %312 = vmatpush1.bf16.xpose.msra.mxu0 0
  %313 = vmatprep.mubr.bf16.mxu0 0
  %314 = vmatmul.mubr.bf16.gmra.mrb[0].mxu0 %v264
  %v315 = vpop.f32.mrb[0].mxu0
  %v316 = vadd.f32 0.0, %v315
  %v317 = vpop.f32.mrb[0].mxu0
  %v318 = vpop.f32.mrb[0].mxu0
  %v319 = vadd.f32 0.0, %v318
  %v320 = vpop.f32.mrb[0].mxu0
  %321 = vmatprep.mubr.bf16.mxu0 0
  %322 = vmatmul.mubr.bf16.gmra.mrb[0].mxu0 %v267
  %v323 = vpop.f32.mrb[0].mxu0
  %v324 = vadd.f32 0.0, %v323
  %v325 = vpop.f32.mrb[0].mxu0
  %v326 = vpop.f32.mrb[0].mxu0
  %v327 = vadd.f32 0.0, %v326
  %v328 = vpop.f32.mrb[0].mxu0
  %329 = vmatprep.mubr.bf16.mxu0 0
  %330 = vmatmul.mubr.bf16.gmra.mrb[0].mxu0 %v270
  %v331 = vpop.f32.mrb[0].mxu0
  %v332 = vadd.f32 0.0, %v331
  %v333 = vpop.f32.mrb[0].mxu0
  %v334 = vpop.f32.mrb[0].mxu0
  %v335 = vpop.f32.mrb[0].mxu0
  %336 = vdwg.mxu0
  %v337 = vmul.f32 %v316, 0.35355338
  %v338 = vmul.f32 %v319, 0.35355338
  %v339 = vmul.f32 %v324, 0.35355338
  %v340 = vmul.f32 %v327, 0.35355338
  %v341 = vmul.f32 %v332, 0.35355338
  %v342 = vadd.f32 %v337, %v57
  %v343 = vadd.f32 %v338, %v58
  %v344 = vadd.f32 %v339, %v59
  %v345 = vadd.f32 %v340, %v60
  %v346 = vadd.f32 %v341, %v61
  %vm347 = vcmask 326656
  %v348 = vsel %vm347, %v342, -inf
  %349 = vmax.xlane.f32.xlu0 %v348
  %v350 = vpop.xlane.xlu0 %349
  %v351 = vsel %vm347, %v343, -inf
  %352 = vmax.xlane.f32.xlu0 %v351
  %v353 = vpop.xlane.xlu0 %352
  %v354 = vsel %vm347, %v344, -inf
  %355 = vmax.xlane.f32.xlu0 %v354
  %v356 = vpop.xlane.xlu0 %355
  %v357 = vsel %vm347, %v345, -inf
  %358 = vmax.xlane.f32.xlu0 %v357
  %v359 = vpop.xlane.xlu0 %358
  %v360 = vsel %vm347, %v346, -inf
  %361 = vmax.xlane.f32.xlu0 %v360
  %v362 = vpop.xlane.xlu0 %361
  %v363 = vsub.f32 %v342, %v350
  %v364 = vsub.f32 %v343, %v353
  %v365 = vsub.f32 %v344, %v356
  %v366 = vsub.f32 %v345, %v359
  %v367 = vsub.f32 %v346, %v362
  %v368 = vmul.f32 %v363, 1.442695
  %v369 = vpow.pop %v368
  %v370 = vmul.f32 %v364, 1.442695
  %v371 = vpow.pop %v370
  %v372 = vmul.f32 %v365, 1.442695
  %v373 = vpow.pop %v372
  %v374 = vmul.f32 %v366, 1.442695
  %v375 = vpow.pop %v374
  %v376 = vmul.f32 %v367, 1.442695
  %v377 = vpow.pop %v376
  %v378 = vsel %vm347, %v369, 0.0
  %379 = vadd.xlane.f32.xlu0 %v378
  %v380 = vpop.xlane.xlu0 %379
  %v381 = vsel %vm347, %v371, 0.0
  %382 = vadd.xlane.f32.xlu0 %v381
  %v383 = vpop.xlane.xlu0 %382
  %v384 = vsel %vm347, %v373, 0.0
  %385 = vadd.xlane.f32.xlu0 %v384
  %v386 = vpop.xlane.xlu0 %385
  %v387 = vsel %vm347, %v375, 0.0
  %388 = vadd.xlane.f32.xlu0 %v387
  %v389 = vpop.xlane.xlu0 %388
  %v390 = vsel %vm347, %v377, 0.0
  %391 = vadd.xlane.f32.xlu0 %v390
  %v392 = vpop.xlane.xlu0 %391
  %v393 = vrcp.pop %v380
  %v394 = vrcp.pop %v383
  %v395 = vrcp.pop %v386
  %v396 = vrcp.pop %v389
  %v397 = vrcp.pop %v392
  %v398 = vmul.f32 %v369, %v393
  %v399 = vmul.f32 %v371, %v394
  %v400 = vmul.f32 %v373, %v395
  %v401 = vmul.f32 %v375, %v396
  %v402 = vmul.f32 %v377, %v397
  %v403 = vpack.c.bf16 %v399, %v398
  %v404 = vpack.c.bf16 %v401, %v400
  %v405 = vpack.c.bf16 %v402, %v402
  %406 = vrot.lane.b32.xlu0 %v250, 64
  %v407 = vpop.permute.xlu0 %406
  %408 = vrot.lane.b32.xlu0 %v251, 64
  %v409 = vpop.permute.xlu0 %408
  %410 = vrot.lane.b32.xlu0 %v252, 64
  %v411 = vpop.permute.xlu0 %410
  %v415 = vsel %vm347, %v403, 0
  %v418 = vsel %vm347, %v404, 0
  %v421 = vsel %vm347, %v405, 0
  %vm423 = vcmask 1043456
  %v425 = vsel %vm423, %v411, 0
  %427 = vmatprep.subr.bf16.mxu0 0
  %428 = vmatpush1.bf16.msra.mxu0 %v407
  %429 = vmatprep.subr.bf16.mxu0 0
  %430 = vmatpush1.bf16.msra.mxu0 %v409
  %431 = vmatprep.subr.bf16.mxu0 0
  %432 = vmatpush1.bf16.msra.mxu0 %v425
  %433 = vmatprep.subr.bf16.mxu0 0
  %434 = vmatpush1.bf16.msra.mxu0 0
  %435 = vmatprep.subr.bf16.mxu0 0
  %436 = vmatpush1.bf16.msra.mxu0 0
  %437 = vmatprep.subr.bf16.mxu0 0
  %438 = vmatpush1.bf16.msra.mxu0 0
  %439 = vmatprep.subr.bf16.mxu0 0
  %440 = vmatpush1.bf16.msra.mxu0 0
  %441 = vmatprep.subr.bf16.mxu0 0
  %442 = vmatpush1.bf16.msra.mxu0 0
  %443 = vmatprep.subr.bf16.mxu0 0
  %444 = vmatpush1.bf16.msra.mxu0 0
  %445 = vmatprep.subr.bf16.mxu0 0
  %446 = vmatpush1.bf16.msra.mxu0 0
  %447 = vmatprep.subr.bf16.mxu0 0
  %448 = vmatpush1.bf16.msra.mxu0 0
  %449 = vmatprep.subr.bf16.mxu0 0
  %450 = vmatpush1.bf16.msra.mxu0 0
  %451 = vmatprep.subr.bf16.mxu0 0
  %452 = vmatpush1.bf16.msra.mxu0 0
  %453 = vmatprep.subr.bf16.mxu0 0
  %454 = vmatpush1.bf16.msra.mxu0 0
  %455 = vmatprep.subr.bf16.mxu0 0
  %456 = vmatpush1.bf16.msra.mxu0 0
  %457 = vmatprep.subr.bf16.mxu0 0
  %458 = vmatpush1.bf16.msra.mxu0 0
  %459 = vmatprep.mubr.bf16.mxu0 0
  %460 = vmatmul.mubr.bf16.gmra.mrb[0].mxu0 %v415
  %v461 = vpop.f32.mrb[0].mxu0
  %v462 = vadd.f32 0.0, %v461
  %v463 = vpop.f32.mrb[0].mxu0
  %v464 = vpop.f32.mrb[0].mxu0
  %v465 = vadd.f32 0.0, %v464
  %v466 = vpop.f32.mrb[0].mxu0
  %467 = vmatprep.mubr.bf16.mxu0 0
  %468 = vmatmul.mubr.bf16.gmra.mrb[0].mxu0 %v418
  %v469 = vpop.f32.mrb[0].mxu0
  %v470 = vadd.f32 0.0, %v469
  %v471 = vpop.f32.mrb[0].mxu0
  %v472 = vpop.f32.mrb[0].mxu0
  %v473 = vadd.f32 0.0, %v472
  %v474 = vpop.f32.mrb[0].mxu0
  %475 = vmatprep.mubr.bf16.mxu0 0
  %476 = vmatmul.mubr.bf16.gmra.mrb[0].mxu0 %v421
  %v477 = vpop.f32.mrb[0].mxu0
  %v478 = vadd.f32 0.0, %v477
  %v479 = vpop.f32.mrb[0].mxu0
  %v480 = vpop.f32.mrb[0].mxu0
  %v481 = vpop.f32.mrb[0].mxu0
  %482 = vdwg.mxu0
  %483 = vrot.lane.b32.xlu0 %v250, 120
  %v484 = vpop.permute.xlu0 %483
  %485 = vrot.lane.b32.xlu0 %v251, 120
  %v486 = vpop.permute.xlu0 %485
  %487 = vrot.lane.b32.xlu0 %v252, 120
  %v488 = vpop.permute.xlu0 %487
  %489 = vrot.lane.b32.xlu0 %v250, 88
  %v490 = vpop.permute.xlu0 %489
  %491 = vrot.lane.b32.xlu0 %v251, 88
  %v492 = vpop.permute.xlu0 %491
  %493 = vrot.lane.b32.xlu0 %v252, 88
  %v494 = vpop.permute.xlu0 %493
  %v496 = vsel %vm262, %v484, 0
  %v499 = vsel %vm262, %v486, 0
  %v502 = vsel %vm262, %v488, 0
  %v505 = vsel %vm262, %v490, 0
  %v508 = vsel %vm262, %v492, 0
  %v511 = vsel %vm262, %v494, 0
  %513 = vmatprep.subr.bf16.mxu0 0
  %514 = vmatpush1.bf16.xpose.msra.mxu0 %v505
  %515 = vmatprep.subr.bf16.mxu0 0
  %516 = vmatpush1.bf16.xpose.msra.mxu0 %v508
  %517 = vmatprep.subr.bf16.mxu0 0
  %518 = vmatpush1.bf16.xpose.msra.mxu0 %v511
  %519 = vmatprep.subr.bf16.mxu0 0
  %520 = vmatpush1.bf16.xpose.msra.mxu0 0
  %521 = vmatprep.subr.bf16.mxu0 0
  %522 = vmatpush1.bf16.xpose.msra.mxu0 0
  %523 = vmatprep.subr.bf16.mxu0 0
  %524 = vmatpush1.bf16.xpose.msra.mxu0 0
  %525 = vmatprep.subr.bf16.mxu0 0
  %526 = vmatpush1.bf16.xpose.msra.mxu0 0
  %527 = vmatprep.subr.bf16.mxu0 0
  %528 = vmatpush1.bf16.xpose.msra.mxu0 0
  %529 = vmatprep.subr.bf16.mxu0 0
  %530 = vmatpush1.bf16.xpose.msra.mxu0 0
  %531 = vmatprep.subr.bf16.mxu0 0
  %532 = vmatpush1.bf16.xpose.msra.mxu0 0
  %533 = vmatprep.subr.bf16.mxu0 0
  %534 = vmatpush1.bf16.xpose.msra.mxu0 0
  %535 = vmatprep.subr.bf16.mxu0 0
  %536 = vmatpush1.bf16.xpose.msra.mxu0 0
  %537 = vmatprep.subr.bf16.mxu0 0
  %538 = vmatpush1.bf16.xpose.msra.mxu0 0
  %539 = vmatprep.subr.bf16.mxu0 0
  %540 = vmatpush1.bf16.xpose.msra.mxu0 0
  %541 = vmatprep.subr.bf16.mxu0 0
  %542 = vmatpush1.bf16.xpose.msra.mxu0 0
  %543 = vmatprep.subr.bf16.mxu0 0
  %544 = vmatpush1.bf16.xpose.msra.mxu0 0
  %545 = vmatprep.mubr.bf16.mxu0 0
  %546 = vmatmul.mubr.bf16.gmra.mrb[0].mxu0 %v496
  %v547 = vpop.f32.mrb[0].mxu0
  %v548 = vadd.f32 0.0, %v547
  %v549 = vpop.f32.mrb[0].mxu0
  %v550 = vpop.f32.mrb[0].mxu0
  %v551 = vadd.f32 0.0, %v550
  %v552 = vpop.f32.mrb[0].mxu0
  %553 = vmatprep.mubr.bf16.mxu0 0
  %554 = vmatmul.mubr.bf16.gmra.mrb[0].mxu0 %v499
  %v555 = vpop.f32.mrb[0].mxu0
  %v556 = vadd.f32 0.0, %v555
  %v557 = vpop.f32.mrb[0].mxu0
  %v558 = vpop.f32.mrb[0].mxu0
  %v559 = vadd.f32 0.0, %v558
  %v560 = vpop.f32.mrb[0].mxu0
  %561 = vmatprep.mubr.bf16.mxu0 0
  %562 = vmatmul.mubr.bf16.gmra.mrb[0].mxu0 %v502
  %v563 = vpop.f32.mrb[0].mxu0
  %v564 = vadd.f32 0.0, %v563
  %v565 = vpop.f32.mrb[0].mxu0
  %v566 = vpop.f32.mrb[0].mxu0
  %v567 = vpop.f32.mrb[0].mxu0
  %568 = vdwg.mxu0
  %v569 = vmul.f32 %v548, 0.35355338
  %v570 = vmul.f32 %v551, 0.35355338
  %v571 = vmul.f32 %v556, 0.35355338
  %v572 = vmul.f32 %v559, 0.35355338
  %v573 = vmul.f32 %v564, 0.35355338
  %v574 = vadd.f32 %v569, %v57
  %v575 = vadd.f32 %v570, %v58
  %v576 = vadd.f32 %v571, %v59
  %v577 = vadd.f32 %v572, %v60
  %v578 = vadd.f32 %v573, %v61
  %v579 = vsel %vm347, %v574, -inf
  %580 = vmax.xlane.f32.xlu0 %v579
  %v581 = vpop.xlane.xlu0 %580
  %v582 = vsel %vm347, %v575, -inf
  %583 = vmax.xlane.f32.xlu0 %v582
  %v584 = vpop.xlane.xlu0 %583
  %v585 = vsel %vm347, %v576, -inf
  %586 = vmax.xlane.f32.xlu0 %v585
  %v587 = vpop.xlane.xlu0 %586
  %v588 = vsel %vm347, %v577, -inf
  %589 = vmax.xlane.f32.xlu0 %v588
  %v590 = vpop.xlane.xlu0 %589
  %v591 = vsel %vm347, %v578, -inf
  %592 = vmax.xlane.f32.xlu0 %v591
  %v593 = vpop.xlane.xlu0 %592
  %v594 = vsub.f32 %v574, %v581
  %v595 = vsub.f32 %v575, %v584
  %v596 = vsub.f32 %v576, %v587
  %v597 = vsub.f32 %v577, %v590
  %v598 = vsub.f32 %v578, %v593
  %v599 = vmul.f32 %v594, 1.442695
  %v600 = vpow.pop %v599
  %v601 = vmul.f32 %v595, 1.442695
  %v602 = vpow.pop %v601
  %v603 = vmul.f32 %v596, 1.442695
  %v604 = vpow.pop %v603
  %v605 = vmul.f32 %v597, 1.442695
  %v606 = vpow.pop %v605
  %v607 = vmul.f32 %v598, 1.442695
  %v608 = vpow.pop %v607
  %v609 = vsel %vm347, %v600, 0.0
  %610 = vadd.xlane.f32.xlu0 %v609
  %v611 = vpop.xlane.xlu0 %610
  %v612 = vsel %vm347, %v602, 0.0
  %613 = vadd.xlane.f32.xlu0 %v612
  %v614 = vpop.xlane.xlu0 %613
  %v615 = vsel %vm347, %v604, 0.0
  %616 = vadd.xlane.f32.xlu0 %v615
  %v617 = vpop.xlane.xlu0 %616
  %v618 = vsel %vm347, %v606, 0.0
  %619 = vadd.xlane.f32.xlu0 %v618
  %v620 = vpop.xlane.xlu0 %619
  %v621 = vsel %vm347, %v608, 0.0
  %622 = vadd.xlane.f32.xlu0 %v621
  %v623 = vpop.xlane.xlu0 %622
  %v624 = vrcp.pop %v611
  %v625 = vrcp.pop %v614
  %v626 = vrcp.pop %v617
  %v627 = vrcp.pop %v620
  %v628 = vrcp.pop %v623
  %v629 = vmul.f32 %v600, %v624
  %v630 = vmul.f32 %v602, %v625
  %v631 = vmul.f32 %v604, %v626
  %v632 = vmul.f32 %v606, %v627
  %v633 = vmul.f32 %v608, %v628
  %v634 = vpack.c.bf16 %v630, %v629
  %v635 = vpack.c.bf16 %v632, %v631
  %v636 = vpack.c.bf16 %v633, %v633
  %637 = vrot.lane.b32.xlu0 %v250, 56
  %v638 = vpop.permute.xlu0 %637
  %639 = vrot.lane.b32.xlu0 %v251, 56
  %v640 = vpop.permute.xlu0 %639
  %641 = vrot.lane.b32.xlu0 %v252, 56
  %v642 = vpop.permute.xlu0 %641
  %v646 = vsel %vm347, %v634, 0
  %v649 = vsel %vm347, %v635, 0
  %v652 = vsel %vm347, %v636, 0
  %v655 = vsel %vm423, %v642, 0
  %657 = vmatprep.subr.bf16.mxu0 0
  %658 = vmatpush1.bf16.msra.mxu0 %v638
  %659 = vmatprep.subr.bf16.mxu0 0
  %660 = vmatpush1.bf16.msra.mxu0 %v640
  %661 = vmatprep.subr.bf16.mxu0 0
  %662 = vmatpush1.bf16.msra.mxu0 %v655
  %663 = vmatprep.subr.bf16.mxu0 0
  %664 = vmatpush1.bf16.msra.mxu0 0
  %665 = vmatprep.subr.bf16.mxu0 0
  %666 = vmatpush1.bf16.msra.mxu0 0
  %667 = vmatprep.subr.bf16.mxu0 0
  %668 = vmatpush1.bf16.msra.mxu0 0
  %669 = vmatprep.subr.bf16.mxu0 0
  %670 = vmatpush1.bf16.msra.mxu0 0
  %671 = vmatprep.subr.bf16.mxu0 0
  %672 = vmatpush1.bf16.msra.mxu0 0
  %673 = vmatprep.subr.bf16.mxu0 0
  %674 = vmatpush1.bf16.msra.mxu0 0
  %675 = vmatprep.subr.bf16.mxu0 0
  %676 = vmatpush1.bf16.msra.mxu0 0
  %677 = vmatprep.subr.bf16.mxu0 0
  %678 = vmatpush1.bf16.msra.mxu0 0
  %679 = vmatprep.subr.bf16.mxu0 0
  %680 = vmatpush1.bf16.msra.mxu0 0
  %681 = vmatprep.subr.bf16.mxu0 0
  %682 = vmatpush1.bf16.msra.mxu0 0
  %683 = vmatprep.subr.bf16.mxu0 0
  %684 = vmatpush1.bf16.msra.mxu0 0
  %685 = vmatprep.subr.bf16.mxu0 0
  %686 = vmatpush1.bf16.msra.mxu0 0
  %687 = vmatprep.subr.bf16.mxu0 0
  %688 = vmatpush1.bf16.msra.mxu0 0
  %689 = vmatprep.mubr.bf16.mxu0 0
  %690 = vmatmul.mubr.bf16.gmra.mrb[0].mxu0 %v646
  %v691 = vpop.f32.mrb[0].mxu0
  %v692 = vadd.f32 0.0, %v691
  %v693 = vpop.f32.mrb[0].mxu0
  %v694 = vpop.f32.mrb[0].mxu0
  %v695 = vadd.f32 0.0, %v694
  %v696 = vpop.f32.mrb[0].mxu0
  %697 = vmatprep.mubr.bf16.mxu0 0
  %698 = vmatmul.mubr.bf16.gmra.mrb[0].mxu0 %v649
  %v699 = vpop.f32.mrb[0].mxu0
  %v700 = vadd.f32 0.0, %v699
  %v701 = vpop.f32.mrb[0].mxu0
  %v702 = vpop.f32.mrb[0].mxu0
  %v703 = vadd.f32 0.0, %v702
  %v704 = vpop.f32.mrb[0].mxu0
  %705 = vmatprep.mubr.bf16.mxu0 0
  %706 = vmatmul.mubr.bf16.gmra.mrb[0].mxu0 %v652
  %v707 = vpop.f32.mrb[0].mxu0
  %v708 = vadd.f32 0.0, %v707
  %v709 = vpop.f32.mrb[0].mxu0
  %v710 = vpop.f32.mrb[0].mxu0
  %v711 = vpop.f32.mrb[0].mxu0
  %712 = vdwg.mxu0
  %713 = vrot.lane.b32.xlu0 %v250, 112
  %v714 = vpop.permute.xlu0 %713
  %715 = vrot.lane.b32.xlu0 %v251, 112
  %v716 = vpop.permute.xlu0 %715
  %717 = vrot.lane.b32.xlu0 %v252, 112
  %v718 = vpop.permute.xlu0 %717
  %719 = vrot.lane.b32.xlu0 %v250, 80
  %v720 = vpop.permute.xlu0 %719
  %721 = vrot.lane.b32.xlu0 %v251, 80
  %v722 = vpop.permute.xlu0 %721
  %723 = vrot.lane.b32.xlu0 %v252, 80
  %v724 = vpop.permute.xlu0 %723
  %v726 = vsel %vm262, %v714, 0
  %v729 = vsel %vm262, %v716, 0
  %v732 = vsel %vm262, %v718, 0
  %v735 = vsel %vm262, %v720, 0
  %v738 = vsel %vm262, %v722, 0
  %v741 = vsel %vm262, %v724, 0
  %743 = vmatprep.subr.bf16.mxu0 0
  %744 = vmatpush1.bf16.xpose.msra.mxu0 %v735
  %745 = vmatprep.subr.bf16.mxu0 0
  %746 = vmatpush1.bf16.xpose.msra.mxu0 %v738
  %747 = vmatprep.subr.bf16.mxu0 0
  %748 = vmatpush1.bf16.xpose.msra.mxu0 %v741
  %749 = vmatprep.subr.bf16.mxu0 0
  %750 = vmatpush1.bf16.xpose.msra.mxu0 0
  %751 = vmatprep.subr.bf16.mxu0 0
  %752 = vmatpush1.bf16.xpose.msra.mxu0 0
  %753 = vmatprep.subr.bf16.mxu0 0
  %754 = vmatpush1.bf16.xpose.msra.mxu0 0
  %755 = vmatprep.subr.bf16.mxu0 0
  %756 = vmatpush1.bf16.xpose.msra.mxu0 0
  %757 = vmatprep.subr.bf16.mxu0 0
  %758 = vmatpush1.bf16.xpose.msra.mxu0 0
  %759 = vmatprep.subr.bf16.mxu0 0
  %760 = vmatpush1.bf16.xpose.msra.mxu0 0
  %761 = vmatprep.subr.bf16.mxu0 0
  %762 = vmatpush1.bf16.xpose.msra.mxu0 0
  %763 = vmatprep.subr.bf16.mxu0 0
  %764 = vmatpush1.bf16.xpose.msra.mxu0 0
  %765 = vmatprep.subr.bf16.mxu0 0
  %766 = vmatpush1.bf16.xpose.msra.mxu0 0
  %767 = vmatprep.subr.bf16.mxu0 0
  %768 = vmatpush1.bf16.xpose.msra.mxu0 0
  %769 = vmatprep.subr.bf16.mxu0 0
  %770 = vmatpush1.bf16.xpose.msra.mxu0 0
  %771 = vmatprep.subr.bf16.mxu0 0
  %772 = vmatpush1.bf16.xpose.msra.mxu0 0
  %773 = vmatprep.subr.bf16.mxu0 0
  %774 = vmatpush1.bf16.xpose.msra.mxu0 0
  %775 = vmatprep.mubr.bf16.mxu0 0
  %776 = vmatmul.mubr.bf16.gmra.mrb[0].mxu0 %v726
  %v777 = vpop.f32.mrb[0].mxu0
  %v778 = vadd.f32 0.0, %v777
  %v779 = vpop.f32.mrb[0].mxu0
  %v780 = vpop.f32.mrb[0].mxu0
  %v781 = vadd.f32 0.0, %v780
  %v782 = vpop.f32.mrb[0].mxu0
  %783 = vmatprep.mubr.bf16.mxu0 0
  %784 = vmatmul.mubr.bf16.gmra.mrb[0].mxu0 %v729
  %v785 = vpop.f32.mrb[0].mxu0
  %v786 = vadd.f32 0.0, %v785
  %v787 = vpop.f32.mrb[0].mxu0
  %v788 = vpop.f32.mrb[0].mxu0
  %v789 = vadd.f32 0.0, %v788
  %v790 = vpop.f32.mrb[0].mxu0
  %791 = vmatprep.mubr.bf16.mxu0 0
  %792 = vmatmul.mubr.bf16.gmra.mrb[0].mxu0 %v732
  %v793 = vpop.f32.mrb[0].mxu0
  %v794 = vadd.f32 0.0, %v793
  %v795 = vpop.f32.mrb[0].mxu0
  %v796 = vpop.f32.mrb[0].mxu0
  %v797 = vpop.f32.mrb[0].mxu0
  %798 = vdwg.mxu0
  %v799 = vmul.f32 %v778, 0.35355338
  %v800 = vmul.f32 %v781, 0.35355338
  %v801 = vmul.f32 %v786, 0.35355338
  %v802 = vmul.f32 %v789, 0.35355338
  %v803 = vmul.f32 %v794, 0.35355338
  %v804 = vadd.f32 %v799, %v57
  %v805 = vadd.f32 %v800, %v58
  %v806 = vadd.f32 %v801, %v59
  %v807 = vadd.f32 %v802, %v60
  %v808 = vadd.f32 %v803, %v61
  %v809 = vsel %vm347, %v804, -inf
  %810 = vmax.xlane.f32.xlu0 %v809
  %v811 = vpop.xlane.xlu0 %810
  %v812 = vsel %vm347, %v805, -inf
  %813 = vmax.xlane.f32.xlu0 %v812
  %v814 = vpop.xlane.xlu0 %813
  %v815 = vsel %vm347, %v806, -inf
  %816 = vmax.xlane.f32.xlu0 %v815
  %v817 = vpop.xlane.xlu0 %816
  %v818 = vsel %vm347, %v807, -inf
  %819 = vmax.xlane.f32.xlu0 %v818
  %v820 = vpop.xlane.xlu0 %819
  %v821 = vsel %vm347, %v808, -inf
  %822 = vmax.xlane.f32.xlu0 %v821
  %v823 = vpop.xlane.xlu0 %822
  %v824 = vsub.f32 %v804, %v811
  %v825 = vsub.f32 %v805, %v814
  %v826 = vsub.f32 %v806, %v817
  %v827 = vsub.f32 %v807, %v820
  %v828 = vsub.f32 %v808, %v823
  %v829 = vmul.f32 %v824, 1.442695
  %v830 = vpow.pop %v829
  %v831 = vmul.f32 %v825, 1.442695
  %v832 = vpow.pop %v831
  %v833 = vmul.f32 %v826, 1.442695
  %v834 = vpow.pop %v833
  %v835 = vmul.f32 %v827, 1.442695
  %v836 = vpow.pop %v835
  %v837 = vmul.f32 %v828, 1.442695
  %v838 = vpow.pop %v837
  %v839 = vsel %vm347, %v830, 0.0
  %840 = vadd.xlane.f32.xlu0 %v839
  %v841 = vpop.xlane.xlu0 %840
  %v842 = vsel %vm347, %v832, 0.0
  %843 = vadd.xlane.f32.xlu0 %v842
  %v844 = vpop.xlane.xlu0 %843
  %v845 = vsel %vm347, %v834, 0.0
  %846 = vadd.xlane.f32.xlu0 %v845
  %v847 = vpop.xlane.xlu0 %846
  %v848 = vsel %vm347, %v836, 0.0
  %849 = vadd.xlane.f32.xlu0 %v848
  %v850 = vpop.xlane.xlu0 %849
  %v851 = vsel %vm347, %v838, 0.0
  %852 = vadd.xlane.f32.xlu0 %v851
  %v853 = vpop.xlane.xlu0 %852
  %v854 = vrcp.pop %v841
  %v855 = vrcp.pop %v844
  %v856 = vrcp.pop %v847
  %v857 = vrcp.pop %v850
  %v858 = vrcp.pop %v853
  %v859 = vmul.f32 %v830, %v854
  %v860 = vmul.f32 %v832, %v855
  %v861 = vmul.f32 %v834, %v856
  %v862 = vmul.f32 %v836, %v857
  %v863 = vmul.f32 %v838, %v858
  %v864 = vpack.c.bf16 %v860, %v859
  %v865 = vpack.c.bf16 %v862, %v861
  %v866 = vpack.c.bf16 %v863, %v863
  %867 = vrot.lane.b32.xlu0 %v250, 48
  %v868 = vpop.permute.xlu0 %867
  %869 = vrot.lane.b32.xlu0 %v251, 48
  %v870 = vpop.permute.xlu0 %869
  %871 = vrot.lane.b32.xlu0 %v252, 48
  %v872 = vpop.permute.xlu0 %871
  %v876 = vsel %vm347, %v864, 0
  %v879 = vsel %vm347, %v865, 0
  %v882 = vsel %vm347, %v866, 0
  %v885 = vsel %vm423, %v872, 0
  %887 = vmatprep.subr.bf16.mxu0 0
  %888 = vmatpush1.bf16.msra.mxu0 %v868
  %889 = vmatprep.subr.bf16.mxu0 0
  %890 = vmatpush1.bf16.msra.mxu0 %v870
  %891 = vmatprep.subr.bf16.mxu0 0
  %892 = vmatpush1.bf16.msra.mxu0 %v885
  %893 = vmatprep.subr.bf16.mxu0 0
  %894 = vmatpush1.bf16.msra.mxu0 0
  %895 = vmatprep.subr.bf16.mxu0 0
  %896 = vmatpush1.bf16.msra.mxu0 0
  %897 = vmatprep.subr.bf16.mxu0 0
  %898 = vmatpush1.bf16.msra.mxu0 0
  %899 = vmatprep.subr.bf16.mxu0 0
  %900 = vmatpush1.bf16.msra.mxu0 0
  %901 = vmatprep.subr.bf16.mxu0 0
  %902 = vmatpush1.bf16.msra.mxu0 0
  %903 = vmatprep.subr.bf16.mxu0 0
  %904 = vmatpush1.bf16.msra.mxu0 0
  %905 = vmatprep.subr.bf16.mxu0 0
  %906 = vmatpush1.bf16.msra.mxu0 0
  %907 = vmatprep.subr.bf16.mxu0 0
  %908 = vmatpush1.bf16.msra.mxu0 0
  %909 = vmatprep.subr.bf16.mxu0 0
  %910 = vmatpush1.bf16.msra.mxu0 0
  %911 = vmatprep.subr.bf16.mxu0 0
  %912 = vmatpush1.bf16.msra.mxu0 0
  %913 = vmatprep.subr.bf16.mxu0 0
  %914 = vmatpush1.bf16.msra.mxu0 0
  %915 = vmatprep.subr.bf16.mxu0 0
  %916 = vmatpush1.bf16.msra.mxu0 0
  %917 = vmatprep.subr.bf16.mxu0 0
  %918 = vmatpush1.bf16.msra.mxu0 0
  %919 = vmatprep.mubr.bf16.mxu0 0
  %920 = vmatmul.mubr.bf16.gmra.mrb[0].mxu0 %v876
  %v921 = vpop.f32.mrb[0].mxu0
  %v922 = vadd.f32 0.0, %v921
  %v923 = vpop.f32.mrb[0].mxu0
  %v924 = vpop.f32.mrb[0].mxu0
  %v925 = vadd.f32 0.0, %v924
  %v926 = vpop.f32.mrb[0].mxu0
  %927 = vmatprep.mubr.bf16.mxu0 0
  %928 = vmatmul.mubr.bf16.gmra.mrb[0].mxu0 %v879
  %v929 = vpop.f32.mrb[0].mxu0
  %v930 = vadd.f32 0.0, %v929
  %v931 = vpop.f32.mrb[0].mxu0
  %v932 = vpop.f32.mrb[0].mxu0
  %v933 = vadd.f32 0.0, %v932
  %v934 = vpop.f32.mrb[0].mxu0
  %935 = vmatprep.mubr.bf16.mxu0 0
  %936 = vmatmul.mubr.bf16.gmra.mrb[0].mxu0 %v882
  %v937 = vpop.f32.mrb[0].mxu0
  %v938 = vadd.f32 0.0, %v937
  %v939 = vpop.f32.mrb[0].mxu0
  %v940 = vpop.f32.mrb[0].mxu0
  %v941 = vpop.f32.mrb[0].mxu0
  %942 = vdwg.mxu0
  %943 = vrot.lane.b32.xlu0 %v250, 104
  %v944 = vpop.permute.xlu0 %943
  %945 = vrot.lane.b32.xlu0 %v251, 104
  %v946 = vpop.permute.xlu0 %945
  %947 = vrot.lane.b32.xlu0 %v252, 104
  %v948 = vpop.permute.xlu0 %947
  %949 = vrot.lane.b32.xlu0 %v250, 72
  %v950 = vpop.permute.xlu0 %949
  %951 = vrot.lane.b32.xlu0 %v251, 72
  %v952 = vpop.permute.xlu0 %951
  %953 = vrot.lane.b32.xlu0 %v252, 72
  %v954 = vpop.permute.xlu0 %953
  %v956 = vsel %vm262, %v944, 0
  %v959 = vsel %vm262, %v946, 0
  %v962 = vsel %vm262, %v948, 0
  %v965 = vsel %vm262, %v950, 0
  %v968 = vsel %vm262, %v952, 0
  %v971 = vsel %vm262, %v954, 0
  %973 = vmatprep.subr.bf16.mxu0 0
  %974 = vmatpush1.bf16.xpose.msra.mxu0 %v965
  %975 = vmatprep.subr.bf16.mxu0 0
  %976 = vmatpush1.bf16.xpose.msra.mxu0 %v968
  %977 = vmatprep.subr.bf16.mxu0 0
  %978 = vmatpush1.bf16.xpose.msra.mxu0 %v971
  %979 = vmatprep.subr.bf16.mxu0 0
  %980 = vmatpush1.bf16.xpose.msra.mxu0 0
  %981 = vmatprep.subr.bf16.mxu0 0
  %982 = vmatpush1.bf16.xpose.msra.mxu0 0
  %983 = vmatprep.subr.bf16.mxu0 0
  %984 = vmatpush1.bf16.xpose.msra.mxu0 0
  %985 = vmatprep.subr.bf16.mxu0 0
  %986 = vmatpush1.bf16.xpose.msra.mxu0 0
  %987 = vmatprep.subr.bf16.mxu0 0
  %988 = vmatpush1.bf16.xpose.msra.mxu0 0
  %989 = vmatprep.subr.bf16.mxu0 0
  %990 = vmatpush1.bf16.xpose.msra.mxu0 0
  %991 = vmatprep.subr.bf16.mxu0 0
  %992 = vmatpush1.bf16.xpose.msra.mxu0 0
  %993 = vmatprep.subr.bf16.mxu0 0
  %994 = vmatpush1.bf16.xpose.msra.mxu0 0
  %995 = vmatprep.subr.bf16.mxu0 0
  %996 = vmatpush1.bf16.xpose.msra.mxu0 0
  %997 = vmatprep.subr.bf16.mxu0 0
  %998 = vmatpush1.bf16.xpose.msra.mxu0 0
  %999 = vmatprep.subr.bf16.mxu0 0
  %1000 = vmatpush1.bf16.xpose.msra.mxu0 0
  %1001 = vmatprep.subr.bf16.mxu0 0
  %1002 = vmatpush1.bf16.xpose.msra.mxu0 0
  %1003 = vmatprep.subr.bf16.mxu0 0
  %1004 = vmatpush1.bf16.xpose.msra.mxu0 0
  %1005 = vmatprep.mubr.bf16.mxu0 0
  %1006 = vmatmul.mubr.bf16.gmra.mrb[0].mxu0 %v956
  %v1007 = vpop.f32.mrb[0].mxu0
  %v1008 = vadd.f32 0.0, %v1007
  %v1009 = vpop.f32.mrb[0].mxu0
  %v1010 = vpop.f32.mrb[0].mxu0
  %v1011 = vadd.f32 0.0, %v1010
  %v1012 = vpop.f32.mrb[0].mxu0
  %1013 = vmatprep.mubr.bf16.mxu0 0
  %1014 = vmatmul.mubr.bf16.gmra.mrb[0].mxu0 %v959
  %v1015 = vpop.f32.mrb[0].mxu0
  %v1016 = vadd.f32 0.0, %v1015
  %v1017 = vpop.f32.mrb[0].mxu0
  %v1018 = vpop.f32.mrb[0].mxu0
  %v1019 = vadd.f32 0.0, %v1018
  %v1020 = vpop.f32.mrb[0].mxu0
  %1021 = vmatprep.mubr.bf16.mxu0 0
  %1022 = vmatmul.mubr.bf16.gmra.mrb[0].mxu0 %v962
  %v1023 = vpop.f32.mrb[0].mxu0
  %v1024 = vadd.f32 0.0, %v1023
  %v1025 = vpop.f32.mrb[0].mxu0
  %v1026 = vpop.f32.mrb[0].mxu0
  %v1027 = vpop.f32.mrb[0].mxu0
  %1028 = vdwg.mxu0
  %v1029 = vmul.f32 %v1008, 0.35355338
  %v1030 = vmul.f32 %v1011, 0.35355338
  %v1031 = vmul.f32 %v1016, 0.35355338
  %v1032 = vmul.f32 %v1019, 0.35355338
  %v1033 = vmul.f32 %v1024, 0.35355338
  %v1034 = vadd.f32 %v1029, %v57
  %v1035 = vadd.f32 %v1030, %v58
  %v1036 = vadd.f32 %v1031, %v59
  %v1037 = vadd.f32 %v1032, %v60
  %v1038 = vadd.f32 %v1033, %v61
  %v1039 = vsel %vm347, %v1034, -inf
  %1040 = vmax.xlane.f32.xlu0 %v1039
  %v1041 = vpop.xlane.xlu0 %1040
  %v1042 = vsel %vm347, %v1035, -inf
  %1043 = vmax.xlane.f32.xlu0 %v1042
  %v1044 = vpop.xlane.xlu0 %1043
  %v1045 = vsel %vm347, %v1036, -inf
  %1046 = vmax.xlane.f32.xlu0 %v1045
  %v1047 = vpop.xlane.xlu0 %1046
  %v1048 = vsel %vm347, %v1037, -inf
  %1049 = vmax.xlane.f32.xlu0 %v1048
  %v1050 = vpop.xlane.xlu0 %1049
  %v1051 = vsel %vm347, %v1038, -inf
  %1052 = vmax.xlane.f32.xlu0 %v1051
  %v1053 = vpop.xlane.xlu0 %1052
  %v1054 = vsub.f32 %v1034, %v1041
  %v1055 = vsub.f32 %v1035, %v1044
  %v1056 = vsub.f32 %v1036, %v1047
  %v1057 = vsub.f32 %v1037, %v1050
  %v1058 = vsub.f32 %v1038, %v1053
  %v1059 = vmul.f32 %v1054, 1.442695
  %v1060 = vpow.pop %v1059
  %v1061 = vmul.f32 %v1055, 1.442695
  %v1062 = vpow.pop %v1061
  %v1063 = vmul.f32 %v1056, 1.442695
  %v1064 = vpow.pop %v1063
  %v1065 = vmul.f32 %v1057, 1.442695
  %v1066 = vpow.pop %v1065
  %v1067 = vmul.f32 %v1058, 1.442695
  %v1068 = vpow.pop %v1067
  %v1069 = vsel %vm347, %v1060, 0.0
  %1070 = vadd.xlane.f32.xlu0 %v1069
  %v1071 = vpop.xlane.xlu0 %1070
  %v1072 = vsel %vm347, %v1062, 0.0
  %1073 = vadd.xlane.f32.xlu0 %v1072
  %v1074 = vpop.xlane.xlu0 %1073
  %v1075 = vsel %vm347, %v1064, 0.0
  %1076 = vadd.xlane.f32.xlu0 %v1075
  %v1077 = vpop.xlane.xlu0 %1076
  %v1078 = vsel %vm347, %v1066, 0.0
  %1079 = vadd.xlane.f32.xlu0 %v1078
  %v1080 = vpop.xlane.xlu0 %1079
  %v1081 = vsel %vm347, %v1068, 0.0
  %1082 = vadd.xlane.f32.xlu0 %v1081
  %v1083 = vpop.xlane.xlu0 %1082
  %v1084 = vrcp.pop %v1071
  %v1085 = vrcp.pop %v1074
  %v1086 = vrcp.pop %v1077
  %v1087 = vrcp.pop %v1080
  %v1088 = vrcp.pop %v1083
  %v1089 = vmul.f32 %v1060, %v1084
  %v1090 = vmul.f32 %v1062, %v1085
  %v1091 = vmul.f32 %v1064, %v1086
  %v1092 = vmul.f32 %v1066, %v1087
  %v1093 = vmul.f32 %v1068, %v1088
  %v1094 = vpack.c.bf16 %v1090, %v1089
  %v1095 = vpack.c.bf16 %v1092, %v1091
  %v1096 = vpack.c.bf16 %v1093, %v1093
  %1097 = vrot.lane.b32.xlu0 %v250, 40
  %v1098 = vpop.permute.xlu0 %1097
  %1099 = vrot.lane.b32.xlu0 %v251, 40
  %v1100 = vpop.permute.xlu0 %1099
  %1101 = vrot.lane.b32.xlu0 %v252, 40
  %v1102 = vpop.permute.xlu0 %1101
  %v1106 = vsel %vm347, %v1094, 0
  %v1109 = vsel %vm347, %v1095, 0
  %v1112 = vsel %vm347, %v1096, 0
  %v1115 = vsel %vm423, %v1102, 0
  %1117 = vmatprep.subr.bf16.mxu0 0
  %1118 = vmatpush1.bf16.msra.mxu0 %v1098
  %1119 = vmatprep.subr.bf16.mxu0 0
  %1120 = vmatpush1.bf16.msra.mxu0 %v1100
  %1121 = vmatprep.subr.bf16.mxu0 0
  %1122 = vmatpush1.bf16.msra.mxu0 %v1115
  %1123 = vmatprep.subr.bf16.mxu0 0
  %1124 = vmatpush1.bf16.msra.mxu0 0
  %1125 = vmatprep.subr.bf16.mxu0 0
  %1126 = vmatpush1.bf16.msra.mxu0 0
  %1127 = vmatprep.subr.bf16.mxu0 0
  %1128 = vmatpush1.bf16.msra.mxu0 0
  %1129 = vmatprep.subr.bf16.mxu0 0
  %1130 = vmatpush1.bf16.msra.mxu0 0
  %1131 = vmatprep.subr.bf16.mxu0 0
  %1132 = vmatpush1.bf16.msra.mxu0 0
  %1133 = vmatprep.subr.bf16.mxu0 0
  %1134 = vmatpush1.bf16.msra.mxu0 0
  %1135 = vmatprep.subr.bf16.mxu0 0
  %1136 = vmatpush1.bf16.msra.mxu0 0
  %1137 = vmatprep.subr.bf16.mxu0 0
  %1138 = vmatpush1.bf16.msra.mxu0 0
  %1139 = vmatprep.subr.bf16.mxu0 0
  %1140 = vmatpush1.bf16.msra.mxu0 0
  %1141 = vmatprep.subr.bf16.mxu0 0
  %1142 = vmatpush1.bf16.msra.mxu0 0
  %1143 = vmatprep.subr.bf16.mxu0 0
  %1144 = vmatpush1.bf16.msra.mxu0 0
  %1145 = vmatprep.subr.bf16.mxu0 0
  %1146 = vmatpush1.bf16.msra.mxu0 0
  %1147 = vmatprep.subr.bf16.mxu0 0
  %1148 = vmatpush1.bf16.msra.mxu0 0
  %1149 = vmatprep.mubr.bf16.mxu0 0
  %1150 = vmatmul.mubr.bf16.gmra.mrb[0].mxu0 %v1106
  %v1151 = vpop.f32.mrb[0].mxu0
  %v1152 = vadd.f32 0.0, %v1151
  %v1153 = vpop.f32.mrb[0].mxu0
  %v1154 = vpop.f32.mrb[0].mxu0
  %v1155 = vadd.f32 0.0, %v1154
  %v1156 = vpop.f32.mrb[0].mxu0
  %1157 = vmatprep.mubr.bf16.mxu0 0
  %1158 = vmatmul.mubr.bf16.gmra.mrb[0].mxu0 %v1109
  %v1159 = vpop.f32.mrb[0].mxu0
  %v1160 = vadd.f32 0.0, %v1159
  %v1161 = vpop.f32.mrb[0].mxu0
  %v1162 = vpop.f32.mrb[0].mxu0
  %v1163 = vadd.f32 0.0, %v1162
  %v1164 = vpop.f32.mrb[0].mxu0
  %1165 = vmatprep.mubr.bf16.mxu0 0
  %1166 = vmatmul.mubr.bf16.gmra.mrb[0].mxu0 %v1112
  %v1167 = vpop.f32.mrb[0].mxu0
  %v1168 = vadd.f32 0.0, %v1167
  %v1169 = vpop.f32.mrb[0].mxu0
  %v1170 = vpop.f32.mrb[0].mxu0
  %v1171 = vpop.f32.mrb[0].mxu0
  %1172 = vdwg.mxu0
  %1178 = vrot.lane.b32.xlu0 %v692, 8
  %v1179 = vpop.permute.xlu0 %1178
  %1180 = vrot.lane.b32.xlu0 %v695, 8
  %v1181 = vpop.permute.xlu0 %1180
  %1182 = vrot.lane.b32.xlu0 %v700, 8
  %v1183 = vpop.permute.xlu0 %1182
  %1184 = vrot.lane.b32.xlu0 %v703, 8
  %v1185 = vpop.permute.xlu0 %1184
  %1186 = vrot.lane.b32.xlu0 %v708, 8
  %v1187 = vpop.permute.xlu0 %1186
  %1198 = vrot.lane.b32.xlu0 %v922, 16
  %v1199 = vpop.permute.xlu0 %1198
  %1200 = vrot.lane.b32.xlu0 %v925, 16
  %v1201 = vpop.permute.xlu0 %1200
  %1202 = vrot.lane.b32.xlu0 %v930, 16
  %v1203 = vpop.permute.xlu0 %1202
  %1204 = vrot.lane.b32.xlu0 %v933, 16
  %v1205 = vpop.permute.xlu0 %1204
  %1206 = vrot.lane.b32.xlu0 %v938, 16
  %v1207 = vpop.permute.xlu0 %1206
  %1218 = vrot.lane.b32.xlu0 %v1152, 24
  %v1219 = vpop.permute.xlu0 %1218
  %1220 = vrot.lane.b32.xlu0 %v1155, 24
  %v1221 = vpop.permute.xlu0 %1220
  %1222 = vrot.lane.b32.xlu0 %v1160, 24
  %v1223 = vpop.permute.xlu0 %1222
  %1224 = vrot.lane.b32.xlu0 %v1163, 24
  %v1225 = vpop.permute.xlu0 %1224
  %1226 = vrot.lane.b32.xlu0 %v1168, 24
  %v1227 = vpop.permute.xlu0 %1226
  %v1233 = vsel %vm262, %v462, %v1179
  %v1234 = vsel %vm262, %v465, %v1181
  %v1235 = vsel %vm262, %v470, %v1183
  %v1236 = vsel %vm262, %v473, %v1185
  %v1237 = vsel %vm262, %v478, %v1187
  %vm1238 = vcmask 130048
  %v1239 = vsel %vm1238, %v1233, %v1199
  %v1240 = vsel %vm1238, %v1234, %v1201
  %v1241 = vsel %vm1238, %v1235, %v1203
  %v1242 = vsel %vm1238, %v1236, %v1205
  %v1243 = vsel %vm1238, %v1237, %v1207
  %vm1244 = vcmask 195584
  %v1245 = vsel %vm1244, %v1239, %v1219
  %v1246 = vsel %vm1244, %v1240, %v1221
  %v1247 = vsel %vm1244, %v1241, %v1223
  %v1248 = vsel %vm1244, %v1242, %v1225
  %v1249 = vsel %vm1244, %v1243, %v1227
  %v1250 = vpack.c.bf16 %v1246, %v1245
  %v1251 = vpack.c.bf16 %v1248, %v1247
  %v1252 = vpack.c.bf16 %v1249, %v1249
  %v1253 = vld [vmem:[%s7] sm:$0xf]
  %v1254 = vld [vmem:[%s7 + $0x4] sm:$0xf]
  %v1255 = vld [vmem:[%s7 + $0x8] sm:$0xf]
  %v1256 = vld [vmem:[%s7 + $0xc] sm:$0xf]
  %v1257 = vld [vmem:[%s8] sm:$0x1]
  %v1259 = vlaneseq
  %v1260 = vshrl.u32 %v1259, 7
  %v1261 = vsub.s32 0, %v1260
  %v1262 = vrot.slane %v1257, %v1261
  %v1268 = vunpack.c.l.b16 %v1253
  %v1269 = vunpack.c.l.b16 %v1254
  %v1270 = vunpack.c.l.b16 %v1255
  %v1271 = vunpack.c.l.b16 %v1256
  %v1272 = vpack.c.b16 %v1269, %v1268
  %v1273 = vpack.c.b16 %v1271, %v1270
  %v1277 = vsel %vm184, %v1250, 0
  %v1280 = vsel %vm184, %v1251, 0
  %v1283 = vsel %vm184, %v1252, 0
  %1285 = vmatprep.subr.bf16.mxu0 0
  %1286 = vmatpush1.bf16.msra.mxu0 %v1272
  %1287 = vmatprep.subr.bf16.mxu0 0
  %1288 = vmatpush1.bf16.msra.mxu0 %v1273
  %1289 = vmatprep.subr.bf16.mxu0 0
  %1290 = vmatpush1.bf16.msra.mxu0 0
  %1291 = vmatprep.subr.bf16.mxu0 0
  %1292 = vmatpush1.bf16.msra.mxu0 0
  %1293 = vmatprep.subr.bf16.mxu0 0
  %1294 = vmatpush1.bf16.msra.mxu0 0
  %1295 = vmatprep.subr.bf16.mxu0 0
  %1296 = vmatpush1.bf16.msra.mxu0 0
  %1297 = vmatprep.subr.bf16.mxu0 0
  %1298 = vmatpush1.bf16.msra.mxu0 0
  %1299 = vmatprep.subr.bf16.mxu0 0
  %1300 = vmatpush1.bf16.msra.mxu0 0
  %1301 = vmatprep.subr.bf16.mxu0 0
  %1302 = vmatpush1.bf16.msra.mxu0 0
  %1303 = vmatprep.subr.bf16.mxu0 0
  %1304 = vmatpush1.bf16.msra.mxu0 0
  %1305 = vmatprep.subr.bf16.mxu0 0
  %1306 = vmatpush1.bf16.msra.mxu0 0
  %1307 = vmatprep.subr.bf16.mxu0 0
  %1308 = vmatpush1.bf16.msra.mxu0 0
  %1309 = vmatprep.subr.bf16.mxu0 0
  %1310 = vmatpush1.bf16.msra.mxu0 0
  %1311 = vmatprep.subr.bf16.mxu0 0
  %1312 = vmatpush1.bf16.msra.mxu0 0
  %1313 = vmatprep.subr.bf16.mxu0 0
  %1314 = vmatpush1.bf16.msra.mxu0 0
  %1315 = vmatprep.subr.bf16.mxu0 0
  %1316 = vmatpush1.bf16.msra.mxu0 0
  %1317 = vmatprep.mubr.bf16.mxu0 0
  %1318 = vmatmul.mubr.bf16.gmra.mrb[0].mxu0 %v1277
  %v1319 = vpop.f32.mrb[0].mxu0
  %v1320 = vadd.f32 %v1262, %v1319
  %v1321 = vpop.f32.mrb[0].mxu0
  %v1322 = vpop.f32.mrb[0].mxu0
  %v1323 = vadd.f32 %v1262, %v1322
  %v1324 = vpop.f32.mrb[0].mxu0
  %1325 = vmatprep.mubr.bf16.mxu0 0
  %1326 = vmatmul.mubr.bf16.gmra.mrb[0].mxu0 %v1280
  %v1327 = vpop.f32.mrb[0].mxu0
  %v1328 = vadd.f32 %v1262, %v1327
  %v1329 = vpop.f32.mrb[0].mxu0
  %v1330 = vpop.f32.mrb[0].mxu0
  %v1331 = vadd.f32 %v1262, %v1330
  %v1332 = vpop.f32.mrb[0].mxu0
  %1333 = vmatprep.mubr.bf16.mxu0 0
  %1334 = vmatmul.mubr.bf16.gmra.mrb[0].mxu0 %v1283
  %v1335 = vpop.f32.mrb[0].mxu0
  %v1336 = vadd.f32 %v1262, %v1335
  %v1337 = vpop.f32.mrb[0].mxu0
  %v1338 = vpop.f32.mrb[0].mxu0
  %v1339 = vpop.f32.mrb[0].mxu0
  %1340 = vdwg.mxu0
  %v1341 = vadd.f32 %v153, %v1320
  %v1342 = vadd.f32 %v154, %v1323
  %v1343 = vadd.f32 %v155, %v1328
  %v1344 = vadd.f32 %v156, %v1331
  %v1345 = vadd.f32 %v157, %v1336
  %v1346 = vsel %vm184, %v1341, 0.0
  %1347 = vadd.xlane.f32.xlu0 %v1346
  %v1348 = vpop.xlane.xlu0 %1347
  %v1349 = vsel %vm184, %v1342, 0.0
  %1350 = vadd.xlane.f32.xlu0 %v1349
  %v1351 = vpop.xlane.xlu0 %1350
  %v1352 = vsel %vm184, %v1343, 0.0
  %1353 = vadd.xlane.f32.xlu0 %v1352
  %v1354 = vpop.xlane.xlu0 %1353
  %v1355 = vsel %vm184, %v1344, 0.0
  %1356 = vadd.xlane.f32.xlu0 %v1355
  %v1357 = vpop.xlane.xlu0 %1356
  %v1358 = vsel %vm184, %v1345, 0.0
  %1359 = vadd.xlane.f32.xlu0 %v1358
  %v1360 = vpop.xlane.xlu0 %1359
  %v1361 = vrcp.pop 32.0
  %v1362 = vmul.f32 %v1348, %v1361
  %v1363 = vmul.f32 %v1351, %v1361
  %v1364 = vmul.f32 %v1354, %v1361
  %v1365 = vmul.f32 %v1357, %v1361
  %v1366 = vmul.f32 %v1360, %v1361
  %v1367 = vsub.f32 %v1341, %v1362
  %v1368 = vsub.f32 %v1342, %v1363
  %v1369 = vsub.f32 %v1343, %v1364
  %v1370 = vsub.f32 %v1344, %v1365
  %v1371 = vsub.f32 %v1345, %v1366
  %v1372 = vmul.f32 %v1367, %v1367
  %v1373 = vmul.f32 %v1368, %v1368
  %v1374 = vmul.f32 %v1369, %v1369
  %v1375 = vmul.f32 %v1370, %v1370
  %v1376 = vmul.f32 %v1371, %v1371
  %v1377 = vsel %vm184, %v1372, 0.0
  %1378 = vadd.xlane.f32.xlu0 %v1377
  %v1379 = vpop.xlane.xlu0 %1378
  %v1380 = vsel %vm184, %v1373, 0.0
  %1381 = vadd.xlane.f32.xlu0 %v1380
  %v1382 = vpop.xlane.xlu0 %1381
  %v1383 = vsel %vm184, %v1374, 0.0
  %1384 = vadd.xlane.f32.xlu0 %v1383
  %v1385 = vpop.xlane.xlu0 %1384
  %v1386 = vsel %vm184, %v1375, 0.0
  %1387 = vadd.xlane.f32.xlu0 %v1386
  %v1388 = vpop.xlane.xlu0 %1387
  %v1389 = vsel %vm184, %v1376, 0.0
  %1390 = vadd.xlane.f32.xlu0 %v1389
  %v1391 = vpop.xlane.xlu0 %1390
  %v1392 = vmul.f32 %v1379, %v1361
  %v1393 = vmul.f32 %v1382, %v1361
  %v1394 = vmul.f32 %v1385, %v1361
  %v1395 = vmul.f32 %v1388, %v1361
  %v1396 = vmul.f32 %v1391, %v1361
  %v1397 = vadd.f32 %v1392, 1e-05
  %v1398 = vadd.f32 %v1393, 1e-05
  %v1399 = vadd.f32 %v1394, 1e-05
  %v1400 = vadd.f32 %v1395, 1e-05
  %v1401 = vadd.f32 %v1396, 1e-05
  %v1402 = vrsqrt.pop %v1397
  %v1403 = vrsqrt.pop %v1398
  %v1404 = vrsqrt.pop %v1399
  %v1405 = vrsqrt.pop %v1400
  %v1406 = vrsqrt.pop %v1401
  %v1407 = vmul.f32 %v1367, %v1402
  %v1408 = vmul.f32 %v1368, %v1403
  %v1409 = vmul.f32 %v1369, %v1404
  %v1410 = vmul.f32 %v1370, %v1405
  %v1411 = vmul.f32 %v1371, %v1406
  %v1412 = vld [vmem:[%s9] sm:$0x1]
  %v1414 = vlaneseq
  %v1415 = vshrl.u32 %v1414, 7
  %v1416 = vsub.s32 0, %v1415
  %v1417 = vrot.slane %v1412, %v1416
  %v1419 = vmul.f32 %v1407, %v1417
  %v1420 = vmul.f32 %v1408, %v1417
  %v1421 = vmul.f32 %v1409, %v1417
  %v1422 = vmul.f32 %v1410, %v1417
  %v1423 = vmul.f32 %v1411, %v1417
  %v1424 = vld [vmem:[%s10] sm:$0x1]
  %v1426 = vlaneseq
  %v1427 = vshrl.u32 %v1426, 7
  %v1428 = vsub.s32 0, %v1427
  %v1429 = vrot.slane %v1424, %v1428
  %v1431 = vadd.f32 %v1419, %v1429
  %v1432 = vadd.f32 %v1420, %v1429
  %v1433 = vadd.f32 %v1421, %v1429
  %v1434 = vadd.f32 %v1422, %v1429
  %v1435 = vadd.f32 %v1423, %v1429
  %v1436 = vpack.c.bf16 %v1432, %v1431
  %v1437 = vpack.c.bf16 %v1434, %v1433
  %v1438 = vpack.c.bf16 %v1435, %v1435
  %v1439 = vld [vmem:[%s11] sm:$0xf]
  %v1440 = vld [vmem:[%s11 + $0x4] sm:$0xf]
  %v1441 = vld [vmem:[%s11 + $0x8] sm:$0xf]
  %v1442 = vld [vmem:[%s11 + $0xc] sm:$0xf]
  %v1443 = vld [vmem:[%s12] sm:$0x1]
  %v1445 = vlaneseq
  %v1446 = vshrl.u32 %v1445, 7
  %v1447 = vsub.s32 0, %v1446
  %v1448 = vrot.slane %v1443, %v1447
  %v1454 = vunpack.c.l.b16 %v1439
  %v1455 = vunpack.c.l.b16 %v1440
  %v1456 = vunpack.c.l.b16 %v1441
  %v1457 = vunpack.c.l.b16 %v1442
  %v1458 = vpack.c.b16 %v1455, %v1454
  %v1459 = vpack.c.b16 %v1457, %v1456
  %v1463 = vsel %vm184, %v1436, 0
  %v1466 = vsel %vm184, %v1437, 0
  %v1469 = vsel %vm184, %v1438, 0
  %1471 = vmatprep.subr.bf16.mxu0 0
  %1472 = vmatpush1.bf16.msra.mxu0 %v1458
  %1473 = vmatprep.subr.bf16.mxu0 0
  %1474 = vmatpush1.bf16.msra.mxu0 %v1459
  %1475 = vmatprep.subr.bf16.mxu0 0
  %1476 = vmatpush1.bf16.msra.mxu0 0
  %1477 = vmatprep.subr.bf16.mxu0 0
  %1478 = vmatpush1.bf16.msra.mxu0 0
  %1479 = vmatprep.subr.bf16.mxu0 0
  %1480 = vmatpush1.bf16.msra.mxu0 0
  %1481 = vmatprep.subr.bf16.mxu0 0
  %1482 = vmatpush1.bf16.msra.mxu0 0
  %1483 = vmatprep.subr.bf16.mxu0 0
  %1484 = vmatpush1.bf16.msra.mxu0 0
  %1485 = vmatprep.subr.bf16.mxu0 0
  %1486 = vmatpush1.bf16.msra.mxu0 0
  %1487 = vmatprep.subr.bf16.mxu0 0
  %1488 = vmatpush1.bf16.msra.mxu0 0
  %1489 = vmatprep.subr.bf16.mxu0 0
  %1490 = vmatpush1.bf16.msra.mxu0 0
  %1491 = vmatprep.subr.bf16.mxu0 0
  %1492 = vmatpush1.bf16.msra.mxu0 0
  %1493 = vmatprep.subr.bf16.mxu0 0
  %1494 = vmatpush1.bf16.msra.mxu0 0
  %1495 = vmatprep.subr.bf16.mxu0 0
  %1496 = vmatpush1.bf16.msra.mxu0 0
  %1497 = vmatprep.subr.bf16.mxu0 0
  %1498 = vmatpush1.bf16.msra.mxu0 0
  %1499 = vmatprep.subr.bf16.mxu0 0
  %1500 = vmatpush1.bf16.msra.mxu0 0
  %1501 = vmatprep.subr.bf16.mxu0 0
  %1502 = vmatpush1.bf16.msra.mxu0 0
  %1503 = vmatprep.mubr.bf16.mxu0 0
  %1504 = vmatmul.mubr.bf16.gmra.mrb[0].mxu0 %v1463
  %v1505 = vpop.f32.mrb[0].mxu0
  %v1506 = vadd.f32 %v1448, %v1505
  %v1507 = vpop.f32.mrb[0].mxu0
  %v1508 = vpop.f32.mrb[0].mxu0
  %v1509 = vadd.f32 %v1448, %v1508
  %v1510 = vpop.f32.mrb[0].mxu0
  %1511 = vmatprep.mubr.bf16.mxu0 0
  %1512 = vmatmul.mubr.bf16.gmra.mrb[0].mxu0 %v1466
  %v1513 = vpop.f32.mrb[0].mxu0
  %v1514 = vadd.f32 %v1448, %v1513
  %v1515 = vpop.f32.mrb[0].mxu0
  %v1516 = vpop.f32.mrb[0].mxu0
  %v1517 = vadd.f32 %v1448, %v1516
  %v1518 = vpop.f32.mrb[0].mxu0
  %1519 = vmatprep.mubr.bf16.mxu0 0
  %1520 = vmatmul.mubr.bf16.gmra.mrb[0].mxu0 %v1469
  %v1521 = vpop.f32.mrb[0].mxu0
  %v1522 = vadd.f32 %v1448, %v1521
  %v1523 = vpop.f32.mrb[0].mxu0
  %v1524 = vpop.f32.mrb[0].mxu0
  %v1525 = vpop.f32.mrb[0].mxu0
  %1526 = vdwg.mxu0
  %v1527 = vmax.f32 %v1506, 0.0
  %v1528 = vmax.f32 %v1509, 0.0
  %v1529 = vmax.f32 %v1514, 0.0
  %v1530 = vmax.f32 %v1517, 0.0
  %v1531 = vmax.f32 %v1522, 0.0
  %v1532 = vpack.c.bf16 %v1528, %v1527
  %v1533 = vpack.c.bf16 %v1530, %v1529
  %v1534 = vpack.c.bf16 %v1531, %v1531
  %v1535 = vld [vmem:[%s13] sm:$0xf]
  %v1536 = vld [vmem:[%s13 + $0x4] sm:$0xf]
  %v1537 = vld [vmem:[%s13 + $0x8] sm:$0xf]
  %v1538 = vld [vmem:[%s13 + $0xc] sm:$0xf]
  %v1539 = vld [vmem:[%s13 + $0x10] sm:$0xf]
  %v1540 = vld [vmem:[%s13 + $0x14] sm:$0xf]
  %v1541 = vld [vmem:[%s13 + $0x18] sm:$0xf]
  %v1542 = vld [vmem:[%s13 + $0x1c] sm:$0xf]
  %v1543 = vld [vmem:[%s13 + $0x20] sm:$0xf]
  %v1544 = vld [vmem:[%s13 + $0x24] sm:$0xf]
  %v1545 = vld [vmem:[%s13 + $0x28] sm:$0xf]
  %v1546 = vld [vmem:[%s13 + $0x2c] sm:$0xf]
  %v1547 = vld [vmem:[%s13 + $0x30] sm:$0xf]
  %v1548 = vld [vmem:[%s13 + $0x34] sm:$0xf]
  %v1549 = vld [vmem:[%s13 + $0x38] sm:$0xf]
  %v1550 = vld [vmem:[%s13 + $0x3c] sm:$0xf]
  %v1551 = vld [vmem:[%s14] sm:$0x1]
  %v1553 = vlaneseq
  %v1554 = vshrl.u32 %v1553, 7
  %v1555 = vsub.s32 0, %v1554
  %v1556 = vrot.slane %v1551, %v1555
  %v1574 = vunpack.c.l.b16 %v1535
  %v1575 = vunpack.c.l.b16 %v1536
  %v1576 = vunpack.c.l.b16 %v1537
  %v1577 = vunpack.c.l.b16 %v1538
  %v1578 = vunpack.c.l.b16 %v1539
  %v1579 = vunpack.c.l.b16 %v1540
  %v1580 = vunpack.c.l.b16 %v1541
  %v1581 = vunpack.c.l.b16 %v1542
  %v1582 = vunpack.c.l.b16 %v1543
  %v1583 = vunpack.c.l.b16 %v1544
  %v1584 = vunpack.c.l.b16 %v1545
  %v1585 = vunpack.c.l.b16 %v1546
  %v1586 = vunpack.c.l.b16 %v1547
  %v1587 = vunpack.c.l.b16 %v1548
  %v1588 = vunpack.c.l.b16 %v1549
  %v1589 = vunpack.c.l.b16 %v1550
  %v1590 = vpack.c.b16 %v1575, %v1574
  %v1591 = vpack.c.b16 %v1577, %v1576
  %v1592 = vpack.c.b16 %v1579, %v1578
  %v1593 = vpack.c.b16 %v1581, %v1580
  %v1594 = vpack.c.b16 %v1583, %v1582
  %v1595 = vpack.c.b16 %v1585, %v1584
  %v1596 = vpack.c.b16 %v1587, %v1586
  %v1597 = vpack.c.b16 %v1589, %v1588
  %1606 = vmatprep.subr.bf16.mxu0 0
  %1607 = vmatpush1.bf16.msra.mxu0 %v1590
  %1608 = vmatprep.subr.bf16.mxu0 0
  %1609 = vmatpush1.bf16.msra.mxu0 %v1591
  %1610 = vmatprep.subr.bf16.mxu0 0
  %1611 = vmatpush1.bf16.msra.mxu0 %v1592
  %1612 = vmatprep.subr.bf16.mxu0 0
  %1613 = vmatpush1.bf16.msra.mxu0 %v1593
  %1614 = vmatprep.subr.bf16.mxu0 0
  %1615 = vmatpush1.bf16.msra.mxu0 %v1594
  %1616 = vmatprep.subr.bf16.mxu0 0
  %1617 = vmatpush1.bf16.msra.mxu0 %v1595
  %1618 = vmatprep.subr.bf16.mxu0 0
  %1619 = vmatpush1.bf16.msra.mxu0 %v1596
  %1620 = vmatprep.subr.bf16.mxu0 0
  %1621 = vmatpush1.bf16.msra.mxu0 %v1597
  %1622 = vmatprep.subr.bf16.mxu0 0
  %1623 = vmatpush1.bf16.msra.mxu0 0
  %1624 = vmatprep.subr.bf16.mxu0 0
  %1625 = vmatpush1.bf16.msra.mxu0 0
  %1626 = vmatprep.subr.bf16.mxu0 0
  %1627 = vmatpush1.bf16.msra.mxu0 0
  %1628 = vmatprep.subr.bf16.mxu0 0
  %1629 = vmatpush1.bf16.msra.mxu0 0
  %1630 = vmatprep.subr.bf16.mxu0 0
  %1631 = vmatpush1.bf16.msra.mxu0 0
  %1632 = vmatprep.subr.bf16.mxu0 0
  %1633 = vmatpush1.bf16.msra.mxu0 0
  %1634 = vmatprep.subr.bf16.mxu0 0
  %1635 = vmatpush1.bf16.msra.mxu0 0
  %1636 = vmatprep.subr.bf16.mxu0 0
  %1637 = vmatpush1.bf16.msra.mxu0 0
  %1638 = vmatprep.mubr.bf16.mxu0 0
  %1639 = vmatmul.mubr.bf16.gmra.mrb[0].mxu0 %v1532
  %v1640 = vpop.f32.mrb[0].mxu0
  %v1641 = vadd.f32 %v1556, %v1640
  %v1642 = vpop.f32.mrb[0].mxu0
  %v1643 = vpop.f32.mrb[0].mxu0
  %v1644 = vadd.f32 %v1556, %v1643
  %v1645 = vpop.f32.mrb[0].mxu0
  %1646 = vmatprep.mubr.bf16.mxu0 0
  %1647 = vmatmul.mubr.bf16.gmra.mrb[0].mxu0 %v1533
  %v1648 = vpop.f32.mrb[0].mxu0
  %v1649 = vadd.f32 %v1556, %v1648
  %v1650 = vpop.f32.mrb[0].mxu0
  %v1651 = vpop.f32.mrb[0].mxu0
  %v1652 = vadd.f32 %v1556, %v1651
  %v1653 = vpop.f32.mrb[0].mxu0
  %1654 = vmatprep.mubr.bf16.mxu0 0
  %1655 = vmatmul.mubr.bf16.gmra.mrb[0].mxu0 %v1534
  %v1656 = vpop.f32.mrb[0].mxu0
  %v1657 = vadd.f32 %v1556, %v1656
  %v1658 = vpop.f32.mrb[0].mxu0
  %v1659 = vpop.f32.mrb[0].mxu0
  %v1660 = vpop.f32.mrb[0].mxu0
  %1661 = vdwg.mxu0
  %v1662 = vadd.f32 %v1431, %v1641
  %v1663 = vadd.f32 %v1432, %v1644
  %v1664 = vadd.f32 %v1433, %v1649
  %v1665 = vadd.f32 %v1434, %v1652
  %v1666 = vadd.f32 %v1435, %v1657
  %v1667 = vsel %vm184, %v1662, 0.0
  %1668 = vadd.xlane.f32.xlu0 %v1667
  %v1669 = vpop.xlane.xlu0 %1668
  %v1670 = vsel %vm184, %v1663, 0.0
  %1671 = vadd.xlane.f32.xlu0 %v1670
  %v1672 = vpop.xlane.xlu0 %1671
  %v1673 = vsel %vm184, %v1664, 0.0
  %1674 = vadd.xlane.f32.xlu0 %v1673
  %v1675 = vpop.xlane.xlu0 %1674
  %v1676 = vsel %vm184, %v1665, 0.0
  %1677 = vadd.xlane.f32.xlu0 %v1676
  %v1678 = vpop.xlane.xlu0 %1677
  %v1679 = vsel %vm184, %v1666, 0.0
  %1680 = vadd.xlane.f32.xlu0 %v1679
  %v1681 = vpop.xlane.xlu0 %1680
  %v1682 = vmul.f32 %v1669, %v1361
  %v1683 = vmul.f32 %v1672, %v1361
  %v1684 = vmul.f32 %v1675, %v1361
  %v1685 = vmul.f32 %v1678, %v1361
  %v1686 = vmul.f32 %v1681, %v1361
  %v1687 = vsub.f32 %v1662, %v1682
  %v1688 = vsub.f32 %v1663, %v1683
  %v1689 = vsub.f32 %v1664, %v1684
  %v1690 = vsub.f32 %v1665, %v1685
  %v1691 = vsub.f32 %v1666, %v1686
  %v1692 = vmul.f32 %v1687, %v1687
  %v1693 = vmul.f32 %v1688, %v1688
  %v1694 = vmul.f32 %v1689, %v1689
  %v1695 = vmul.f32 %v1690, %v1690
  %v1696 = vmul.f32 %v1691, %v1691
  %v1697 = vsel %vm184, %v1692, 0.0
  %1698 = vadd.xlane.f32.xlu0 %v1697
  %v1699 = vpop.xlane.xlu0 %1698
  %v1700 = vsel %vm184, %v1693, 0.0
  %1701 = vadd.xlane.f32.xlu0 %v1700
  %v1702 = vpop.xlane.xlu0 %1701
  %v1703 = vsel %vm184, %v1694, 0.0
  %1704 = vadd.xlane.f32.xlu0 %v1703
  %v1705 = vpop.xlane.xlu0 %1704
  %v1706 = vsel %vm184, %v1695, 0.0
  %1707 = vadd.xlane.f32.xlu0 %v1706
  %v1708 = vpop.xlane.xlu0 %1707
  %v1709 = vsel %vm184, %v1696, 0.0
  %1710 = vadd.xlane.f32.xlu0 %v1709
  %v1711 = vpop.xlane.xlu0 %1710
  %v1712 = vmul.f32 %v1699, %v1361
  %v1713 = vmul.f32 %v1702, %v1361
  %v1714 = vmul.f32 %v1705, %v1361
  %v1715 = vmul.f32 %v1708, %v1361
  %v1716 = vmul.f32 %v1711, %v1361
  %v1717 = vadd.f32 %v1712, 1e-05
  %v1718 = vadd.f32 %v1713, 1e-05
  %v1719 = vadd.f32 %v1714, 1e-05
  %v1720 = vadd.f32 %v1715, 1e-05
  %v1721 = vadd.f32 %v1716, 1e-05
  %v1722 = vrsqrt.pop %v1717
  %v1723 = vrsqrt.pop %v1718
  %v1724 = vrsqrt.pop %v1719
  %v1725 = vrsqrt.pop %v1720
  %v1726 = vrsqrt.pop %v1721
  %v1727 = vmul.f32 %v1687, %v1722
  %v1728 = vmul.f32 %v1688, %v1723
  %v1729 = vmul.f32 %v1689, %v1724
  %v1730 = vmul.f32 %v1690, %v1725
  %v1731 = vmul.f32 %v1691, %v1726
  %v1732 = vld [vmem:[%s15] sm:$0x1]
  %v1734 = vlaneseq
  %v1735 = vshrl.u32 %v1734, 7
  %v1736 = vsub.s32 0, %v1735
  %v1737 = vrot.slane %v1732, %v1736
  %v1739 = vmul.f32 %v1727, %v1737
  %v1740 = vmul.f32 %v1728, %v1737
  %v1741 = vmul.f32 %v1729, %v1737
  %v1742 = vmul.f32 %v1730, %v1737
  %v1743 = vmul.f32 %v1731, %v1737
  %v1744 = vld [vmem:[%s16] sm:$0x1]
  %v1746 = vlaneseq
  %v1747 = vshrl.u32 %v1746, 7
  %v1748 = vsub.s32 0, %v1747
  %v1749 = vrot.slane %v1744, %v1748
  %v1751 = vadd.f32 %v1739, %v1749
  %v1752 = vadd.f32 %v1740, %v1749
  %v1753 = vadd.f32 %v1741, %v1749
  %v1754 = vadd.f32 %v1742, %v1749
  %v1755 = vadd.f32 %v1743, %v1749
  %v1756 = vpack.c.bf16 %v1752, %v1751
  %v1757 = vpack.c.bf16 %v1754, %v1753
  %v1758 = vpack.c.bf16 %v1755, %v1755
  %s1759 = scalar_lea.vmem %s5, 16
  %v1760 = vld [vmem:[%s1759] sm:$0xf]
  %v1761 = vld [vmem:[%s1759 + $0x4] sm:$0xf]
  %v1762 = vld [vmem:[%s1759 + $0x8] sm:$0xf]
  %v1763 = vld [vmem:[%s1759 + $0xc] sm:$0xf]
  %s1764 = scalar_lea.vmem %s6, 1
  %v1765 = vld [vmem:[%s1764] sm:$0x1]
  %v1767 = vlaneseq
  %v1768 = vshrl.u32 %v1767, 7
  %v1769 = vsub.s32 0, %v1768
  %v1770 = vrot.slane %v1765, %v1769
  %v1776 = vunpack.c.l.b16 %v1760
  %v1777 = vunpack.c.l.b16 %v1761
  %v1778 = vunpack.c.l.b16 %v1762
  %v1779 = vunpack.c.l.b16 %v1763
  %v1780 = vpack.c.b16 %v1777, %v1776
  %v1781 = vpack.c.b16 %v1779, %v1778
  %v1785 = vsel %vm184, %v1756, 0
  %v1788 = vsel %vm184, %v1757, 0
  %v1791 = vsel %vm184, %v1758, 0
  %1793 = vmatprep.subr.bf16.mxu0 0
  %1794 = vmatpush1.bf16.msra.mxu0 %v1780
  %1795 = vmatprep.subr.bf16.mxu0 0
  %1796 = vmatpush1.bf16.msra.mxu0 %v1781
  %1797 = vmatprep.subr.bf16.mxu0 0
  %1798 = vmatpush1.bf16.msra.mxu0 0
  %1799 = vmatprep.subr.bf16.mxu0 0
  %1800 = vmatpush1.bf16.msra.mxu0 0
  %1801 = vmatprep.subr.bf16.mxu0 0
  %1802 = vmatpush1.bf16.msra.mxu0 0
  %1803 = vmatprep.subr.bf16.mxu0 0
  %1804 = vmatpush1.bf16.msra.mxu0 0
  %1805 = vmatprep.subr.bf16.mxu0 0
  %1806 = vmatpush1.bf16.msra.mxu0 0
  %1807 = vmatprep.subr.bf16.mxu0 0
  %1808 = vmatpush1.bf16.msra.mxu0 0
  %1809 = vmatprep.subr.bf16.mxu0 0
  %1810 = vmatpush1.bf16.msra.mxu0 0
  %1811 = vmatprep.subr.bf16.mxu0 0
  %1812 = vmatpush1.bf16.msra.mxu0 0
  %1813 = vmatprep.subr.bf16.mxu0 0
  %1814 = vmatpush1.bf16.msra.mxu0 0
  %1815 = vmatprep.subr.bf16.mxu0 0
  %1816 = vmatpush1.bf16.msra.mxu0 0
  %1817 = vmatprep.subr.bf16.mxu0 0
  %1818 = vmatpush1.bf16.msra.mxu0 0
  %1819 = vmatprep.subr.bf16.mxu0 0
  %1820 = vmatpush1.bf16.msra.mxu0 0
  %1821 = vmatprep.subr.bf16.mxu0 0
  %1822 = vmatpush1.bf16.msra.mxu0 0
  %1823 = vmatprep.subr.bf16.mxu0 0
  %1824 = vmatpush1.bf16.msra.mxu0 0
  %1825 = vmatprep.mubr.bf16.mxu0 0
  %1826 = vmatmul.mubr.bf16.gmra.mrb[0].mxu0 %v1785
  %v1827 = vpop.f32.mrb[0].mxu0
  %v1828 = vadd.f32 %v1770, %v1827
  %v1829 = vpop.f32.mrb[0].mxu0
  %v1830 = vpop.f32.mrb[0].mxu0
  %v1831 = vadd.f32 %v1770, %v1830
  %v1832 = vpop.f32.mrb[0].mxu0
  %1833 = vmatprep.mubr.bf16.mxu0 0
  %1834 = vmatmul.mubr.bf16.gmra.mrb[0].mxu0 %v1788
  %v1835 = vpop.f32.mrb[0].mxu0
  %v1836 = vadd.f32 %v1770, %v1835
  %v1837 = vpop.f32.mrb[0].mxu0
  %v1838 = vpop.f32.mrb[0].mxu0
  %v1839 = vadd.f32 %v1770, %v1838
  %v1840 = vpop.f32.mrb[0].mxu0
  %1841 = vmatprep.mubr.bf16.mxu0 0
  %1842 = vmatmul.mubr.bf16.gmra.mrb[0].mxu0 %v1791
  %v1843 = vpop.f32.mrb[0].mxu0
  %v1844 = vadd.f32 %v1770, %v1843
  %v1845 = vpop.f32.mrb[0].mxu0
  %v1846 = vpop.f32.mrb[0].mxu0
  %v1847 = vpop.f32.mrb[0].mxu0
  %1848 = vdwg.mxu0
  %v1849 = vpack.c.bf16 %v1831, %v1828
  %v1850 = vpack.c.bf16 %v1839, %v1836
  %v1851 = vpack.c.bf16 %v1844, %v1844
  %1855 = vrot.lane.b32.xlu0 %v1849, 96
  %v1856 = vpop.permute.xlu0 %1855
  %1857 = vrot.lane.b32.xlu0 %v1850, 96
  %v1858 = vpop.permute.xlu0 %1857
  %1859 = vrot.lane.b32.xlu0 %v1851, 96
  %v1860 = vpop.permute.xlu0 %1859
  %v1862 = vsel %vm262, %v1849, 0
  %v1865 = vsel %vm262, %v1850, 0
  %v1868 = vsel %vm262, %v1851, 0
  %v1871 = vsel %vm262, %v1856, 0
  %v1874 = vsel %vm262, %v1858, 0
  %v1877 = vsel %vm262, %v1860, 0
  %1879 = vmatprep.subr.bf16.mxu0 0
  %1880 = vmatpush1.bf16.xpose.msra.mxu0 %v1871
  %1881 = vmatprep.subr.bf16.mxu0 0
  %1882 = vmatpush1.bf16.xpose.msra.mxu0 %v1874
  %1883 = vmatprep.subr.bf16.mxu0 0
  %1884 = vmatpush1.bf16.xpose.msra.mxu0 %v1877
  %1885 = vmatprep.subr.bf16.mxu0 0
  %1886 = vmatpush1.bf16.xpose.msra.mxu0 0
  %1887 = vmatprep.subr.bf16.mxu0 0
  %1888 = vmatpush1.bf16.xpose.msra.mxu0 0
  %1889 = vmatprep.subr.bf16.mxu0 0
  %1890 = vmatpush1.bf16.xpose.msra.mxu0 0
  %1891 = vmatprep.subr.bf16.mxu0 0
  %1892 = vmatpush1.bf16.xpose.msra.mxu0 0
  %1893 = vmatprep.subr.bf16.mxu0 0
  %1894 = vmatpush1.bf16.xpose.msra.mxu0 0
  %1895 = vmatprep.subr.bf16.mxu0 0
  %1896 = vmatpush1.bf16.xpose.msra.mxu0 0
  %1897 = vmatprep.subr.bf16.mxu0 0
  %1898 = vmatpush1.bf16.xpose.msra.mxu0 0
  %1899 = vmatprep.subr.bf16.mxu0 0
  %1900 = vmatpush1.bf16.xpose.msra.mxu0 0
  %1901 = vmatprep.subr.bf16.mxu0 0
  %1902 = vmatpush1.bf16.xpose.msra.mxu0 0
  %1903 = vmatprep.subr.bf16.mxu0 0
  %1904 = vmatpush1.bf16.xpose.msra.mxu0 0
  %1905 = vmatprep.subr.bf16.mxu0 0
  %1906 = vmatpush1.bf16.xpose.msra.mxu0 0
  %1907 = vmatprep.subr.bf16.mxu0 0
  %1908 = vmatpush1.bf16.xpose.msra.mxu0 0
  %1909 = vmatprep.subr.bf16.mxu0 0
  %1910 = vmatpush1.bf16.xpose.msra.mxu0 0
  %1911 = vmatprep.mubr.bf16.mxu0 0
  %1912 = vmatmul.mubr.bf16.gmra.mrb[0].mxu0 %v1862
  %v1913 = vpop.f32.mrb[0].mxu0
  %v1914 = vadd.f32 0.0, %v1913
  %v1915 = vpop.f32.mrb[0].mxu0
  %v1916 = vpop.f32.mrb[0].mxu0
  %v1917 = vadd.f32 0.0, %v1916
  %v1918 = vpop.f32.mrb[0].mxu0
  %1919 = vmatprep.mubr.bf16.mxu0 0
  %1920 = vmatmul.mubr.bf16.gmra.mrb[0].mxu0 %v1865
  %v1921 = vpop.f32.mrb[0].mxu0
  %v1922 = vadd.f32 0.0, %v1921
  %v1923 = vpop.f32.mrb[0].mxu0
  %v1924 = vpop.f32.mrb[0].mxu0
  %v1925 = vadd.f32 0.0, %v1924
  %v1926 = vpop.f32.mrb[0].mxu0
  %1927 = vmatprep.mubr.bf16.mxu0 0
  %1928 = vmatmul.mubr.bf16.gmra.mrb[0].mxu0 %v1868
  %v1929 = vpop.f32.mrb[0].mxu0
  %v1930 = vadd.f32 0.0, %v1929
  %v1931 = vpop.f32.mrb[0].mxu0
  %v1932 = vpop.f32.mrb[0].mxu0
  %v1933 = vpop.f32.mrb[0].mxu0
  %1934 = vdwg.mxu0
  %v1935 = vmul.f32 %v1914, 0.35355338
  %v1936 = vmul.f32 %v1917, 0.35355338
  %v1937 = vmul.f32 %v1922, 0.35355338
  %v1938 = vmul.f32 %v1925, 0.35355338
  %v1939 = vmul.f32 %v1930, 0.35355338
  %v1940 = vadd.f32 %v1935, %v57
  %v1941 = vadd.f32 %v1936, %v58
  %v1942 = vadd.f32 %v1937, %v59
  %v1943 = vadd.f32 %v1938, %v60
  %v1944 = vadd.f32 %v1939, %v61
  %v1945 = vsel %vm347, %v1940, -inf
  %1946 = vmax.xlane.f32.xlu0 %v1945
  %v1947 = vpop.xlane.xlu0 %1946
  %v1948 = vsel %vm347, %v1941, -inf
  %1949 = vmax.xlane.f32.xlu0 %v1948
  %v1950 = vpop.xlane.xlu0 %1949
  %v1951 = vsel %vm347, %v1942, -inf
  %1952 = vmax.xlane.f32.xlu0 %v1951
  %v1953 = vpop.xlane.xlu0 %1952
  %v1954 = vsel %vm347, %v1943, -inf
  %1955 = vmax.xlane.f32.xlu0 %v1954
  %v1956 = vpop.xlane.xlu0 %1955
  %v1957 = vsel %vm347, %v1944, -inf
  %1958 = vmax.xlane.f32.xlu0 %v1957
  %v1959 = vpop.xlane.xlu0 %1958
  %v1960 = vsub.f32 %v1940, %v1947
  %v1961 = vsub.f32 %v1941, %v1950
  %v1962 = vsub.f32 %v1942, %v1953
  %v1963 = vsub.f32 %v1943, %v1956
  %v1964 = vsub.f32 %v1944, %v1959
  %v1965 = vmul.f32 %v1960, 1.442695
  %v1966 = vpow.pop %v1965
  %v1967 = vmul.f32 %v1961, 1.442695
  %v1968 = vpow.pop %v1967
  %v1969 = vmul.f32 %v1962, 1.442695
  %v1970 = vpow.pop %v1969
  %v1971 = vmul.f32 %v1963, 1.442695
  %v1972 = vpow.pop %v1971
  %v1973 = vmul.f32 %v1964, 1.442695
  %v1974 = vpow.pop %v1973
  %v1975 = vsel %vm347, %v1966, 0.0
  %1976 = vadd.xlane.f32.xlu0 %v1975
  %v1977 = vpop.xlane.xlu0 %1976
  %v1978 = vsel %vm347, %v1968, 0.0
  %1979 = vadd.xlane.f32.xlu0 %v1978
  %v1980 = vpop.xlane.xlu0 %1979
  %v1981 = vsel %vm347, %v1970, 0.0
  %1982 = vadd.xlane.f32.xlu0 %v1981
  %v1983 = vpop.xlane.xlu0 %1982
  %v1984 = vsel %vm347, %v1972, 0.0
  %1985 = vadd.xlane.f32.xlu0 %v1984
  %v1986 = vpop.xlane.xlu0 %1985
  %v1987 = vsel %vm347, %v1974, 0.0
  %1988 = vadd.xlane.f32.xlu0 %v1987
  %v1989 = vpop.xlane.xlu0 %1988
  %v1990 = vrcp.pop %v1977
  %v1991 = vrcp.pop %v1980
  %v1992 = vrcp.pop %v1983
  %v1993 = vrcp.pop %v1986
  %v1994 = vrcp.pop %v1989
  %v1995 = vmul.f32 %v1966, %v1990
  %v1996 = vmul.f32 %v1968, %v1991
  %v1997 = vmul.f32 %v1970, %v1992
  %v1998 = vmul.f32 %v1972, %v1993
  %v1999 = vmul.f32 %v1974, %v1994
  %v2000 = vpack.c.bf16 %v1996, %v1995
  %v2001 = vpack.c.bf16 %v1998, %v1997
  %v2002 = vpack.c.bf16 %v1999, %v1999
  %2003 = vrot.lane.b32.xlu0 %v1849, 64
  %v2004 = vpop.permute.xlu0 %2003
  %2005 = vrot.lane.b32.xlu0 %v1850, 64
  %v2006 = vpop.permute.xlu0 %2005
  %2007 = vrot.lane.b32.xlu0 %v1851, 64
  %v2008 = vpop.permute.xlu0 %2007
  %v2012 = vsel %vm347, %v2000, 0
  %v2015 = vsel %vm347, %v2001, 0
  %v2018 = vsel %vm347, %v2002, 0
  %v2021 = vsel %vm423, %v2008, 0
  %2023 = vmatprep.subr.bf16.mxu0 0
  %2024 = vmatpush1.bf16.msra.mxu0 %v2004
  %2025 = vmatprep.subr.bf16.mxu0 0
  %2026 = vmatpush1.bf16.msra.mxu0 %v2006
  %2027 = vmatprep.subr.bf16.mxu0 0
  %2028 = vmatpush1.bf16.msra.mxu0 %v2021
  %2029 = vmatprep.subr.bf16.mxu0 0
  %2030 = vmatpush1.bf16.msra.mxu0 0
  %2031 = vmatprep.subr.bf16.mxu0 0
  %2032 = vmatpush1.bf16.msra.mxu0 0
  %2033 = vmatprep.subr.bf16.mxu0 0
  %2034 = vmatpush1.bf16.msra.mxu0 0
  %2035 = vmatprep.subr.bf16.mxu0 0
  %2036 = vmatpush1.bf16.msra.mxu0 0
  %2037 = vmatprep.subr.bf16.mxu0 0
  %2038 = vmatpush1.bf16.msra.mxu0 0
  %2039 = vmatprep.subr.bf16.mxu0 0
  %2040 = vmatpush1.bf16.msra.mxu0 0
  %2041 = vmatprep.subr.bf16.mxu0 0
  %2042 = vmatpush1.bf16.msra.mxu0 0
  %2043 = vmatprep.subr.bf16.mxu0 0
  %2044 = vmatpush1.bf16.msra.mxu0 0
  %2045 = vmatprep.subr.bf16.mxu0 0
  %2046 = vmatpush1.bf16.msra.mxu0 0
  %2047 = vmatprep.subr.bf16.mxu0 0
  %2048 = vmatpush1.bf16.msra.mxu0 0
  %2049 = vmatprep.subr.bf16.mxu0 0
  %2050 = vmatpush1.bf16.msra.mxu0 0
  %2051 = vmatprep.subr.bf16.mxu0 0
  %2052 = vmatpush1.bf16.msra.mxu0 0
  %2053 = vmatprep.subr.bf16.mxu0 0
  %2054 = vmatpush1.bf16.msra.mxu0 0
  %2055 = vmatprep.mubr.bf16.mxu0 0
  %2056 = vmatmul.mubr.bf16.gmra.mrb[0].mxu0 %v2012
  %v2057 = vpop.f32.mrb[0].mxu0
  %v2058 = vadd.f32 0.0, %v2057
  %v2059 = vpop.f32.mrb[0].mxu0
  %v2060 = vpop.f32.mrb[0].mxu0
  %v2061 = vadd.f32 0.0, %v2060
  %v2062 = vpop.f32.mrb[0].mxu0
  %2063 = vmatprep.mubr.bf16.mxu0 0
  %2064 = vmatmul.mubr.bf16.gmra.mrb[0].mxu0 %v2015
  %v2065 = vpop.f32.mrb[0].mxu0
  %v2066 = vadd.f32 0.0, %v2065
  %v2067 = vpop.f32.mrb[0].mxu0
  %v2068 = vpop.f32.mrb[0].mxu0
  %v2069 = vadd.f32 0.0, %v2068
  %v2070 = vpop.f32.mrb[0].mxu0
  %2071 = vmatprep.mubr.bf16.mxu0 0
  %2072 = vmatmul.mubr.bf16.gmra.mrb[0].mxu0 %v2018
  %v2073 = vpop.f32.mrb[0].mxu0
  %v2074 = vadd.f32 0.0, %v2073
  %v2075 = vpop.f32.mrb[0].mxu0
  %v2076 = vpop.f32.mrb[0].mxu0
  %v2077 = vpop.f32.mrb[0].mxu0
  %2078 = vdwg.mxu0
  %2079 = vrot.lane.b32.xlu0 %v1849, 120
  %v2080 = vpop.permute.xlu0 %2079
  %2081 = vrot.lane.b32.xlu0 %v1850, 120
  %v2082 = vpop.permute.xlu0 %2081
  %2083 = vrot.lane.b32.xlu0 %v1851, 120
  %v2084 = vpop.permute.xlu0 %2083
  %2085 = vrot.lane.b32.xlu0 %v1849, 88
  %v2086 = vpop.permute.xlu0 %2085
  %2087 = vrot.lane.b32.xlu0 %v1850, 88
  %v2088 = vpop.permute.xlu0 %2087
  %2089 = vrot.lane.b32.xlu0 %v1851, 88
  %v2090 = vpop.permute.xlu0 %2089
  %v2092 = vsel %vm262, %v2080, 0
  %v2095 = vsel %vm262, %v2082, 0
  %v2098 = vsel %vm262, %v2084, 0
  %v2101 = vsel %vm262, %v2086, 0
  %v2104 = vsel %vm262, %v2088, 0
  %v2107 = vsel %vm262, %v2090, 0
  %2109 = vmatprep.subr.bf16.mxu0 0
  %2110 = vmatpush1.bf16.xpose.msra.mxu0 %v2101
  %2111 = vmatprep.subr.bf16.mxu0 0
  %2112 = vmatpush1.bf16.xpose.msra.mxu0 %v2104
  %2113 = vmatprep.subr.bf16.mxu0 0
  %2114 = vmatpush1.bf16.xpose.msra.mxu0 %v2107
  %2115 = vmatprep.subr.bf16.mxu0 0
  %2116 = vmatpush1.bf16.xpose.msra.mxu0 0
  %2117 = vmatprep.subr.bf16.mxu0 0
  %2118 = vmatpush1.bf16.xpose.msra.mxu0 0
  %2119 = vmatprep.subr.bf16.mxu0 0
  %2120 = vmatpush1.bf16.xpose.msra.mxu0 0
  %2121 = vmatprep.subr.bf16.mxu0 0
  %2122 = vmatpush1.bf16.xpose.msra.mxu0 0
  %2123 = vmatprep.subr.bf16.mxu0 0
  %2124 = vmatpush1.bf16.xpose.msra.mxu0 0
  %2125 = vmatprep.subr.bf16.mxu0 0
  %2126 = vmatpush1.bf16.xpose.msra.mxu0 0
  %2127 = vmatprep.subr.bf16.mxu0 0
  %2128 = vmatpush1.bf16.xpose.msra.mxu0 0
  %2129 = vmatprep.subr.bf16.mxu0 0
  %2130 = vmatpush1.bf16.xpose.msra.mxu0 0
  %2131 = vmatprep.subr.bf16.mxu0 0
  %2132 = vmatpush1.bf16.xpose.msra.mxu0 0
  %2133 = vmatprep.subr.bf16.mxu0 0
  %2134 = vmatpush1.bf16.xpose.msra.mxu0 0
  %2135 = vmatprep.subr.bf16.mxu0 0
  %2136 = vmatpush1.bf16.xpose.msra.mxu0 0
  %2137 = vmatprep.subr.bf16.mxu0 0
  %2138 = vmatpush1.bf16.xpose.msra.mxu0 0
  %2139 = vmatprep.subr.bf16.mxu0 0
  %2140 = vmatpush1.bf16.xpose.msra.mxu0 0
  %2141 = vmatprep.mubr.bf16.mxu0 0
  %2142 = vmatmul.mubr.bf16.gmra.mrb[0].mxu0 %v2092
  %v2143 = vpop.f32.mrb[0].mxu0
  %v2144 = vadd.f32 0.0, %v2143
  %v2145 = vpop.f32.mrb[0].mxu0
  %v2146 = vpop.f32.mrb[0].mxu0
  %v2147 = vadd.f32 0.0, %v2146
  %v2148 = vpop.f32.mrb[0].mxu0
  %2149 = vmatprep.mubr.bf16.mxu0 0
  %2150 = vmatmul.mubr.bf16.gmra.mrb[0].mxu0 %v2095
  %v2151 = vpop.f32.mrb[0].mxu0
  %v2152 = vadd.f32 0.0, %v2151
  %v2153 = vpop.f32.mrb[0].mxu0
  %v2154 = vpop.f32.mrb[0].mxu0
  %v2155 = vadd.f32 0.0, %v2154
  %v2156 = vpop.f32.mrb[0].mxu0
  %2157 = vmatprep.mubr.bf16.mxu0 0
  %2158 = vmatmul.mubr.bf16.gmra.mrb[0].mxu0 %v2098
  %v2159 = vpop.f32.mrb[0].mxu0
  %v2160 = vadd.f32 0.0, %v2159
  %v2161 = vpop.f32.mrb[0].mxu0
  %v2162 = vpop.f32.mrb[0].mxu0
  %v2163 = vpop.f32.mrb[0].mxu0
  %2164 = vdwg.mxu0
  %v2165 = vmul.f32 %v2144, 0.35355338
  %v2166 = vmul.f32 %v2147, 0.35355338
  %v2167 = vmul.f32 %v2152, 0.35355338
  %v2168 = vmul.f32 %v2155, 0.35355338
  %v2169 = vmul.f32 %v2160, 0.35355338
  %v2170 = vadd.f32 %v2165, %v57
  %v2171 = vadd.f32 %v2166, %v58
  %v2172 = vadd.f32 %v2167, %v59
  %v2173 = vadd.f32 %v2168, %v60
  %v2174 = vadd.f32 %v2169, %v61
  %v2175 = vsel %vm347, %v2170, -inf
  %2176 = vmax.xlane.f32.xlu0 %v2175
  %v2177 = vpop.xlane.xlu0 %2176
  %v2178 = vsel %vm347, %v2171, -inf
  %2179 = vmax.xlane.f32.xlu0 %v2178
  %v2180 = vpop.xlane.xlu0 %2179
  %v2181 = vsel %vm347, %v2172, -inf
  %2182 = vmax.xlane.f32.xlu0 %v2181
  %v2183 = vpop.xlane.xlu0 %2182
  %v2184 = vsel %vm347, %v2173, -inf
  %2185 = vmax.xlane.f32.xlu0 %v2184
  %v2186 = vpop.xlane.xlu0 %2185
  %v2187 = vsel %vm347, %v2174, -inf
  %2188 = vmax.xlane.f32.xlu0 %v2187
  %v2189 = vpop.xlane.xlu0 %2188
  %v2190 = vsub.f32 %v2170, %v2177
  %v2191 = vsub.f32 %v2171, %v2180
  %v2192 = vsub.f32 %v2172, %v2183
  %v2193 = vsub.f32 %v2173, %v2186
  %v2194 = vsub.f32 %v2174, %v2189
  %v2195 = vmul.f32 %v2190, 1.442695
  %v2196 = vpow.pop %v2195
  %v2197 = vmul.f32 %v2191, 1.442695
  %v2198 = vpow.pop %v2197
  %v2199 = vmul.f32 %v2192, 1.442695
  %v2200 = vpow.pop %v2199
  %v2201 = vmul.f32 %v2193, 1.442695
  %v2202 = vpow.pop %v2201
  %v2203 = vmul.f32 %v2194, 1.442695
  %v2204 = vpow.pop %v2203
  %v2205 = vsel %vm347, %v2196, 0.0
  %2206 = vadd.xlane.f32.xlu0 %v2205
  %v2207 = vpop.xlane.xlu0 %2206
  %v2208 = vsel %vm347, %v2198, 0.0
  %2209 = vadd.xlane.f32.xlu0 %v2208
  %v2210 = vpop.xlane.xlu0 %2209
  %v2211 = vsel %vm347, %v2200, 0.0
  %2212 = vadd.xlane.f32.xlu0 %v2211
  %v2213 = vpop.xlane.xlu0 %2212
  %v2214 = vsel %vm347, %v2202, 0.0
  %2215 = vadd.xlane.f32.xlu0 %v2214
  %v2216 = vpop.xlane.xlu0 %2215
  %v2217 = vsel %vm347, %v2204, 0.0
  %2218 = vadd.xlane.f32.xlu0 %v2217
  %v2219 = vpop.xlane.xlu0 %2218
  %v2220 = vrcp.pop %v2207
  %v2221 = vrcp.pop %v2210
  %v2222 = vrcp.pop %v2213
  %v2223 = vrcp.pop %v2216
  %v2224 = vrcp.pop %v2219
  %v2225 = vmul.f32 %v2196, %v2220
  %v2226 = vmul.f32 %v2198, %v2221
  %v2227 = vmul.f32 %v2200, %v2222
  %v2228 = vmul.f32 %v2202, %v2223
  %v2229 = vmul.f32 %v2204, %v2224
  %v2230 = vpack.c.bf16 %v2226, %v2225
  %v2231 = vpack.c.bf16 %v2228, %v2227
  %v2232 = vpack.c.bf16 %v2229, %v2229
  %2233 = vrot.lane.b32.xlu0 %v1849, 56
  %v2234 = vpop.permute.xlu0 %2233
  %2235 = vrot.lane.b32.xlu0 %v1850, 56
  %v2236 = vpop.permute.xlu0 %2235
  %2237 = vrot.lane.b32.xlu0 %v1851, 56
  %v2238 = vpop.permute.xlu0 %2237
  %v2242 = vsel %vm347, %v2230, 0
  %v2245 = vsel %vm347, %v2231, 0
  %v2248 = vsel %vm347, %v2232, 0
  %v2251 = vsel %vm423, %v2238, 0
  %2253 = vmatprep.subr.bf16.mxu0 0
  %2254 = vmatpush1.bf16.msra.mxu0 %v2234
  %2255 = vmatprep.subr.bf16.mxu0 0
  %2256 = vmatpush1.bf16.msra.mxu0 %v2236
  %2257 = vmatprep.subr.bf16.mxu0 0
  %2258 = vmatpush1.bf16.msra.mxu0 %v2251
  %2259 = vmatprep.subr.bf16.mxu0 0
  %2260 = vmatpush1.bf16.msra.mxu0 0
  %2261 = vmatprep.subr.bf16.mxu0 0
  %2262 = vmatpush1.bf16.msra.mxu0 0
  %2263 = vmatprep.subr.bf16.mxu0 0
  %2264 = vmatpush1.bf16.msra.mxu0 0
  %2265 = vmatprep.subr.bf16.mxu0 0
  %2266 = vmatpush1.bf16.msra.mxu0 0
  %2267 = vmatprep.subr.bf16.mxu0 0
  %2268 = vmatpush1.bf16.msra.mxu0 0
  %2269 = vmatprep.subr.bf16.mxu0 0
  %2270 = vmatpush1.bf16.msra.mxu0 0
  %2271 = vmatprep.subr.bf16.mxu0 0
  %2272 = vmatpush1.bf16.msra.mxu0 0
  %2273 = vmatprep.subr.bf16.mxu0 0
  %2274 = vmatpush1.bf16.msra.mxu0 0
  %2275 = vmatprep.subr.bf16.mxu0 0
  %2276 = vmatpush1.bf16.msra.mxu0 0
  %2277 = vmatprep.subr.bf16.mxu0 0
  %2278 = vmatpush1.bf16.msra.mxu0 0
  %2279 = vmatprep.subr.bf16.mxu0 0
  %2280 = vmatpush1.bf16.msra.mxu0 0
  %2281 = vmatprep.subr.bf16.mxu0 0
  %2282 = vmatpush1.bf16.msra.mxu0 0
  %2283 = vmatprep.subr.bf16.mxu0 0
  %2284 = vmatpush1.bf16.msra.mxu0 0
  %2285 = vmatprep.mubr.bf16.mxu0 0
  %2286 = vmatmul.mubr.bf16.gmra.mrb[0].mxu0 %v2242
  %v2287 = vpop.f32.mrb[0].mxu0
  %v2288 = vadd.f32 0.0, %v2287
  %v2289 = vpop.f32.mrb[0].mxu0
  %v2290 = vpop.f32.mrb[0].mxu0
  %v2291 = vadd.f32 0.0, %v2290
  %v2292 = vpop.f32.mrb[0].mxu0
  %2293 = vmatprep.mubr.bf16.mxu0 0
  %2294 = vmatmul.mubr.bf16.gmra.mrb[0].mxu0 %v2245
  %v2295 = vpop.f32.mrb[0].mxu0
  %v2296 = vadd.f32 0.0, %v2295
  %v2297 = vpop.f32.mrb[0].mxu0
  %v2298 = vpop.f32.mrb[0].mxu0
  %v2299 = vadd.f32 0.0, %v2298
  %v2300 = vpop.f32.mrb[0].mxu0
  %2301 = vmatprep.mubr.bf16.mxu0 0
  %2302 = vmatmul.mubr.bf16.gmra.mrb[0].mxu0 %v2248
  %v2303 = vpop.f32.mrb[0].mxu0
  %v2304 = vadd.f32 0.0, %v2303
  %v2305 = vpop.f32.mrb[0].mxu0
  %v2306 = vpop.f32.mrb[0].mxu0
  %v2307 = vpop.f32.mrb[0].mxu0
  %2308 = vdwg.mxu0
  %2309 = vrot.lane.b32.xlu0 %v1849, 112
  %v2310 = vpop.permute.xlu0 %2309
  %2311 = vrot.lane.b32.xlu0 %v1850, 112
  %v2312 = vpop.permute.xlu0 %2311
  %2313 = vrot.lane.b32.xlu0 %v1851, 112
  %v2314 = vpop.permute.xlu0 %2313
  %2315 = vrot.lane.b32.xlu0 %v1849, 80
  %v2316 = vpop.permute.xlu0 %2315
  %2317 = vrot.lane.b32.xlu0 %v1850, 80
  %v2318 = vpop.permute.xlu0 %2317
  %2319 = vrot.lane.b32.xlu0 %v1851, 80
  %v2320 = vpop.permute.xlu0 %2319
  %v2322 = vsel %vm262, %v2310, 0
  %v2325 = vsel %vm262, %v2312, 0
  %v2328 = vsel %vm262, %v2314, 0
  %v2331 = vsel %vm262, %v2316, 0
  %v2334 = vsel %vm262, %v2318, 0
  %v2337 = vsel %vm262, %v2320, 0
  %2339 = vmatprep.subr.bf16.mxu0 0
  %2340 = vmatpush1.bf16.xpose.msra.mxu0 %v2331
  %2341 = vmatprep.subr.bf16.mxu0 0
  %2342 = vmatpush1.bf16.xpose.msra.mxu0 %v2334
  %2343 = vmatprep.subr.bf16.mxu0 0
  %2344 = vmatpush1.bf16.xpose.msra.mxu0 %v2337
  %2345 = vmatprep.subr.bf16.mxu0 0
  %2346 = vmatpush1.bf16.xpose.msra.mxu0 0
  %2347 = vmatprep.subr.bf16.mxu0 0
  %2348 = vmatpush1.bf16.xpose.msra.mxu0 0
  %2349 = vmatprep.subr.bf16.mxu0 0
  %2350 = vmatpush1.bf16.xpose.msra.mxu0 0
  %2351 = vmatprep.subr.bf16.mxu0 0
  %2352 = vmatpush1.bf16.xpose.msra.mxu0 0
  %2353 = vmatprep.subr.bf16.mxu0 0
  %2354 = vmatpush1.bf16.xpose.msra.mxu0 0
  %2355 = vmatprep.subr.bf16.mxu0 0
  %2356 = vmatpush1.bf16.xpose.msra.mxu0 0
  %2357 = vmatprep.subr.bf16.mxu0 0
  %2358 = vmatpush1.bf16.xpose.msra.mxu0 0
  %2359 = vmatprep.subr.bf16.mxu0 0
  %2360 = vmatpush1.bf16.xpose.msra.mxu0 0
  %2361 = vmatprep.subr.bf16.mxu0 0
  %2362 = vmatpush1.bf16.xpose.msra.mxu0 0
  %2363 = vmatprep.subr.bf16.mxu0 0
  %2364 = vmatpush1.bf16.xpose.msra.mxu0 0
  %2365 = vmatprep.subr.bf16.mxu0 0
  %2366 = vmatpush1.bf16.xpose.msra.mxu0 0
  %2367 = vmatprep.subr.bf16.mxu0 0
  %2368 = vmatpush1.bf16.xpose.msra.mxu0 0
  %2369 = vmatprep.subr.bf16.mxu0 0
  %2370 = vmatpush1.bf16.xpose.msra.mxu0 0
  %2371 = vmatprep.mubr.bf16.mxu0 0
  %2372 = vmatmul.mubr.bf16.gmra.mrb[0].mxu0 %v2322
  %v2373 = vpop.f32.mrb[0].mxu0
  %v2374 = vadd.f32 0.0, %v2373
  %v2375 = vpop.f32.mrb[0].mxu0
  %v2376 = vpop.f32.mrb[0].mxu0
  %v2377 = vadd.f32 0.0, %v2376
  %v2378 = vpop.f32.mrb[0].mxu0
  %2379 = vmatprep.mubr.bf16.mxu0 0
  %2380 = vmatmul.mubr.bf16.gmra.mrb[0].mxu0 %v2325
  %v2381 = vpop.f32.mrb[0].mxu0
  %v2382 = vadd.f32 0.0, %v2381
  %v2383 = vpop.f32.mrb[0].mxu0
  %v2384 = vpop.f32.mrb[0].mxu0
  %v2385 = vadd.f32 0.0, %v2384
  %v2386 = vpop.f32.mrb[0].mxu0
  %2387 = vmatprep.mubr.bf16.mxu0 0
  %2388 = vmatmul.mubr.bf16.gmra.mrb[0].mxu0 %v2328
  %v2389 = vpop.f32.mrb[0].mxu0
  %v2390 = vadd.f32 0.0, %v2389
  %v2391 = vpop.f32.mrb[0].mxu0
  %v2392 = vpop.f32.mrb[0].mxu0
  %v2393 = vpop.f32.mrb[0].mxu0
  %2394 = vdwg.mxu0
  %v2395 = vmul.f32 %v2374, 0.35355338
  %v2396 = vmul.f32 %v2377, 0.35355338
  %v2397 = vmul.f32 %v2382, 0.35355338
  %v2398 = vmul.f32 %v2385, 0.35355338
  %v2399 = vmul.f32 %v2390, 0.35355338
  %v2400 = vadd.f32 %v2395, %v57
  %v2401 = vadd.f32 %v2396, %v58
  %v2402 = vadd.f32 %v2397, %v59
  %v2403 = vadd.f32 %v2398, %v60
  %v2404 = vadd.f32 %v2399, %v61
  %v2405 = vsel %vm347, %v2400, -inf
  %2406 = vmax.xlane.f32.xlu0 %v2405
  %v2407 = vpop.xlane.xlu0 %2406
  %v2408 = vsel %vm347, %v2401, -inf
  %2409 = vmax.xlane.f32.xlu0 %v2408
  %v2410 = vpop.xlane.xlu0 %2409
  %v2411 = vsel %vm347, %v2402, -inf
  %2412 = vmax.xlane.f32.xlu0 %v2411
  %v2413 = vpop.xlane.xlu0 %2412
  %v2414 = vsel %vm347, %v2403, -inf
  %2415 = vmax.xlane.f32.xlu0 %v2414
  %v2416 = vpop.xlane.xlu0 %2415
  %v2417 = vsel %vm347, %v2404, -inf
  %2418 = vmax.xlane.f32.xlu0 %v2417
  %v2419 = vpop.xlane.xlu0 %2418
  %v2420 = vsub.f32 %v2400, %v2407
  %v2421 = vsub.f32 %v2401, %v2410
  %v2422 = vsub.f32 %v2402, %v2413
  %v2423 = vsub.f32 %v2403, %v2416
  %v2424 = vsub.f32 %v2404, %v2419
  %v2425 = vmul.f32 %v2420, 1.442695
  %v2426 = vpow.pop %v2425
  %v2427 = vmul.f32 %v2421, 1.442695
  %v2428 = vpow.pop %v2427
  %v2429 = vmul.f32 %v2422, 1.442695
  %v2430 = vpow.pop %v2429
  %v2431 = vmul.f32 %v2423, 1.442695
  %v2432 = vpow.pop %v2431
  %v2433 = vmul.f32 %v2424, 1.442695
  %v2434 = vpow.pop %v2433
  %v2435 = vsel %vm347, %v2426, 0.0
  %2436 = vadd.xlane.f32.xlu0 %v2435
  %v2437 = vpop.xlane.xlu0 %2436
  %v2438 = vsel %vm347, %v2428, 0.0
  %2439 = vadd.xlane.f32.xlu0 %v2438
  %v2440 = vpop.xlane.xlu0 %2439
  %v2441 = vsel %vm347, %v2430, 0.0
  %2442 = vadd.xlane.f32.xlu0 %v2441
  %v2443 = vpop.xlane.xlu0 %2442
  %v2444 = vsel %vm347, %v2432, 0.0
  %2445 = vadd.xlane.f32.xlu0 %v2444
  %v2446 = vpop.xlane.xlu0 %2445
  %v2447 = vsel %vm347, %v2434, 0.0
  %2448 = vadd.xlane.f32.xlu0 %v2447
  %v2449 = vpop.xlane.xlu0 %2448
  %v2450 = vrcp.pop %v2437
  %v2451 = vrcp.pop %v2440
  %v2452 = vrcp.pop %v2443
  %v2453 = vrcp.pop %v2446
  %v2454 = vrcp.pop %v2449
  %v2455 = vmul.f32 %v2426, %v2450
  %v2456 = vmul.f32 %v2428, %v2451
  %v2457 = vmul.f32 %v2430, %v2452
  %v2458 = vmul.f32 %v2432, %v2453
  %v2459 = vmul.f32 %v2434, %v2454
  %v2460 = vpack.c.bf16 %v2456, %v2455
  %v2461 = vpack.c.bf16 %v2458, %v2457
  %v2462 = vpack.c.bf16 %v2459, %v2459
  %2463 = vrot.lane.b32.xlu0 %v1849, 48
  %v2464 = vpop.permute.xlu0 %2463
  %2465 = vrot.lane.b32.xlu0 %v1850, 48
  %v2466 = vpop.permute.xlu0 %2465
  %2467 = vrot.lane.b32.xlu0 %v1851, 48
  %v2468 = vpop.permute.xlu0 %2467
  %v2472 = vsel %vm347, %v2460, 0
  %v2475 = vsel %vm347, %v2461, 0
  %v2478 = vsel %vm347, %v2462, 0
  %v2481 = vsel %vm423, %v2468, 0
  %2483 = vmatprep.subr.bf16.mxu0 0
  %2484 = vmatpush1.bf16.msra.mxu0 %v2464
  %2485 = vmatprep.subr.bf16.mxu0 0
  %2486 = vmatpush1.bf16.msra.mxu0 %v2466
  %2487 = vmatprep.subr.bf16.mxu0 0
  %2488 = vmatpush1.bf16.msra.mxu0 %v2481
  %2489 = vmatprep.subr.bf16.mxu0 0
  %2490 = vmatpush1.bf16.msra.mxu0 0
  %2491 = vmatprep.subr.bf16.mxu0 0
  %2492 = vmatpush1.bf16.msra.mxu0 0
  %2493 = vmatprep.subr.bf16.mxu0 0
  %2494 = vmatpush1.bf16.msra.mxu0 0
  %2495 = vmatprep.subr.bf16.mxu0 0
  %2496 = vmatpush1.bf16.msra.mxu0 0
  %2497 = vmatprep.subr.bf16.mxu0 0
  %2498 = vmatpush1.bf16.msra.mxu0 0
  %2499 = vmatprep.subr.bf16.mxu0 0
  %2500 = vmatpush1.bf16.msra.mxu0 0
  %2501 = vmatprep.subr.bf16.mxu0 0
  %2502 = vmatpush1.bf16.msra.mxu0 0
  %2503 = vmatprep.subr.bf16.mxu0 0
  %2504 = vmatpush1.bf16.msra.mxu0 0
  %2505 = vmatprep.subr.bf16.mxu0 0
  %2506 = vmatpush1.bf16.msra.mxu0 0
  %2507 = vmatprep.subr.bf16.mxu0 0
  %2508 = vmatpush1.bf16.msra.mxu0 0
  %2509 = vmatprep.subr.bf16.mxu0 0
  %2510 = vmatpush1.bf16.msra.mxu0 0
  %2511 = vmatprep.subr.bf16.mxu0 0
  %2512 = vmatpush1.bf16.msra.mxu0 0
  %2513 = vmatprep.subr.bf16.mxu0 0
  %2514 = vmatpush1.bf16.msra.mxu0 0
  %2515 = vmatprep.mubr.bf16.mxu0 0
  %2516 = vmatmul.mubr.bf16.gmra.mrb[0].mxu0 %v2472
  %v2517 = vpop.f32.mrb[0].mxu0
  %v2518 = vadd.f32 0.0, %v2517
  %v2519 = vpop.f32.mrb[0].mxu0
  %v2520 = vpop.f32.mrb[0].mxu0
  %v2521 = vadd.f32 0.0, %v2520
  %v2522 = vpop.f32.mrb[0].mxu0
  %2523 = vmatprep.mubr.bf16.mxu0 0
  %2524 = vmatmul.mubr.bf16.gmra.mrb[0].mxu0 %v2475
  %v2525 = vpop.f32.mrb[0].mxu0
  %v2526 = vadd.f32 0.0, %v2525
  %v2527 = vpop.f32.mrb[0].mxu0
  %v2528 = vpop.f32.mrb[0].mxu0
  %v2529 = vadd.f32 0.0, %v2528
  %v2530 = vpop.f32.mrb[0].mxu0
  %2531 = vmatprep.mubr.bf16.mxu0 0
  %2532 = vmatmul.mubr.bf16.gmra.mrb[0].mxu0 %v2478
  %v2533 = vpop.f32.mrb[0].mxu0
  %v2534 = vadd.f32 0.0, %v2533
  %v2535 = vpop.f32.mrb[0].mxu0
  %v2536 = vpop.f32.mrb[0].mxu0
  %v2537 = vpop.f32.mrb[0].mxu0
  %2538 = vdwg.mxu0
  %2539 = vrot.lane.b32.xlu0 %v1849, 104
  %v2540 = vpop.permute.xlu0 %2539
  %2541 = vrot.lane.b32.xlu0 %v1850, 104
  %v2542 = vpop.permute.xlu0 %2541
  %2543 = vrot.lane.b32.xlu0 %v1851, 104
  %v2544 = vpop.permute.xlu0 %2543
  %2545 = vrot.lane.b32.xlu0 %v1849, 72
  %v2546 = vpop.permute.xlu0 %2545
  %2547 = vrot.lane.b32.xlu0 %v1850, 72
  %v2548 = vpop.permute.xlu0 %2547
  %2549 = vrot.lane.b32.xlu0 %v1851, 72
  %v2550 = vpop.permute.xlu0 %2549
  %v2552 = vsel %vm262, %v2540, 0
  %v2555 = vsel %vm262, %v2542, 0
  %v2558 = vsel %vm262, %v2544, 0
  %v2561 = vsel %vm262, %v2546, 0
  %v2564 = vsel %vm262, %v2548, 0
  %v2567 = vsel %vm262, %v2550, 0
  %2569 = vmatprep.subr.bf16.mxu0 0
  %2570 = vmatpush1.bf16.xpose.msra.mxu0 %v2561
  %2571 = vmatprep.subr.bf16.mxu0 0
  %2572 = vmatpush1.bf16.xpose.msra.mxu0 %v2564
  %2573 = vmatprep.subr.bf16.mxu0 0
  %2574 = vmatpush1.bf16.xpose.msra.mxu0 %v2567
  %2575 = vmatprep.subr.bf16.mxu0 0
  %2576 = vmatpush1.bf16.xpose.msra.mxu0 0
  %2577 = vmatprep.subr.bf16.mxu0 0
  %2578 = vmatpush1.bf16.xpose.msra.mxu0 0
  %2579 = vmatprep.subr.bf16.mxu0 0
  %2580 = vmatpush1.bf16.xpose.msra.mxu0 0
  %2581 = vmatprep.subr.bf16.mxu0 0
  %2582 = vmatpush1.bf16.xpose.msra.mxu0 0
  %2583 = vmatprep.subr.bf16.mxu0 0
  %2584 = vmatpush1.bf16.xpose.msra.mxu0 0
  %2585 = vmatprep.subr.bf16.mxu0 0
  %2586 = vmatpush1.bf16.xpose.msra.mxu0 0
  %2587 = vmatprep.subr.bf16.mxu0 0
  %2588 = vmatpush1.bf16.xpose.msra.mxu0 0
  %2589 = vmatprep.subr.bf16.mxu0 0
  %2590 = vmatpush1.bf16.xpose.msra.mxu0 0
  %2591 = vmatprep.subr.bf16.mxu0 0
  %2592 = vmatpush1.bf16.xpose.msra.mxu0 0
  %2593 = vmatprep.subr.bf16.mxu0 0
  %2594 = vmatpush1.bf16.xpose.msra.mxu0 0
  %2595 = vmatprep.subr.bf16.mxu0 0
  %2596 = vmatpush1.bf16.xpose.msra.mxu0 0
  %2597 = vmatprep.subr.bf16.mxu0 0
  %2598 = vmatpush1.bf16.xpose.msra.mxu0 0
  %2599 = vmatprep.subr.bf16.mxu0 0
  %2600 = vmatpush1.bf16.xpose.msra.mxu0 0
  %2601 = vmatprep.mubr.bf16.mxu0 0
  %2602 = vmatmul.mubr.bf16.gmra.mrb[0].mxu0 %v2552
  %v2603 = vpop.f32.mrb[0].mxu0
  %v2604 = vadd.f32 0.0, %v2603
  %v2605 = vpop.f32.mrb[0].mxu0
  %v2606 = vpop.f32.mrb[0].mxu0
  %v2607 = vadd.f32 0.0, %v2606
  %v2608 = vpop.f32.mrb[0].mxu0
  %2609 = vmatprep.mubr.bf16.mxu0 0
  %2610 = vmatmul.mubr.bf16.gmra.mrb[0].mxu0 %v2555
  %v2611 = vpop.f32.mrb[0].mxu0
  %v2612 = vadd.f32 0.0, %v2611
  %v2613 = vpop.f32.mrb[0].mxu0
  %v2614 = vpop.f32.mrb[0].mxu0
  %v2615 = vadd.f32 0.0, %v2614
  %v2616 = vpop.f32.mrb[0].mxu0
  %2617 = vmatprep.mubr.bf16.mxu0 0
  %2618 = vmatmul.mubr.bf16.gmra.mrb[0].mxu0 %v2558
  %v2619 = vpop.f32.mrb[0].mxu0
  %v2620 = vadd.f32 0.0, %v2619
  %v2621 = vpop.f32.mrb[0].mxu0
  %v2622 = vpop.f32.mrb[0].mxu0
  %v2623 = vpop.f32.mrb[0].mxu0
  %2624 = vdwg.mxu0
  %v2625 = vmul.f32 %v2604, 0.35355338
  %v2626 = vmul.f32 %v2607, 0.35355338
  %v2627 = vmul.f32 %v2612, 0.35355338
  %v2628 = vmul.f32 %v2615, 0.35355338
  %v2629 = vmul.f32 %v2620, 0.35355338
  %v2630 = vadd.f32 %v2625, %v57
  %v2631 = vadd.f32 %v2626, %v58
  %v2632 = vadd.f32 %v2627, %v59
  %v2633 = vadd.f32 %v2628, %v60
  %v2634 = vadd.f32 %v2629, %v61
  %v2635 = vsel %vm347, %v2630, -inf
  %2636 = vmax.xlane.f32.xlu0 %v2635
  %v2637 = vpop.xlane.xlu0 %2636
  %v2638 = vsel %vm347, %v2631, -inf
  %2639 = vmax.xlane.f32.xlu0 %v2638
  %v2640 = vpop.xlane.xlu0 %2639
  %v2641 = vsel %vm347, %v2632, -inf
  %2642 = vmax.xlane.f32.xlu0 %v2641
  %v2643 = vpop.xlane.xlu0 %2642
  %v2644 = vsel %vm347, %v2633, -inf
  %2645 = vmax.xlane.f32.xlu0 %v2644
  %v2646 = vpop.xlane.xlu0 %2645
  %v2647 = vsel %vm347, %v2634, -inf
  %2648 = vmax.xlane.f32.xlu0 %v2647
  %v2649 = vpop.xlane.xlu0 %2648
  %v2650 = vsub.f32 %v2630, %v2637
  %v2651 = vsub.f32 %v2631, %v2640
  %v2652 = vsub.f32 %v2632, %v2643
  %v2653 = vsub.f32 %v2633, %v2646
  %v2654 = vsub.f32 %v2634, %v2649
  %v2655 = vmul.f32 %v2650, 1.442695
  %v2656 = vpow.pop %v2655
  %v2657 = vmul.f32 %v2651, 1.442695
  %v2658 = vpow.pop %v2657
  %v2659 = vmul.f32 %v2652, 1.442695
  %v2660 = vpow.pop %v2659
  %v2661 = vmul.f32 %v2653, 1.442695
  %v2662 = vpow.pop %v2661
  %v2663 = vmul.f32 %v2654, 1.442695
  %v2664 = vpow.pop %v2663
  %v2665 = vsel %vm347, %v2656, 0.0
  %2666 = vadd.xlane.f32.xlu0 %v2665
  %v2667 = vpop.xlane.xlu0 %2666
  %v2668 = vsel %vm347, %v2658, 0.0
  %2669 = vadd.xlane.f32.xlu0 %v2668
  %v2670 = vpop.xlane.xlu0 %2669
  %v2671 = vsel %vm347, %v2660, 0.0
  %2672 = vadd.xlane.f32.xlu0 %v2671
  %v2673 = vpop.xlane.xlu0 %2672
  %v2674 = vsel %vm347, %v2662, 0.0
  %2675 = vadd.xlane.f32.xlu0 %v2674
  %v2676 = vpop.xlane.xlu0 %2675
  %v2677 = vsel %vm347, %v2664, 0.0
  %2678 = vadd.xlane.f32.xlu0 %v2677
  %v2679 = vpop.xlane.xlu0 %2678
  %v2680 = vrcp.pop %v2667
  %v2681 = vrcp.pop %v2670
  %v2682 = vrcp.pop %v2673
  %v2683 = vrcp.pop %v2676
  %v2684 = vrcp.pop %v2679
  %v2685 = vmul.f32 %v2656, %v2680
  %v2686 = vmul.f32 %v2658, %v2681
  %v2687 = vmul.f32 %v2660, %v2682
  %v2688 = vmul.f32 %v2662, %v2683
  %v2689 = vmul.f32 %v2664, %v2684
  %v2690 = vpack.c.bf16 %v2686, %v2685
  %v2691 = vpack.c.bf16 %v2688, %v2687
  %v2692 = vpack.c.bf16 %v2689, %v2689
  %2693 = vrot.lane.b32.xlu0 %v1849, 40
  %v2694 = vpop.permute.xlu0 %2693
  %2695 = vrot.lane.b32.xlu0 %v1850, 40
  %v2696 = vpop.permute.xlu0 %2695
  %2697 = vrot.lane.b32.xlu0 %v1851, 40
  %v2698 = vpop.permute.xlu0 %2697
  %v2702 = vsel %vm347, %v2690, 0
  %v2705 = vsel %vm347, %v2691, 0
  %v2708 = vsel %vm347, %v2692, 0
  %v2711 = vsel %vm423, %v2698, 0
  %2713 = vmatprep.subr.bf16.mxu0 0
  %2714 = vmatpush1.bf16.msra.mxu0 %v2694
  %2715 = vmatprep.subr.bf16.mxu0 0
  %2716 = vmatpush1.bf16.msra.mxu0 %v2696
  %2717 = vmatprep.subr.bf16.mxu0 0
  %2718 = vmatpush1.bf16.msra.mxu0 %v2711
  %2719 = vmatprep.subr.bf16.mxu0 0
  %2720 = vmatpush1.bf16.msra.mxu0 0
  %2721 = vmatprep.subr.bf16.mxu0 0
  %2722 = vmatpush1.bf16.msra.mxu0 0
  %2723 = vmatprep.subr.bf16.mxu0 0
  %2724 = vmatpush1.bf16.msra.mxu0 0
  %2725 = vmatprep.subr.bf16.mxu0 0
  %2726 = vmatpush1.bf16.msra.mxu0 0
  %2727 = vmatprep.subr.bf16.mxu0 0
  %2728 = vmatpush1.bf16.msra.mxu0 0
  %2729 = vmatprep.subr.bf16.mxu0 0
  %2730 = vmatpush1.bf16.msra.mxu0 0
  %2731 = vmatprep.subr.bf16.mxu0 0
  %2732 = vmatpush1.bf16.msra.mxu0 0
  %2733 = vmatprep.subr.bf16.mxu0 0
  %2734 = vmatpush1.bf16.msra.mxu0 0
  %2735 = vmatprep.subr.bf16.mxu0 0
  %2736 = vmatpush1.bf16.msra.mxu0 0
  %2737 = vmatprep.subr.bf16.mxu0 0
  %2738 = vmatpush1.bf16.msra.mxu0 0
  %2739 = vmatprep.subr.bf16.mxu0 0
  %2740 = vmatpush1.bf16.msra.mxu0 0
  %2741 = vmatprep.subr.bf16.mxu0 0
  %2742 = vmatpush1.bf16.msra.mxu0 0
  %2743 = vmatprep.subr.bf16.mxu0 0
  %2744 = vmatpush1.bf16.msra.mxu0 0
  %2745 = vmatprep.mubr.bf16.mxu0 0
  %2746 = vmatmul.mubr.bf16.gmra.mrb[0].mxu0 %v2702
  %v2747 = vpop.f32.mrb[0].mxu0
  %v2748 = vadd.f32 0.0, %v2747
  %v2749 = vpop.f32.mrb[0].mxu0
  %v2750 = vpop.f32.mrb[0].mxu0
  %v2751 = vadd.f32 0.0, %v2750
  %v2752 = vpop.f32.mrb[0].mxu0
  %2753 = vmatprep.mubr.bf16.mxu0 0
  %2754 = vmatmul.mubr.bf16.gmra.mrb[0].mxu0 %v2705
  %v2755 = vpop.f32.mrb[0].mxu0
  %v2756 = vadd.f32 0.0, %v2755
  %v2757 = vpop.f32.mrb[0].mxu0
  %v2758 = vpop.f32.mrb[0].mxu0
  %v2759 = vadd.f32 0.0, %v2758
  %v2760 = vpop.f32.mrb[0].mxu0
  %2761 = vmatprep.mubr.bf16.mxu0 0
  %2762 = vmatmul.mubr.bf16.gmra.mrb[0].mxu0 %v2708
  %v2763 = vpop.f32.mrb[0].mxu0
  %v2764 = vadd.f32 0.0, %v2763
  %v2765 = vpop.f32.mrb[0].mxu0
  %v2766 = vpop.f32.mrb[0].mxu0
  %v2767 = vpop.f32.mrb[0].mxu0
  %2768 = vdwg.mxu0
  %2774 = vrot.lane.b32.xlu0 %v2288, 8
  %v2775 = vpop.permute.xlu0 %2774
  %2776 = vrot.lane.b32.xlu0 %v2291, 8
  %v2777 = vpop.permute.xlu0 %2776
  %2778 = vrot.lane.b32.xlu0 %v2296, 8
  %v2779 = vpop.permute.xlu0 %2778
  %2780 = vrot.lane.b32.xlu0 %v2299, 8
  %v2781 = vpop.permute.xlu0 %2780
  %2782 = vrot.lane.b32.xlu0 %v2304, 8
  %v2783 = vpop.permute.xlu0 %2782
  %2794 = vrot.lane.b32.xlu0 %v2518, 16
  %v2795 = vpop.permute.xlu0 %2794
  %2796 = vrot.lane.b32.xlu0 %v2521, 16
  %v2797 = vpop.permute.xlu0 %2796
  %2798 = vrot.lane.b32.xlu0 %v2526, 16
  %v2799 = vpop.permute.xlu0 %2798
  %2800 = vrot.lane.b32.xlu0 %v2529, 16
  %v2801 = vpop.permute.xlu0 %2800
  %2802 = vrot.lane.b32.xlu0 %v2534, 16
  %v2803 = vpop.permute.xlu0 %2802
  %2814 = vrot.lane.b32.xlu0 %v2748, 24
  %v2815 = vpop.permute.xlu0 %2814
  %2816 = vrot.lane.b32.xlu0 %v2751, 24
  %v2817 = vpop.permute.xlu0 %2816
  %2818 = vrot.lane.b32.xlu0 %v2756, 24
  %v2819 = vpop.permute.xlu0 %2818
  %2820 = vrot.lane.b32.xlu0 %v2759, 24
  %v2821 = vpop.permute.xlu0 %2820
  %2822 = vrot.lane.b32.xlu0 %v2764, 24
  %v2823 = vpop.permute.xlu0 %2822
  %v2829 = vsel %vm262, %v2058, %v2775
  %v2830 = vsel %vm262, %v2061, %v2777
  %v2831 = vsel %vm262, %v2066, %v2779
  %v2832 = vsel %vm262, %v2069, %v2781
  %v2833 = vsel %vm262, %v2074, %v2783
  %v2834 = vsel %vm1238, %v2829, %v2795
  %v2835 = vsel %vm1238, %v2830, %v2797
  %v2836 = vsel %vm1238, %v2831, %v2799
  %v2837 = vsel %vm1238, %v2832, %v2801
  %v2838 = vsel %vm1238, %v2833, %v2803
  %v2839 = vsel %vm1244, %v2834, %v2815
  %v2840 = vsel %vm1244, %v2835, %v2817
  %v2841 = vsel %vm1244, %v2836, %v2819
  %v2842 = vsel %vm1244, %v2837, %v2821
  %v2843 = vsel %vm1244, %v2838, %v2823
  %v2844 = vpack.c.bf16 %v2840, %v2839
  %v2845 = vpack.c.bf16 %v2842, %v2841
  %v2846 = vpack.c.bf16 %v2843, %v2843
  %s2847 = scalar_lea.vmem %s7, 16
  %v2848 = vld [vmem:[%s2847] sm:$0xf]
  %v2849 = vld [vmem:[%s2847 + $0x4] sm:$0xf]
  %v2850 = vld [vmem:[%s2847 + $0x8] sm:$0xf]
  %v2851 = vld [vmem:[%s2847 + $0xc] sm:$0xf]
  %s2852 = scalar_lea.vmem %s8, 1
  %v2853 = vld [vmem:[%s2852] sm:$0x1]
  %v2855 = vlaneseq
  %v2856 = vshrl.u32 %v2855, 7
  %v2857 = vsub.s32 0, %v2856
  %v2858 = vrot.slane %v2853, %v2857
  %v2864 = vunpack.c.l.b16 %v2848
  %v2865 = vunpack.c.l.b16 %v2849
  %v2866 = vunpack.c.l.b16 %v2850
  %v2867 = vunpack.c.l.b16 %v2851
  %v2868 = vpack.c.b16 %v2865, %v2864
  %v2869 = vpack.c.b16 %v2867, %v2866
  %v2873 = vsel %vm184, %v2844, 0
  %v2876 = vsel %vm184, %v2845, 0
  %v2879 = vsel %vm184, %v2846, 0
  %2881 = vmatprep.subr.bf16.mxu0 0
  %2882 = vmatpush1.bf16.msra.mxu0 %v2868
  %2883 = vmatprep.subr.bf16.mxu0 0
  %2884 = vmatpush1.bf16.msra.mxu0 %v2869
  %2885 = vmatprep.subr.bf16.mxu0 0
  %2886 = vmatpush1.bf16.msra.mxu0 0
  %2887 = vmatprep.subr.bf16.mxu0 0
  %2888 = vmatpush1.bf16.msra.mxu0 0
  %2889 = vmatprep.subr.bf16.mxu0 0
  %2890 = vmatpush1.bf16.msra.mxu0 0
  %2891 = vmatprep.subr.bf16.mxu0 0
  %2892 = vmatpush1.bf16.msra.mxu0 0
  %2893 = vmatprep.subr.bf16.mxu0 0
  %2894 = vmatpush1.bf16.msra.mxu0 0
  %2895 = vmatprep.subr.bf16.mxu0 0
  %2896 = vmatpush1.bf16.msra.mxu0 0
  %2897 = vmatprep.subr.bf16.mxu0 0
  %2898 = vmatpush1.bf16.msra.mxu0 0
  %2899 = vmatprep.subr.bf16.mxu0 0
  %2900 = vmatpush1.bf16.msra.mxu0 0
  %2901 = vmatprep.subr.bf16.mxu0 0
  %2902 = vmatpush1.bf16.msra.mxu0 0
  %2903 = vmatprep.subr.bf16.mxu0 0
  %2904 = vmatpush1.bf16.msra.mxu0 0
  %2905 = vmatprep.subr.bf16.mxu0 0
  %2906 = vmatpush1.bf16.msra.mxu0 0
  %2907 = vmatprep.subr.bf16.mxu0 0
  %2908 = vmatpush1.bf16.msra.mxu0 0
  %2909 = vmatprep.subr.bf16.mxu0 0
  %2910 = vmatpush1.bf16.msra.mxu0 0
  %2911 = vmatprep.subr.bf16.mxu0 0
  %2912 = vmatpush1.bf16.msra.mxu0 0
  %2913 = vmatprep.mubr.bf16.mxu0 0
  %2914 = vmatmul.mubr.bf16.gmra.mrb[0].mxu0 %v2873
  %v2915 = vpop.f32.mrb[0].mxu0
  %v2916 = vadd.f32 %v2858, %v2915
  %v2917 = vpop.f32.mrb[0].mxu0
  %v2918 = vpop.f32.mrb[0].mxu0
  %v2919 = vadd.f32 %v2858, %v2918
  %v2920 = vpop.f32.mrb[0].mxu0
  %2921 = vmatprep.mubr.bf16.mxu0 0
  %2922 = vmatmul.mubr.bf16.gmra.mrb[0].mxu0 %v2876
  %v2923 = vpop.f32.mrb[0].mxu0
  %v2924 = vadd.f32 %v2858, %v2923
  %v2925 = vpop.f32.mrb[0].mxu0
  %v2926 = vpop.f32.mrb[0].mxu0
  %v2927 = vadd.f32 %v2858, %v2926
  %v2928 = vpop.f32.mrb[0].mxu0
  %2929 = vmatprep.mubr.bf16.mxu0 0
  %2930 = vmatmul.mubr.bf16.gmra.mrb[0].mxu0 %v2879
  %v2931 = vpop.f32.mrb[0].mxu0
  %v2932 = vadd.f32 %v2858, %v2931
  %v2933 = vpop.f32.mrb[0].mxu0
  %v2934 = vpop.f32.mrb[0].mxu0
  %v2935 = vpop.f32.mrb[0].mxu0
  %2936 = vdwg.mxu0
  %v2937 = vadd.f32 %v1751, %v2916
  %v2938 = vadd.f32 %v1752, %v2919
  %v2939 = vadd.f32 %v1753, %v2924
  %v2940 = vadd.f32 %v1754, %v2927
  %v2941 = vadd.f32 %v1755, %v2932
  %v2942 = vsel %vm184, %v2937, 0.0
  %2943 = vadd.xlane.f32.xlu0 %v2942
  %v2944 = vpop.xlane.xlu0 %2943
  %v2945 = vsel %vm184, %v2938, 0.0
  %2946 = vadd.xlane.f32.xlu0 %v2945
  %v2947 = vpop.xlane.xlu0 %2946
  %v2948 = vsel %vm184, %v2939, 0.0
  %2949 = vadd.xlane.f32.xlu0 %v2948
  %v2950 = vpop.xlane.xlu0 %2949
  %v2951 = vsel %vm184, %v2940, 0.0
  %2952 = vadd.xlane.f32.xlu0 %v2951
  %v2953 = vpop.xlane.xlu0 %2952
  %v2954 = vsel %vm184, %v2941, 0.0
  %2955 = vadd.xlane.f32.xlu0 %v2954
  %v2956 = vpop.xlane.xlu0 %2955
  %v2957 = vmul.f32 %v2944, %v1361
  %v2958 = vmul.f32 %v2947, %v1361
  %v2959 = vmul.f32 %v2950, %v1361
  %v2960 = vmul.f32 %v2953, %v1361
  %v2961 = vmul.f32 %v2956, %v1361
  %v2962 = vsub.f32 %v2937, %v2957
  %v2963 = vsub.f32 %v2938, %v2958
  %v2964 = vsub.f32 %v2939, %v2959
  %v2965 = vsub.f32 %v2940, %v2960
  %v2966 = vsub.f32 %v2941, %v2961
  %v2967 = vmul.f32 %v2962, %v2962
  %v2968 = vmul.f32 %v2963, %v2963
  %v2969 = vmul.f32 %v2964, %v2964
  %v2970 = vmul.f32 %v2965, %v2965
  %v2971 = vmul.f32 %v2966, %v2966
  %v2972 = vsel %vm184, %v2967, 0.0
  %2973 = vadd.xlane.f32.xlu0 %v2972
  %v2974 = vpop.xlane.xlu0 %2973
  %v2975 = vsel %vm184, %v2968, 0.0
  %2976 = vadd.xlane.f32.xlu0 %v2975
  %v2977 = vpop.xlane.xlu0 %2976
  %v2978 = vsel %vm184, %v2969, 0.0
  %2979 = vadd.xlane.f32.xlu0 %v2978
  %v2980 = vpop.xlane.xlu0 %2979
  %v2981 = vsel %vm184, %v2970, 0.0
  %2982 = vadd.xlane.f32.xlu0 %v2981
  %v2983 = vpop.xlane.xlu0 %2982
  %v2984 = vsel %vm184, %v2971, 0.0
  %2985 = vadd.xlane.f32.xlu0 %v2984
  %v2986 = vpop.xlane.xlu0 %2985
  %v2987 = vmul.f32 %v2974, %v1361
  %v2988 = vmul.f32 %v2977, %v1361
  %v2989 = vmul.f32 %v2980, %v1361
  %v2990 = vmul.f32 %v2983, %v1361
  %v2991 = vmul.f32 %v2986, %v1361
  %v2992 = vadd.f32 %v2987, 1e-05
  %v2993 = vadd.f32 %v2988, 1e-05
  %v2994 = vadd.f32 %v2989, 1e-05
  %v2995 = vadd.f32 %v2990, 1e-05
  %v2996 = vadd.f32 %v2991, 1e-05
  %v2997 = vrsqrt.pop %v2992
  %v2998 = vrsqrt.pop %v2993
  %v2999 = vrsqrt.pop %v2994
  %v3000 = vrsqrt.pop %v2995
  %v3001 = vrsqrt.pop %v2996
  %v3002 = vmul.f32 %v2962, %v2997
  %v3003 = vmul.f32 %v2963, %v2998
  %v3004 = vmul.f32 %v2964, %v2999
  %v3005 = vmul.f32 %v2965, %v3000
  %v3006 = vmul.f32 %v2966, %v3001
  %s3007 = scalar_lea.vmem %s9, 1
  %v3008 = vld [vmem:[%s3007] sm:$0x1]
  %v3010 = vlaneseq
  %v3011 = vshrl.u32 %v3010, 7
  %v3012 = vsub.s32 0, %v3011
  %v3013 = vrot.slane %v3008, %v3012
  %v3015 = vmul.f32 %v3002, %v3013
  %v3016 = vmul.f32 %v3003, %v3013
  %v3017 = vmul.f32 %v3004, %v3013
  %v3018 = vmul.f32 %v3005, %v3013
  %v3019 = vmul.f32 %v3006, %v3013
  %s3020 = scalar_lea.vmem %s10, 1
  %v3021 = vld [vmem:[%s3020] sm:$0x1]
  %v3023 = vlaneseq
  %v3024 = vshrl.u32 %v3023, 7
  %v3025 = vsub.s32 0, %v3024
  %v3026 = vrot.slane %v3021, %v3025
  %v3028 = vadd.f32 %v3015, %v3026
  %v3029 = vadd.f32 %v3016, %v3026
  %v3030 = vadd.f32 %v3017, %v3026
  %v3031 = vadd.f32 %v3018, %v3026
  %v3032 = vadd.f32 %v3019, %v3026
  %v3033 = vpack.c.bf16 %v3029, %v3028
  %v3034 = vpack.c.bf16 %v3031, %v3030
  %v3035 = vpack.c.bf16 %v3032, %v3032
  %s3036 = scalar_lea.vmem %s11, 16
  %v3037 = vld [vmem:[%s3036] sm:$0xf]
  %v3038 = vld [vmem:[%s3036 + $0x4] sm:$0xf]
  %v3039 = vld [vmem:[%s3036 + $0x8] sm:$0xf]
  %v3040 = vld [vmem:[%s3036 + $0xc] sm:$0xf]
  %s3041 = scalar_lea.vmem %s12, 1
  %v3042 = vld [vmem:[%s3041] sm:$0x1]
  %v3044 = vlaneseq
  %v3045 = vshrl.u32 %v3044, 7
  %v3046 = vsub.s32 0, %v3045
  %v3047 = vrot.slane %v3042, %v3046
  %v3053 = vunpack.c.l.b16 %v3037
  %v3054 = vunpack.c.l.b16 %v3038
  %v3055 = vunpack.c.l.b16 %v3039
  %v3056 = vunpack.c.l.b16 %v3040
  %v3057 = vpack.c.b16 %v3054, %v3053
  %v3058 = vpack.c.b16 %v3056, %v3055
  %v3062 = vsel %vm184, %v3033, 0
  %v3065 = vsel %vm184, %v3034, 0
  %v3068 = vsel %vm184, %v3035, 0
  %3070 = vmatprep.subr.bf16.mxu0 0
  %3071 = vmatpush1.bf16.msra.mxu0 %v3057
  %3072 = vmatprep.subr.bf16.mxu0 0
  %3073 = vmatpush1.bf16.msra.mxu0 %v3058
  %3074 = vmatprep.subr.bf16.mxu0 0
  %3075 = vmatpush1.bf16.msra.mxu0 0
  %3076 = vmatprep.subr.bf16.mxu0 0
  %3077 = vmatpush1.bf16.msra.mxu0 0
  %3078 = vmatprep.subr.bf16.mxu0 0
  %3079 = vmatpush1.bf16.msra.mxu0 0
  %3080 = vmatprep.subr.bf16.mxu0 0
  %3081 = vmatpush1.bf16.msra.mxu0 0
  %3082 = vmatprep.subr.bf16.mxu0 0
  %3083 = vmatpush1.bf16.msra.mxu0 0
  %3084 = vmatprep.subr.bf16.mxu0 0
  %3085 = vmatpush1.bf16.msra.mxu0 0
  %3086 = vmatprep.subr.bf16.mxu0 0
  %3087 = vmatpush1.bf16.msra.mxu0 0
  %3088 = vmatprep.subr.bf16.mxu0 0
  %3089 = vmatpush1.bf16.msra.mxu0 0
  %3090 = vmatprep.subr.bf16.mxu0 0
  %3091 = vmatpush1.bf16.msra.mxu0 0
  %3092 = vmatprep.subr.bf16.mxu0 0
  %3093 = vmatpush1.bf16.msra.mxu0 0
  %3094 = vmatprep.subr.bf16.mxu0 0
  %3095 = vmatpush1.bf16.msra.mxu0 0
  %3096 = vmatprep.subr.bf16.mxu0 0
  %3097 = vmatpush1.bf16.msra.mxu0 0
  %3098 = vmatprep.subr.bf16.mxu0 0
  %3099 = vmatpush1.bf16.msra.mxu0 0
  %3100 = vmatprep.subr.bf16.mxu0 0
  %3101 = vmatpush1.bf16.msra.mxu0 0
  %3102 = vmatprep.mubr.bf16.mxu0 0
  %3103 = vmatmul.mubr.bf16.gmra.mrb[0].mxu0 %v3062
  %v3104 = vpop.f32.mrb[0].mxu0
  %v3105 = vadd.f32 %v3047, %v3104
  %v3106 = vpop.f32.mrb[0].mxu0
  %v3107 = vpop.f32.mrb[0].mxu0
  %v3108 = vadd.f32 %v3047, %v3107
  %v3109 = vpop.f32.mrb[0].mxu0
  %3110 = vmatprep.mubr.bf16.mxu0 0
  %3111 = vmatmul.mubr.bf16.gmra.mrb[0].mxu0 %v3065
  %v3112 = vpop.f32.mrb[0].mxu0
  %v3113 = vadd.f32 %v3047, %v3112
  %v3114 = vpop.f32.mrb[0].mxu0
  %v3115 = vpop.f32.mrb[0].mxu0
  %v3116 = vadd.f32 %v3047, %v3115
  %v3117 = vpop.f32.mrb[0].mxu0
  %3118 = vmatprep.mubr.bf16.mxu0 0
  %3119 = vmatmul.mubr.bf16.gmra.mrb[0].mxu0 %v3068
  %v3120 = vpop.f32.mrb[0].mxu0
  %v3121 = vadd.f32 %v3047, %v3120
  %v3122 = vpop.f32.mrb[0].mxu0
  %v3123 = vpop.f32.mrb[0].mxu0
  %v3124 = vpop.f32.mrb[0].mxu0
  %3125 = vdwg.mxu0
  %v3126 = vmax.f32 %v3105, 0.0
  %v3127 = vmax.f32 %v3108, 0.0
  %v3128 = vmax.f32 %v3113, 0.0
  %v3129 = vmax.f32 %v3116, 0.0
  %v3130 = vmax.f32 %v3121, 0.0
  %v3131 = vpack.c.bf16 %v3127, %v3126
  %v3132 = vpack.c.bf16 %v3129, %v3128
  %v3133 = vpack.c.bf16 %v3130, %v3130
  %s3134 = scalar_lea.vmem %s13, 64
  %v3135 = vld [vmem:[%s3134] sm:$0xf]
  %v3136 = vld [vmem:[%s3134 + $0x4] sm:$0xf]
  %v3137 = vld [vmem:[%s3134 + $0x8] sm:$0xf]
  %v3138 = vld [vmem:[%s3134 + $0xc] sm:$0xf]
  %v3139 = vld [vmem:[%s3134 + $0x10] sm:$0xf]
  %v3140 = vld [vmem:[%s3134 + $0x14] sm:$0xf]
  %v3141 = vld [vmem:[%s3134 + $0x18] sm:$0xf]
  %v3142 = vld [vmem:[%s3134 + $0x1c] sm:$0xf]
  %v3143 = vld [vmem:[%s3134 + $0x20] sm:$0xf]
  %v3144 = vld [vmem:[%s3134 + $0x24] sm:$0xf]
  %v3145 = vld [vmem:[%s3134 + $0x28] sm:$0xf]
  %v3146 = vld [vmem:[%s3134 + $0x2c] sm:$0xf]
  %v3147 = vld [vmem:[%s3134 + $0x30] sm:$0xf]
  %v3148 = vld [vmem:[%s3134 + $0x34] sm:$0xf]
  %v3149 = vld [vmem:[%s3134 + $0x38] sm:$0xf]
  %v3150 = vld [vmem:[%s3134 + $0x3c] sm:$0xf]
  %s3151 = scalar_lea.vmem %s14, 1
  %v3152 = vld [vmem:[%s3151] sm:$0x1]
  %v3154 = vlaneseq
  %v3155 = vshrl.u32 %v3154, 7
  %v3156 = vsub.s32 0, %v3155
  %v3157 = vrot.slane %v3152, %v3156
  %v3175 = vunpack.c.l.b16 %v3135
  %v3176 = vunpack.c.l.b16 %v3136
  %v3177 = vunpack.c.l.b16 %v3137
  %v3178 = vunpack.c.l.b16 %v3138
  %v3179 = vunpack.c.l.b16 %v3139
  %v3180 = vunpack.c.l.b16 %v3140
  %v3181 = vunpack.c.l.b16 %v3141
  %v3182 = vunpack.c.l.b16 %v3142
  %v3183 = vunpack.c.l.b16 %v3143
  %v3184 = vunpack.c.l.b16 %v3144
  %v3185 = vunpack.c.l.b16 %v3145
  %v3186 = vunpack.c.l.b16 %v3146
  %v3187 = vunpack.c.l.b16 %v3147
  %v3188 = vunpack.c.l.b16 %v3148
  %v3189 = vunpack.c.l.b16 %v3149
  %v3190 = vunpack.c.l.b16 %v3150
  %v3191 = vpack.c.b16 %v3176, %v3175
  %v3192 = vpack.c.b16 %v3178, %v3177
  %v3193 = vpack.c.b16 %v3180, %v3179
  %v3194 = vpack.c.b16 %v3182, %v3181
  %v3195 = vpack.c.b16 %v3184, %v3183
  %v3196 = vpack.c.b16 %v3186, %v3185
  %v3197 = vpack.c.b16 %v3188, %v3187
  %v3198 = vpack.c.b16 %v3190, %v3189
  %3207 = vmatprep.subr.bf16.mxu0 0
  %3208 = vmatpush1.bf16.msra.mxu0 %v3191
  %3209 = vmatprep.subr.bf16.mxu0 0
  %3210 = vmatpush1.bf16.msra.mxu0 %v3192
  %3211 = vmatprep.subr.bf16.mxu0 0
  %3212 = vmatpush1.bf16.msra.mxu0 %v3193
  %3213 = vmatprep.subr.bf16.mxu0 0
  %3214 = vmatpush1.bf16.msra.mxu0 %v3194
  %3215 = vmatprep.subr.bf16.mxu0 0
  %3216 = vmatpush1.bf16.msra.mxu0 %v3195
  %3217 = vmatprep.subr.bf16.mxu0 0
  %3218 = vmatpush1.bf16.msra.mxu0 %v3196
  %3219 = vmatprep.subr.bf16.mxu0 0
  %3220 = vmatpush1.bf16.msra.mxu0 %v3197
  %3221 = vmatprep.subr.bf16.mxu0 0
  %3222 = vmatpush1.bf16.msra.mxu0 %v3198
  %3223 = vmatprep.subr.bf16.mxu0 0
  %3224 = vmatpush1.bf16.msra.mxu0 0
  %3225 = vmatprep.subr.bf16.mxu0 0
  %3226 = vmatpush1.bf16.msra.mxu0 0
  %3227 = vmatprep.subr.bf16.mxu0 0
  %3228 = vmatpush1.bf16.msra.mxu0 0
  %3229 = vmatprep.subr.bf16.mxu0 0
  %3230 = vmatpush1.bf16.msra.mxu0 0
  %3231 = vmatprep.subr.bf16.mxu0 0
  %3232 = vmatpush1.bf16.msra.mxu0 0
  %3233 = vmatprep.subr.bf16.mxu0 0
  %3234 = vmatpush1.bf16.msra.mxu0 0
  %3235 = vmatprep.subr.bf16.mxu0 0
  %3236 = vmatpush1.bf16.msra.mxu0 0
  %3237 = vmatprep.subr.bf16.mxu0 0
  %3238 = vmatpush1.bf16.msra.mxu0 0
  %3239 = vmatprep.mubr.bf16.mxu0 0
  %3240 = vmatmul.mubr.bf16.gmra.mrb[0].mxu0 %v3131
  %v3241 = vpop.f32.mrb[0].mxu0
  %v3242 = vadd.f32 %v3157, %v3241
  %v3243 = vpop.f32.mrb[0].mxu0
  %v3244 = vpop.f32.mrb[0].mxu0
  %v3245 = vadd.f32 %v3157, %v3244
  %v3246 = vpop.f32.mrb[0].mxu0
  %3247 = vmatprep.mubr.bf16.mxu0 0
  %3248 = vmatmul.mubr.bf16.gmra.mrb[0].mxu0 %v3132
  %v3249 = vpop.f32.mrb[0].mxu0
  %v3250 = vadd.f32 %v3157, %v3249
  %v3251 = vpop.f32.mrb[0].mxu0
  %v3252 = vpop.f32.mrb[0].mxu0
  %v3253 = vadd.f32 %v3157, %v3252
  %v3254 = vpop.f32.mrb[0].mxu0
  %3255 = vmatprep.mubr.bf16.mxu0 0
  %3256 = vmatmul.mubr.bf16.gmra.mrb[0].mxu0 %v3133
  %v3257 = vpop.f32.mrb[0].mxu0
  %v3258 = vadd.f32 %v3157, %v3257
  %v3259 = vpop.f32.mrb[0].mxu0
  %v3260 = vpop.f32.mrb[0].mxu0
  %v3261 = vpop.f32.mrb[0].mxu0
  %3262 = vdwg.mxu0
  %v3263 = vadd.f32 %v3028, %v3242
  %v3264 = vadd.f32 %v3029, %v3245
  %v3265 = vadd.f32 %v3030, %v3250
  %v3266 = vadd.f32 %v3031, %v3253
  %v3267 = vadd.f32 %v3032, %v3258
  %v3268 = vsel %vm184, %v3263, 0.0
  %3269 = vadd.xlane.f32.xlu0 %v3268
  %v3270 = vpop.xlane.xlu0 %3269
  %v3271 = vsel %vm184, %v3264, 0.0
  %3272 = vadd.xlane.f32.xlu0 %v3271
  %v3273 = vpop.xlane.xlu0 %3272
  %v3274 = vsel %vm184, %v3265, 0.0
  %3275 = vadd.xlane.f32.xlu0 %v3274
  %v3276 = vpop.xlane.xlu0 %3275
  %v3277 = vsel %vm184, %v3266, 0.0
  %3278 = vadd.xlane.f32.xlu0 %v3277
  %v3279 = vpop.xlane.xlu0 %3278
  %v3280 = vsel %vm184, %v3267, 0.0
  %3281 = vadd.xlane.f32.xlu0 %v3280
  %v3282 = vpop.xlane.xlu0 %3281
  %v3283 = vmul.f32 %v3270, %v1361
  %v3284 = vmul.f32 %v3273, %v1361
  %v3285 = vmul.f32 %v3276, %v1361
  %v3286 = vmul.f32 %v3279, %v1361
  %v3287 = vmul.f32 %v3282, %v1361
  %v3288 = vsub.f32 %v3263, %v3283
  %v3289 = vsub.f32 %v3264, %v3284
  %v3290 = vsub.f32 %v3265, %v3285
  %v3291 = vsub.f32 %v3266, %v3286
  %v3292 = vsub.f32 %v3267, %v3287
  %v3293 = vmul.f32 %v3288, %v3288
  %v3294 = vmul.f32 %v3289, %v3289
  %v3295 = vmul.f32 %v3290, %v3290
  %v3296 = vmul.f32 %v3291, %v3291
  %v3297 = vmul.f32 %v3292, %v3292
  %v3298 = vsel %vm184, %v3293, 0.0
  %3299 = vadd.xlane.f32.xlu0 %v3298
  %v3300 = vpop.xlane.xlu0 %3299
  %v3301 = vsel %vm184, %v3294, 0.0
  %3302 = vadd.xlane.f32.xlu0 %v3301
  %v3303 = vpop.xlane.xlu0 %3302
  %v3304 = vsel %vm184, %v3295, 0.0
  %3305 = vadd.xlane.f32.xlu0 %v3304
  %v3306 = vpop.xlane.xlu0 %3305
  %v3307 = vsel %vm184, %v3296, 0.0
  %3308 = vadd.xlane.f32.xlu0 %v3307
  %v3309 = vpop.xlane.xlu0 %3308
  %v3310 = vsel %vm184, %v3297, 0.0
  %3311 = vadd.xlane.f32.xlu0 %v3310
  %v3312 = vpop.xlane.xlu0 %3311
  %v3313 = vmul.f32 %v3300, %v1361
  %v3314 = vmul.f32 %v3303, %v1361
  %v3315 = vmul.f32 %v3306, %v1361
  %v3316 = vmul.f32 %v3309, %v1361
  %v3317 = vmul.f32 %v3312, %v1361
  %v3318 = vadd.f32 %v3313, 1e-05
  %v3319 = vadd.f32 %v3314, 1e-05
  %v3320 = vadd.f32 %v3315, 1e-05
  %v3321 = vadd.f32 %v3316, 1e-05
  %v3322 = vadd.f32 %v3317, 1e-05
  %v3323 = vrsqrt.pop %v3318
  %v3324 = vrsqrt.pop %v3319
  %v3325 = vrsqrt.pop %v3320
  %v3326 = vrsqrt.pop %v3321
  %v3327 = vrsqrt.pop %v3322
  %v3328 = vmul.f32 %v3288, %v3323
  %v3329 = vmul.f32 %v3289, %v3324
  %v3330 = vmul.f32 %v3290, %v3325
  %v3331 = vmul.f32 %v3291, %v3326
  %v3332 = vmul.f32 %v3292, %v3327
  %s3333 = scalar_lea.vmem %s15, 1
  %v3334 = vld [vmem:[%s3333] sm:$0x1]
  %v3336 = vlaneseq
  %v3337 = vshrl.u32 %v3336, 7
  %v3338 = vsub.s32 0, %v3337
  %v3339 = vrot.slane %v3334, %v3338
  %v3341 = vmul.f32 %v3328, %v3339
  %v3342 = vmul.f32 %v3329, %v3339
  %v3343 = vmul.f32 %v3330, %v3339
  %v3344 = vmul.f32 %v3331, %v3339
  %v3345 = vmul.f32 %v3332, %v3339
  %s3346 = scalar_lea.vmem %s16, 1
  %v3347 = vld [vmem:[%s3346] sm:$0x1]
  %v3349 = vlaneseq
  %v3350 = vshrl.u32 %v3349, 7
  %v3351 = vsub.s32 0, %v3350
  %v3352 = vrot.slane %v3347, %v3351
  %v3354 = vadd.f32 %v3341, %v3352
  %v3355 = vadd.f32 %v3342, %v3352
  %v3356 = vadd.f32 %v3343, %v3352
  %v3357 = vadd.f32 %v3344, %v3352
  %v3358 = vadd.f32 %v3345, %v3352
  %v3359 = vpack.c.bf16 %v3355, %v3354
  %v3360 = vpack.c.bf16 %v3357, %v3356
  %v3361 = vpack.c.bf16 %v3358, %v3358
  %v3365 = vunpack.c.l.b16 %v3359
  %v3366 = vunpack.c.h.b16 %v3359
  %v3367 = vunpack.c.l.b16 %v3360
  %v3368 = vunpack.c.h.b16 %v3360
  %v3369 = vunpack.c.l.b16 %v3361
  %v3370 = vpack.c.b16 %v3365, %v3365
  %v3371 = vpack.c.b16 %v3366, %v3366
  %v3372 = vpack.c.b16 %v3367, %v3367
  %v3373 = vpack.c.b16 %v3368, %v3368
  %v3374 = vpack.c.b16 %v3369, %v3369
  %vm3380 = vcmask 257024
  %3381 = vst.msk [vmem:[%s17] sm:$0xf] %vm3380, %v3370
  %3382 = vst.msk [vmem:[%s17 + $0x4] sm:$0xf] %vm3380, %v3371
  %3383 = vst.msk [vmem:[%s17 + $0x8] sm:$0xf] %vm3380, %v3372
  %3384 = vst.msk [vmem:[%s17 + $0xc] sm:$0xf] %vm3380, %v3373
  %3385 = vst.msk [vmem:[%s17 + $0x10] sm:$0xf] %vm3380, %v3374
  // Predicated region
  $region70: #{transformer_rmlp_forward.5} parent=0 // pred_check
    _
  $region71: #{transformer_rmlp_forward.5} parent=0 // pred_check_branch
    %3387 = sbr.rel (0) target = $region73
  $region72: #{transformer_rmlp_forward.5} parent=0 // pred_region
    _
  $region73: #{transformer_rmlp_forward.5} parent=0 // pred_fallthru
    _
  // Predicated region
  $region74: #{transformer_rmlp_forward.5} parent=0 // pred_check
    _
  $region75: #{transformer_rmlp_forward.5} parent=0 // pred_check_branch
    %3389 = sbr.rel (0) target = $region77
  $region76: #{transformer_rmlp_forward.5} parent=0 // pred_region
    _
  $region77: #{transformer_rmlp_forward.5} parent=0 // pred_fallthru
    _

</llo_original>
